<compile_context>
chip_gen: v7x
topology: tpu7x:2x2x1
jax: 0.10.0
libtpu: 0.0.40
codegen_flags: <defaults>
</compile_context>

<pallas_src>
import math
import functools

import jax
import jax.numpy as jnp
from jax.experimental import pallas as pl
from jax.experimental.pallas import tpu as pltpu

# ---- constants from the reference file ----
D_BALL = 3                                                       # `d = 3`
# compute_nd_ball_volumn(3, 1) = pi^(3/2) / gamma(3/2 + 1) = 4*pi/3
VOLUMN = math.pi ** (D_BALL / 2) / math.gamma(D_BALL / 2 + 1)
NET_U_CONST = 1.0 / (D_BALL * (D_BALL - 2) * VOLUMN)             # = 1/(4*pi)


def _resnet_relu4_kernel(x_ref,
                         w1_ref, b1_ref, w2_ref, b2_ref,
                         w3_ref, b3_ref, w4_ref, b4_ref,
                         wo_ref, o_ref,
                         *, degree, boundary_control_type, mxu_dtype):
    xT = x_ref[...]                                   # (dim_pad, TN) f32, batch on lanes
    dim_pad, tn = xT.shape
    m = w1_ref.shape[0]

    def mm(w_ref, a):
        # Weights already live in mxu_dtype (cast hoisted to the wrapper);
        # only the activation operand is cast here when bf16 MXU is requested.
        w = w_ref[...]
        if mxu_dtype is not None:
            a = a.astype(mxu_dtype)
        return jnp.dot(w, a, preferred_element_type=jnp.float32)

    def pow_relu(y):                                  # matches F.relu(y ** degree)
        if degree != 1:
            # NOTE: fractional `degree` with negative pre-activations yields NaN,
            # exactly like the PyTorch reference (torch.pow semantics).
            y = y ** degree
        return jnp.maximum(y, 0.0)

    # s = x @ Ix  ==  x^T zero-extended from dim_pad rows to m rows.
    # dim_pad is a full sublane group (multiple of 8), so this is a cheap
    # sublane-aligned concat with zeros — no iota, no compare/select.
    if m > dim_pad:
        s = jnp.concatenate(
            [xT, jnp.zeros((m - dim_pad, tn), jnp.float32)], axis=0)
    else:
        s = xT[:m, :]

    # residual block 1
    y = pow_relu(mm(w1_ref, xT) + b1_ref[...])        # (m, TN)
    y = pow_relu(mm(w2_ref, y) + b2_ref[...]) + s
    s = y
    # residual block 2
    y = pow_relu(mm(w3_ref, y) + b3_ref[...])
    y = pow_relu(mm(w4_ref, y) + b4_ref[...]) + s

    # output head (no bias): (1, m) @ (m, TN) -> (1, TN), lane-dense
    y = mm(wo_ref, y)

    if boundary_control_type == "none":
        o_ref[...] = y
    elif boundary_control_type == "net_u":
        r = jnp.sum(xT * xT, axis=0, keepdims=True)   # padded rows are zero
        o_ref[...] = (jnp.cos(jnp.pi / 4 + jnp.pi / 4 * r) * jnp.exp(y)
                      + NET_U_CONST)
    elif boundary_control_type == "net_v":
        r = jnp.sum(xT * xT, axis=0, keepdims=True)
        o_ref[...] = jnp.cos(jnp.pi / 4 + jnp.pi / 4 * r) * y
    else:  # unreachable -- wrapper validates; keep a trace-time guard
        raise ValueError(f"unsupported boundary_control_type: {boundary_control_type!r}")


def resnet_relu4_forward(x, params, *, degree=1, boundary_control_type="none",
                         tile_n=8192, mxu_dtype=None):
    """x: (N, dim) float32.  Returns (N,) float32, matching forward().squeeze(1).

    mxu_dtype: None keeps f32 matmuls (fine on all generations — the MXU is
    nowhere near saturated at m=32); jnp.bfloat16 stores the weights in bf16
    and casts only the activation matmul operands (f32 accumulation and f32
    elementwise math throughout).  bf16 is also valid on v5e (its MXU is
    bf16-native), but on this net the bottleneck is per-step overhead / VPU
    work, not MXU passes, so measure before enabling it.
    """
    if boundary_control_type not in ("none", "net_u", "net_v"):
        # 'cube' (the PyTorch default) returns None in the reference forward();
        # raise at trace time rather than producing wrong values.
        raise ValueError(
            f"boundary_control_type {boundary_control_type!r} has no defined "
            "output in the reference forward()")

    N, dim = x.shape
    m, dim_w = params["w1"].shape
    assert dim_w == dim, "w1 must be (m, dim)"

    # ---- batch tiling: lane axis must be a multiple of 128.  Use large tiles
    # to amortize per-step pipeline overhead, but keep >= 2 grid steps when
    # the batch allows it so v7x's two TensorCores both get work.
    tile_n = max(128, (int(tile_n) // 128) * 128)
    n_align = pl.cdiv(N, 128) * 128
    if n_align <= tile_n:
        tile_n = n_align if n_align < 256 else pl.cdiv(n_align // 2, 128) * 128
    n_pad = pl.cdiv(N, tile_n) * tile_n
    grid = (n_pad // tile_n,)

    # ---- feature padding: round dim up to a full sublane group (8) so the
    # identity residual (s = x @ Ix) is a plain aligned add in the kernel.
    dim_pad = max(8, pl.cdiv(dim, 8) * 8)

    # Wrapper-side transpose + zero pad: layout plumbing, not extra compute.
    # Keep this under the same jit as the producer of x so XLA fuses it.
    xT = jnp.asarray(x, jnp.float32).T                # (dim, N)
    xT = jnp.pad(xT, ((0, dim_pad - dim), (0, n_pad - N)))

    # Zero-pad w1's input columns to dim_pad (they only ever hit the zero rows
    # of xT) and hoist the optional bf16 cast of ALL weights out of the kernel.
    w1 = jnp.pad(jnp.asarray(params["w1"], jnp.float32),
                 ((0, 0), (0, dim_pad - dim)))
    w_dtype = jnp.float32 if mxu_dtype is None else mxu_dtype
    w1 = w1.astype(w_dtype)
    w2 = jnp.asarray(params["w2"], w_dtype)
    w3 = jnp.asarray(params["w3"], w_dtype)
    w4 = jnp.asarray(params["w4"], w_dtype)
    wo = jnp.asarray(params["wo"], w_dtype)
    b1, b2, b3, b4 = (jnp.asarray(params[k], jnp.float32)
                      for k in ("b1", "b2", "b3", "b4"))

    kernel = functools.partial(_resnet_relu4_kernel,
                               degree=degree,
                               boundary_control_type=boundary_control_type,
                               mxu_dtype=mxu_dtype)

    def full_spec(shape):                             # whole array, every step
        return pl.BlockSpec(shape, lambda i: (0, 0))

    out = pl.pallas_call(
        kernel,
        out_shape=jax.ShapeDtypeStruct((1, n_pad), jnp.float32),
        grid_spec=pltpu.PrefetchScalarGridSpec(
            num_scalar_prefetch=0,
            grid=grid,
            in_specs=[
                pl.BlockSpec((dim_pad, tile_n), lambda i: (0, i)),  # x^T tile
                full_spec((m, dim_pad)), full_spec((m, 1)),         # fc1
                full_spec((m, m)),       full_spec((m, 1)),         # fc2
                full_spec((m, m)),       full_spec((m, 1)),         # fc3
                full_spec((m, m)),       full_spec((m, 1)),         # fc4
                full_spec((1, m)),                                  # outlayer
            ],
            out_specs=pl.BlockSpec((1, tile_n), lambda i: (0, i)),  # lane-dense
        ),
        compiler_params=pltpu.CompilerParams(
            dimension_semantics=("parallel",)),
    )(xT, w1, b1, w2, b2, w3, b3, w4, b4, wo)

    return out[0, :N]                                 # matches .squeeze(1)


def init_params(key, dim, m):
    """nn.Linear-style init U(-1/sqrt(fan_in), 1/sqrt(fan_in)).
    Weights stored in PyTorch layout (out_features, in_features); biases (out, 1)."""
    keys = jax.random.split(key, 9)

    def lin(kw, kb, fan_in, fan_out, bias=True):
        bound = 1.0 / math.sqrt(fan_in)
        w = jax.random.uniform(kw, (fan_out, fan_in), jnp.float32, -bound, bound)
        b = (jax.random.uniform(kb, (fan_out, 1), jnp.float32, -bound, bound)
             if bias else None)
        return w, b

    w1, b1 = lin(keys[0], keys[1], dim, m)
    w2, b2 = lin(keys[2], keys[3], m, m)
    w3, b3 = lin(keys[4], keys[5], m, m)
    w4, b4 = lin(keys[6], keys[7], m, m)
    wo, _ = lin(keys[8], keys[8], m, 1, bias=False)
    return dict(w1=w1, b1=b1, w2=w2, b2=b2, w3=w3, b3=b3, w4=w4, b4=b4, wo=wo)


def reference_forward(x, p, degree=1, boundary_control_type="none"):
    """Pure-JAX reference mirroring the PyTorch forward (batch-major layout)."""
    def pr(y):
        return jnp.maximum(y ** degree, 0.0)
    N, dim = x.shape
    m = p["w1"].shape[0]
    s = jnp.pad(x, ((0, 0), (0, m - dim)))            # x @ Ix
    y = pr(x @ p["w1"].T + p["b1"][:, 0])
    y = pr(y @ p["w2"].T + p["b2"][:, 0]) + s
    s = y
    y = pr(y @ p["w3"].T + p["b3"][:, 0])
    y = pr(y @ p["w4"].T + p["b4"][:, 0]) + s
    y = (y @ p["wo"].T)[:, 0]
    if boundary_control_type == "none":
        return y
    r = jnp.sum(x ** 2, axis=1)
    if boundary_control_type == "net_u":
        return jnp.cos(jnp.pi / 4 + jnp.pi / 4 * r) * jnp.exp(y) + NET_U_CONST
    return jnp.cos(jnp.pi / 4 + jnp.pi / 4 * r) * y


if __name__ == "__main__":
    # ResNet_Relu4(m=32, dim=2, degree=1); a small batch of collocation points.
    dim, m, N = 2, 32, 4096
    key = jax.random.PRNGKey(0)
    kx, kp = jax.random.split(key)

    x = jax.random.normal(kx, (N, dim), jnp.float32)
    params = init_params(kp, dim, m)

    # f32 MXU path, 'none' boundary control
    out = resnet_relu4_forward(x, params, degree=1,
                               boundary_control_type="none")
    out = jax.block_until_ready(out)
    ref = reference_forward(x, params, 1, "none")
    assert out.shape == (N,)
    assert jnp.max(jnp.abs(out - ref)) < 1e-4, "mismatch vs reference (none)"

    # f32 MXU path, 'net_u' boundary control
    out_u = resnet_relu4_forward(x, params, degree=1,
                                 boundary_control_type="net_u")
    out_u = jax.block_until_ready(out_u)
    ref_u = reference_forward(x, params, 1, "net_u")
    assert jnp.max(jnp.abs(out_u - ref_u)) < 1e-4, "mismatch vs reference (net_u)"

    # f32 MXU path, 'net_v' boundary control
    out_v = resnet_relu4_forward(x, params, degree=1,
                                 boundary_control_type="net_v")
    out_v = jax.block_until_ready(out_v)
    ref_v = reference_forward(x, params, 1, "net_v")
    assert jnp.max(jnp.abs(out_v - ref_v)) < 1e-4, "mismatch vs reference (net_v)"

    # bf16 MXU operands (weights pre-cast in the wrapper), f32 accumulation
    out_bf = resnet_relu4_forward(x, params, degree=1,
                                  boundary_control_type="none",
                                  mxu_dtype=jnp.bfloat16)
    out_bf = jax.block_until_ready(out_bf)
    assert jnp.max(jnp.abs(out_bf - ref)) < 1e-1, "bf16 path too far from reference"

    print("KERNEL_OK")
</pallas_src>

<mosaic_0001>
module attributes {stable_mosaic.version = 11 : i64} {
  func.func @_resnet_relu4_kernel(%arg0: i32, %arg1: memref<8x2048xf32, #tpu.memory_space<vmem>>, %arg2: memref<32x8xf32, #tpu.memory_space<vmem>>, %arg3: memref<32x1xf32, #tpu.memory_space<vmem>>, %arg4: memref<32x32xf32, #tpu.memory_space<vmem>>, %arg5: memref<32x1xf32, #tpu.memory_space<vmem>>, %arg6: memref<32x32xf32, #tpu.memory_space<vmem>>, %arg7: memref<32x1xf32, #tpu.memory_space<vmem>>, %arg8: memref<32x32xf32, #tpu.memory_space<vmem>>, %arg9: memref<32x1xf32, #tpu.memory_space<vmem>>, %arg10: memref<1x32xf32, #tpu.memory_space<vmem>>, %arg11: memref<1x2048xf32, #tpu.memory_space<vmem>>) attributes {dimension_semantics = [#tpu.dimension_semantics<parallel>], iteration_bounds = array<i64: 2>, scalar_prefetch = 0 : i64, scratch_operands = 0 : i64, tpu.core_type = #tpu.core_type<tc>, window_params = [{transform_indices = @transform_0, window_bounds = array<i64: 8, 2048>}, {pipeline_mode = #tpu.pipeline_mode<synchronous>, transform_indices = @transform_1, window_bounds = array<i64: 32, 8>}, {pipeline_mode = #tpu.pipeline_mode<synchronous>, transform_indices = @transform_2, window_bounds = array<i64: 32, 1>}, {pipeline_mode = #tpu.pipeline_mode<synchronous>, transform_indices = @transform_3, window_bounds = array<i64: 32, 32>}, {pipeline_mode = #tpu.pipeline_mode<synchronous>, transform_indices = @transform_4, window_bounds = array<i64: 32, 1>}, {pipeline_mode = #tpu.pipeline_mode<synchronous>, transform_indices = @transform_5, window_bounds = array<i64: 32, 32>}, {pipeline_mode = #tpu.pipeline_mode<synchronous>, transform_indices = @transform_6, window_bounds = array<i64: 32, 1>}, {pipeline_mode = #tpu.pipeline_mode<synchronous>, transform_indices = @transform_7, window_bounds = array<i64: 32, 32>}, {pipeline_mode = #tpu.pipeline_mode<synchronous>, transform_indices = @transform_8, window_bounds = array<i64: 32, 1>}, {pipeline_mode = #tpu.pipeline_mode<synchronous>, transform_indices = @transform_9, window_bounds = array<i64: 1, 32>}, {transform_indices = @transform_10, window_bounds = array<i64: 1, 2048>}]} {
    %c0 = arith.constant 0 : index
    %c0_0 = arith.constant 0 : index
    %0 = vector.load %arg1[%c0, %c0_0] : memref<8x2048xf32, #tpu.memory_space<vmem>>, vector<8x2048xf32>
    %cst = arith.constant 0.000000e+00 : f32
    %1 = vector.broadcast %cst : f32 to vector<24x2048xf32>
    %2 = tpu.concatenate %0, %1 in 0 : vector<8x2048xf32>, vector<24x2048xf32> -> vector<32x2048xf32>
    %c0_1 = arith.constant 0 : index
    %c0_2 = arith.constant 0 : index
    %3 = vector.load %arg2[%c0_1, %c0_2] : memref<32x8xf32, #tpu.memory_space<vmem>>, vector<32x8xf32>
    %cst_3 = arith.constant dense<0.000000e+00> : vector<32x2048xf32>
    %4 = tpu.matmul %3, %0, %cst_3 {dimension_numbers = #tpu.dot_dimension_numbers<[1], [0], [0], [1], [0, 0, 1, 1], [], []>} : vector<32x8xf32>, vector<8x2048xf32>, vector<32x2048xf32> -> vector<32x2048xf32>
    %c0_4 = arith.constant 0 : index
    %c0_5 = arith.constant 0 : index
    %5 = vector.load %arg3[%c0_4, %c0_5] : memref<32x1xf32, #tpu.memory_space<vmem>>, vector<32x1xf32>
    %6 = vector.broadcast %5 : vector<32x1xf32> to vector<32x2048xf32>
    %7 = arith.addf %4, %6 : vector<32x2048xf32>
    %cst_6 = arith.constant 0.000000e+00 : f32
    %8 = vector.broadcast %cst_6 : f32 to vector<32x2048xf32>
    %9 = arith.maximumf %7, %8 : vector<32x2048xf32>
    %c0_7 = arith.constant 0 : index
    %c0_8 = arith.constant 0 : index
    %10 = vector.load %arg4[%c0_7, %c0_8] : memref<32x32xf32, #tpu.memory_space<vmem>>, vector<32x32xf32>
    %cst_9 = arith.constant dense<0.000000e+00> : vector<32x2048xf32>
    %11 = tpu.matmul %10, %9, %cst_9 {dimension_numbers = #tpu.dot_dimension_numbers<[1], [0], [0], [1], [0, 0, 1, 1], [], []>} : vector<32x32xf32>, vector<32x2048xf32>, vector<32x2048xf32> -> vector<32x2048xf32>
    %c0_10 = arith.constant 0 : index
    %c0_11 = arith.constant 0 : index
    %12 = vector.load %arg5[%c0_10, %c0_11] : memref<32x1xf32, #tpu.memory_space<vmem>>, vector<32x1xf32>
    %13 = vector.broadcast %12 : vector<32x1xf32> to vector<32x2048xf32>
    %14 = arith.addf %11, %13 : vector<32x2048xf32>
    %cst_12 = arith.constant 0.000000e+00 : f32
    %15 = vector.broadcast %cst_12 : f32 to vector<32x2048xf32>
    %16 = arith.maximumf %14, %15 : vector<32x2048xf32>
    %17 = arith.addf %16, %2 : vector<32x2048xf32>
    %c0_13 = arith.constant 0 : index
    %c0_14 = arith.constant 0 : index
    %18 = vector.load %arg6[%c0_13, %c0_14] : memref<32x32xf32, #tpu.memory_space<vmem>>, vector<32x32xf32>
    %cst_15 = arith.constant dense<0.000000e+00> : vector<32x2048xf32>
    %19 = tpu.matmul %18, %17, %cst_15 {dimension_numbers = #tpu.dot_dimension_numbers<[1], [0], [0], [1], [0, 0, 1, 1], [], []>} : vector<32x32xf32>, vector<32x2048xf32>, vector<32x2048xf32> -> vector<32x2048xf32>
    %c0_16 = arith.constant 0 : index
    %c0_17 = arith.constant 0 : index
    %20 = vector.load %arg7[%c0_16, %c0_17] : memref<32x1xf32, #tpu.memory_space<vmem>>, vector<32x1xf32>
    %21 = vector.broadcast %20 : vector<32x1xf32> to vector<32x2048xf32>
    %22 = arith.addf %19, %21 : vector<32x2048xf32>
    %cst_18 = arith.constant 0.000000e+00 : f32
    %23 = vector.broadcast %cst_18 : f32 to vector<32x2048xf32>
    %24 = arith.maximumf %22, %23 : vector<32x2048xf32>
    %c0_19 = arith.constant 0 : index
    %c0_20 = arith.constant 0 : index
    %25 = vector.load %arg8[%c0_19, %c0_20] : memref<32x32xf32, #tpu.memory_space<vmem>>, vector<32x32xf32>
    %cst_21 = arith.constant dense<0.000000e+00> : vector<32x2048xf32>
    %26 = tpu.matmul %25, %24, %cst_21 {dimension_numbers = #tpu.dot_dimension_numbers<[1], [0], [0], [1], [0, 0, 1, 1], [], []>} : vector<32x32xf32>, vector<32x2048xf32>, vector<32x2048xf32> -> vector<32x2048xf32>
    %c0_22 = arith.constant 0 : index
    %c0_23 = arith.constant 0 : index
    %27 = vector.load %arg9[%c0_22, %c0_23] : memref<32x1xf32, #tpu.memory_space<vmem>>, vector<32x1xf32>
    %28 = vector.broadcast %27 : vector<32x1xf32> to vector<32x2048xf32>
    %29 = arith.addf %26, %28 : vector<32x2048xf32>
    %cst_24 = arith.constant 0.000000e+00 : f32
    %30 = vector.broadcast %cst_24 : f32 to vector<32x2048xf32>
    %31 = arith.maximumf %29, %30 : vector<32x2048xf32>
    %32 = arith.addf %31, %17 : vector<32x2048xf32>
    %c0_25 = arith.constant 0 : index
    %c0_26 = arith.constant 0 : index
    %33 = vector.load %arg10[%c0_25, %c0_26] : memref<1x32xf32, #tpu.memory_space<vmem>>, vector<1x32xf32>
    %cst_27 = arith.constant dense<0.000000e+00> : vector<1x2048xf32>
    %34 = tpu.matmul %33, %32, %cst_27 {dimension_numbers = #tpu.dot_dimension_numbers<[1], [0], [0], [1], [0, 0, 1, 1], [], []>} : vector<1x32xf32>, vector<32x2048xf32>, vector<1x2048xf32> -> vector<1x2048xf32>
    %c0_28 = arith.constant 0 : index
    %c0_29 = arith.constant 0 : index
    %35 = vector.load %arg11[%c0_28, %c0_29] : memref<1x2048xf32, #tpu.memory_space<vmem>>, vector<1x2048xf32>
    tpu.vector_store %arg11[%c0_28, %c0_29], %34 {strides = array<i32>} : memref<1x2048xf32, #tpu.memory_space<vmem>>, vector<1x2048xf32>,
    return
  }
  func.func @transform_0(%arg0: i32) -> (i32, i32) {
    %c0_i32 = arith.constant 0 : i32
    %c0_i32_0 = arith.constant 0 : i32
    return %c0_i32, %arg0 : i32, i32
  }
  func.func @transform_1(%arg0: i32) -> (i32, i32) {
    %c0_i32 = arith.constant 0 : i32
    %c0_i32_0 = arith.constant 0 : i32
    %c0_i32_1 = arith.constant 0 : i32
    return %c0_i32, %c0_i32_0 : i32, i32
  }
  func.func @transform_2(%arg0: i32) -> (i32, i32) {
    %c0_i32 = arith.constant 0 : i32
    %c0_i32_0 = arith.constant 0 : i32
    %c0_i32_1 = arith.constant 0 : i32
    return %c0_i32, %c0_i32_0 : i32, i32
  }
  func.func @transform_3(%arg0: i32) -> (i32, i32) {
    %c0_i32 = arith.constant 0 : i32
    %c0_i32_0 = arith.constant 0 : i32
    %c0_i32_1 = arith.constant 0 : i32
    return %c0_i32, %c0_i32_0 : i32, i32
  }
  func.func @transform_4(%arg0: i32) -> (i32, i32) {
    %c0_i32 = arith.constant 0 : i32
    %c0_i32_0 = arith.constant 0 : i32
    %c0_i32_1 = arith.constant 0 : i32
    return %c0_i32, %c0_i32_0 : i32, i32
  }
  func.func @transform_5(%arg0: i32) -> (i32, i32) {
    %c0_i32 = arith.constant 0 : i32
    %c0_i32_0 = arith.constant 0 : i32
    %c0_i32_1 = arith.constant 0 : i32
    return %c0_i32, %c0_i32_0 : i32, i32
  }
  func.func @transform_6(%arg0: i32) -> (i32, i32) {
    %c0_i32 = arith.constant 0 : i32
    %c0_i32_0 = arith.constant 0 : i32
    %c0_i32_1 = arith.constant 0 : i32
    return %c0_i32, %c0_i32_0 : i32, i32
  }
  func.func @transform_7(%arg0: i32) -> (i32, i32) {
    %c0_i32 = arith.constant 0 : i32
    %c0_i32_0 = arith.constant 0 : i32
    %c0_i32_1 = arith.constant 0 : i32
    return %c0_i32, %c0_i32_0 : i32, i32
  }
  func.func @transform_8(%arg0: i32) -> (i32, i32) {
    %c0_i32 = arith.constant 0 : i32
    %c0_i32_0 = arith.constant 0 : i32
    %c0_i32_1 = arith.constant 0 : i32
    return %c0_i32, %c0_i32_0 : i32, i32
  }
  func.func @transform_9(%arg0: i32) -> (i32, i32) {
    %c0_i32 = arith.constant 0 : i32
    %c0_i32_0 = arith.constant 0 : i32
    %c0_i32_1 = arith.constant 0 : i32
    return %c0_i32, %c0_i32_0 : i32, i32
  }
  func.func @transform_10(%arg0: i32) -> (i32, i32) {
    %c0_i32 = arith.constant 0 : i32
    %c0_i32_0 = arith.constant 0 : i32
    return %c0_i32, %arg0 : i32, i32
  }
}

</mosaic_0001>

<llo_original>
// kernel: tpu_custom_call.1
$region0: #{tpu_custom_call.1}
  #allocation0 [shape = 'u32[]', space=smem, size = 0x4, offset = 0x4, fixed_abs, tag = 'smem constant byte address 0x4 - core index']
  #allocation1 [shape = 'u32[144,128]{1,0:T(1,128)}', space=vmem, size = 0x12000, scoped, tag = 'internal scratch']
  %s0 = inlined_call_operand.hbm [shape: f32[8,4096], index: 0, kind: input, shape index: {}]
  %s1 = inlined_call_operand.vmem [shape: f32[32,8], index: 1, kind: input, shape index: {}]
  %s2 = inlined_call_operand.vmem [shape: f32[32,1], index: 2, kind: input, shape index: {}]
  %s3 = inlined_call_operand.vmem [shape: f32[32,32], index: 3, kind: input, shape index: {}]
  %s4 = inlined_call_operand.vmem [shape: f32[32,1], index: 4, kind: input, shape index: {}]
  %s5 = inlined_call_operand.vmem [shape: f32[32,32], index: 5, kind: input, shape index: {}]
  %s6 = inlined_call_operand.vmem [shape: f32[32,1], index: 6, kind: input, shape index: {}]
  %s7 = inlined_call_operand.vmem [shape: f32[32,32], index: 7, kind: input, shape index: {}]
  %s8 = inlined_call_operand.vmem [shape: f32[32,1], index: 8, kind: input, shape index: {}]
  %s9 = inlined_call_operand.vmem [shape: f32[1,32], index: 9, kind: input, shape index: {}]
  %s10 = inlined_call_operand.hbm [shape: f32[1,4096], index: 10, kind: output, shape index: {}]
  %s11 = sld [smem:[#allocation0]]
  $region77: #{tpu_custom_call.1} parent=0
    _
  %s13 = ssub.s32 1, %s11
  %s14 = scalar_select 0, %s13, %s11
  $region1: #{tpu_custom_call.1} parent=0
    #allocation2 [shape = 'u8[131072]{0}', space=vmem, size = 0x20000, scoped, tag = 'input window, operand 0']
    #allocation3 [shape = 's32[2]{0}', space=sflag, size = 0x8, scoped, tag = 'scoped memory for tpu_custom_call.1']
    #allocation4 [shape = 's32[2]{0}', space=sflag, size = 0x8, scoped, tag = 'scoped memory for tpu_custom_call.1']
    #allocation5 [shape = 'u8[16384]{0}', space=vmem, size = 0x4000, scoped, tag = 'output window, operand 0']
    %15 = vsyncpa [#allocation3], 0
    %s16 = scalar_lea.sflag [#allocation3], 1
    %17 = vsyncpa %s16, 0
    %18 = vsyncpa [#allocation4], 0
    %s19 = scalar_lea.sflag [#allocation4], 1
    %20 = vsyncpa %s19, 0
    loop: start=0, step=1, limit=4
    $region2: #{tpu_custom_call.1} parent=1 // loop_pre_header
      _
    $region3: #{tpu_custom_call.1} parent=1 // loop_header
      %s22 = sphi 0, %s26
      %p23 = scmp.ge.s32.totalorder %s22, 4
      %s32 = sphi 0, %s34
      %s35 = sphi 0, %s32
      %s36 = sphi 0, %s35
      %s52 = sphi 0, %s36
      %s56 = sphi 0, %s56
      %s58 = sphi 0, %s56
      %s59 = sphi 0, %s58
      %s73 = sphi 0, %s59
      %s77 = sphi 0, %s77
      %s79 = sphi 0, %s77
      %s80 = sphi 0, %s79
      %s94 = sphi 0, %s80
      %s98 = sphi 0, %s98
      %s100 = sphi 0, %s98
      %s101 = sphi 0, %s100
      %s115 = sphi 0, %s101
      %s119 = sphi 0, %s119
      %s121 = sphi 0, %s119
      %s122 = sphi 0, %s121
      %s136 = sphi 0, %s122
      %s140 = sphi 0, %s140
      %s142 = sphi 0, %s140
      %s143 = sphi 0, %s142
      %s157 = sphi 0, %s143
      %s161 = sphi 0, %s161
      %s163 = sphi 0, %s161
      %s164 = sphi 0, %s163
      %s178 = sphi 0, %s164
      %s182 = sphi 0, %s182
      %s184 = sphi 0, %s182
      %s185 = sphi 0, %s184
      %s199 = sphi 0, %s185
      %s203 = sphi 0, %s203
      %s205 = sphi 0, %s203
      %s206 = sphi 0, %s205
      %s220 = sphi 0, %s206
      %s224 = sphi 0, %s224
      %s226 = sphi 0, %s224
      %s227 = sphi 0, %s226
      %s241 = sphi 0, %s227
      %s247 = sphi 0, %s249
      %s250 = sphi 0, %s247
      %s251 = sphi 0, %s250
      %s267 = sphi 0, %s251
    $region4: #{tpu_custom_call.1} parent=1 // loop_header_branch
      %25 = sbr.rel (%p23) target = $region8
    $region5: #{tpu_custom_call.1} parent=1 // loop_body
      %s27 = ssub.s32 %s22, 1
      %s28 = ssub.s32 %s22, 2
      %s29 = sadd.s32 %s22, 1
      %s30 = ssub.s32 %s22, %s29
      %p31 = scmp.eq.s32.totalorder %s30, 0
      %s33 = sadd.s32 %s32, 1
      %s34 = scalar_select %p31, %s32, %s33
      %p37 = pneg %p31
      %p38 = scmp.eq.s32.totalorder %s22, 1
      %p39 = por %p37, %p38
      %p40 = scmp.ne.s32.totalorder %s32, %s35
      %p41 = scmp.eq.s32.totalorder %s22, 0
      %p42 = por %p40, %p41
      %p43 = scmp.ne.s32.totalorder %s32, %s35
      %p44 = scmp.eq.s32.totalorder %s27, 1
      %p45 = por %p43, %p44
      %p46 = scmp.ne.s32.totalorder %s35, %s36
      %p47 = scmp.eq.s32.totalorder %s27, 0
      %p48 = por %p46, %p47
      %p49 = scmp.ne.s32.totalorder %s35, %s36
      %p50 = scmp.eq.s32.totalorder %s28, 1
      %p51 = por %p49, %p50
      %p53 = scmp.ne.s32.totalorder %s36, %s52
      %p54 = scmp.eq.s32.totalorder %s28, 0
      %p55 = por %p53, %p54
      %s57 = sadd.s32 %s56, 1
      %p60 = scmp.eq.s32.totalorder %s22, 1
      %p61 = scmp.ne.s32.totalorder %s56, %s58
      %p62 = scmp.eq.s32.totalorder %s22, 0
      %p63 = por %p61, %p62
      %p64 = scmp.ne.s32.totalorder %s56, %s58
      %p65 = scmp.eq.s32.totalorder %s27, 1
      %p66 = por %p64, %p65
      %p67 = scmp.ne.s32.totalorder %s58, %s59
      %p68 = scmp.eq.s32.totalorder %s27, 0
      %p69 = por %p67, %p68
      %p70 = scmp.ne.s32.totalorder %s58, %s59
      %p71 = scmp.eq.s32.totalorder %s28, 1
      %p72 = por %p70, %p71
      %p74 = scmp.ne.s32.totalorder %s59, %s73
      %p75 = scmp.eq.s32.totalorder %s28, 0
      %p76 = por %p74, %p75
      %s78 = sadd.s32 %s77, 1
      %p81 = scmp.eq.s32.totalorder %s22, 1
      %p82 = scmp.ne.s32.totalorder %s77, %s79
      %p83 = scmp.eq.s32.totalorder %s22, 0
      %p84 = por %p82, %p83
      %p85 = scmp.ne.s32.totalorder %s77, %s79
      %p86 = scmp.eq.s32.totalorder %s27, 1
      %p87 = por %p85, %p86
      %p88 = scmp.ne.s32.totalorder %s79, %s80
      %p89 = scmp.eq.s32.totalorder %s27, 0
      %p90 = por %p88, %p89
      %p91 = scmp.ne.s32.totalorder %s79, %s80
      %p92 = scmp.eq.s32.totalorder %s28, 1
      %p93 = por %p91, %p92
      %p95 = scmp.ne.s32.totalorder %s80, %s94
      %p96 = scmp.eq.s32.totalorder %s28, 0
      %p97 = por %p95, %p96
      %s99 = sadd.s32 %s98, 1
      %p102 = scmp.eq.s32.totalorder %s22, 1
      %p103 = scmp.ne.s32.totalorder %s98, %s100
      %p104 = scmp.eq.s32.totalorder %s22, 0
      %p105 = por %p103, %p104
      %p106 = scmp.ne.s32.totalorder %s98, %s100
      %p107 = scmp.eq.s32.totalorder %s27, 1
      %p108 = por %p106, %p107
      %p109 = scmp.ne.s32.totalorder %s100, %s101
      %p110 = scmp.eq.s32.totalorder %s27, 0
      %p111 = por %p109, %p110
      %p112 = scmp.ne.s32.totalorder %s100, %s101
      %p113 = scmp.eq.s32.totalorder %s28, 1
      %p114 = por %p112, %p113
      %p116 = scmp.ne.s32.totalorder %s101, %s115
      %p117 = scmp.eq.s32.totalorder %s28, 0
      %p118 = por %p116, %p117
      %s120 = sadd.s32 %s119, 1
      %p123 = scmp.eq.s32.totalorder %s22, 1
      %p124 = scmp.ne.s32.totalorder %s119, %s121
      %p125 = scmp.eq.s32.totalorder %s22, 0
      %p126 = por %p124, %p125
      %p127 = scmp.ne.s32.totalorder %s119, %s121
      %p128 = scmp.eq.s32.totalorder %s27, 1
      %p129 = por %p127, %p128
      %p130 = scmp.ne.s32.totalorder %s121, %s122
      %p131 = scmp.eq.s32.totalorder %s27, 0
      %p132 = por %p130, %p131
      %p133 = scmp.ne.s32.totalorder %s121, %s122
      %p134 = scmp.eq.s32.totalorder %s28, 1
      %p135 = por %p133, %p134
      %p137 = scmp.ne.s32.totalorder %s122, %s136
      %p138 = scmp.eq.s32.totalorder %s28, 0
      %p139 = por %p137, %p138
      %s141 = sadd.s32 %s140, 1
      %p144 = scmp.eq.s32.totalorder %s22, 1
      %p145 = scmp.ne.s32.totalorder %s140, %s142
      %p146 = scmp.eq.s32.totalorder %s22, 0
      %p147 = por %p145, %p146
      %p148 = scmp.ne.s32.totalorder %s140, %s142
      %p149 = scmp.eq.s32.totalorder %s27, 1
      %p150 = por %p148, %p149
      %p151 = scmp.ne.s32.totalorder %s142, %s143
      %p152 = scmp.eq.s32.totalorder %s27, 0
      %p153 = por %p151, %p152
      %p154 = scmp.ne.s32.totalorder %s142, %s143
      %p155 = scmp.eq.s32.totalorder %s28, 1
      %p156 = por %p154, %p155
      %p158 = scmp.ne.s32.totalorder %s143, %s157
      %p159 = scmp.eq.s32.totalorder %s28, 0
      %p160 = por %p158, %p159
      %s162 = sadd.s32 %s161, 1
      %p165 = scmp.eq.s32.totalorder %s22, 1
      %p166 = scmp.ne.s32.totalorder %s161, %s163
      %p167 = scmp.eq.s32.totalorder %s22, 0
      %p168 = por %p166, %p167
      %p169 = scmp.ne.s32.totalorder %s161, %s163
      %p170 = scmp.eq.s32.totalorder %s27, 1
      %p171 = por %p169, %p170
      %p172 = scmp.ne.s32.totalorder %s163, %s164
      %p173 = scmp.eq.s32.totalorder %s27, 0
      %p174 = por %p172, %p173
      %p175 = scmp.ne.s32.totalorder %s163, %s164
      %p176 = scmp.eq.s32.totalorder %s28, 1
      %p177 = por %p175, %p176
      %p179 = scmp.ne.s32.totalorder %s164, %s178
      %p180 = scmp.eq.s32.totalorder %s28, 0
      %p181 = por %p179, %p180
      %s183 = sadd.s32 %s182, 1
      %p186 = scmp.eq.s32.totalorder %s22, 1
      %p187 = scmp.ne.s32.totalorder %s182, %s184
      %p188 = scmp.eq.s32.totalorder %s22, 0
      %p189 = por %p187, %p188
      %p190 = scmp.ne.s32.totalorder %s182, %s184
      %p191 = scmp.eq.s32.totalorder %s27, 1
      %p192 = por %p190, %p191
      %p193 = scmp.ne.s32.totalorder %s184, %s185
      %p194 = scmp.eq.s32.totalorder %s27, 0
      %p195 = por %p193, %p194
      %p196 = scmp.ne.s32.totalorder %s184, %s185
      %p197 = scmp.eq.s32.totalorder %s28, 1
      %p198 = por %p196, %p197
      %p200 = scmp.ne.s32.totalorder %s185, %s199
      %p201 = scmp.eq.s32.totalorder %s28, 0
      %p202 = por %p200, %p201
      %s204 = sadd.s32 %s203, 1
      %p207 = scmp.eq.s32.totalorder %s22, 1
      %p208 = scmp.ne.s32.totalorder %s203, %s205
      %p209 = scmp.eq.s32.totalorder %s22, 0
      %p210 = por %p208, %p209
      %p211 = scmp.ne.s32.totalorder %s203, %s205
      %p212 = scmp.eq.s32.totalorder %s27, 1
      %p213 = por %p211, %p212
      %p214 = scmp.ne.s32.totalorder %s205, %s206
      %p215 = scmp.eq.s32.totalorder %s27, 0
      %p216 = por %p214, %p215
      %p217 = scmp.ne.s32.totalorder %s205, %s206
      %p218 = scmp.eq.s32.totalorder %s28, 1
      %p219 = por %p217, %p218
      %p221 = scmp.ne.s32.totalorder %s206, %s220
      %p222 = scmp.eq.s32.totalorder %s28, 0
      %p223 = por %p221, %p222
      %s225 = sadd.s32 %s224, 1
      %p228 = scmp.eq.s32.totalorder %s22, 1
      %p229 = scmp.ne.s32.totalorder %s224, %s226
      %p230 = scmp.eq.s32.totalorder %s22, 0
      %p231 = por %p229, %p230
      %p232 = scmp.ne.s32.totalorder %s224, %s226
      %p233 = scmp.eq.s32.totalorder %s27, 1
      %p234 = por %p232, %p233
      %p235 = scmp.ne.s32.totalorder %s226, %s227
      %p236 = scmp.eq.s32.totalorder %s27, 0
      %p237 = por %p235, %p236
      %p238 = scmp.ne.s32.totalorder %s226, %s227
      %p239 = scmp.eq.s32.totalorder %s28, 1
      %p240 = por %p238, %p239
      %p242 = scmp.ne.s32.totalorder %s227, %s241
      %p243 = scmp.eq.s32.totalorder %s28, 0
      %p244 = por %p242, %p243
      %s245 = ssub.s32 %s22, %s29
      %p246 = scmp.eq.s32.totalorder %s245, 0
      %s248 = sadd.s32 %s247, 1
      %s249 = scalar_select %p246, %s247, %s248
      %p252 = pneg %p246
      %p253 = scmp.eq.s32.totalorder %s22, 1
      %p254 = por %p252, %p253
      %p255 = scmp.ne.s32.totalorder %s247, %s250
      %p256 = scmp.eq.s32.totalorder %s22, 0
      %p257 = por %p255, %p256
      %p258 = scmp.ne.s32.totalorder %s247, %s250
      %p259 = scmp.eq.s32.totalorder %s27, 1
      %p260 = por %p258, %p259
      %p261 = scmp.ne.s32.totalorder %s250, %s251
      %p262 = scmp.eq.s32.totalorder %s27, 0
      %p263 = por %p261, %p262
      %p264 = scmp.ne.s32.totalorder %s250, %s251
      %p265 = scmp.eq.s32.totalorder %s28, 1
      %p266 = por %p264, %p265
      %p268 = scmp.ne.s32.totalorder %s251, %s267
      %p269 = scmp.eq.s32.totalorder %s28, 0
      %p270 = por %p268, %p269
      %p271 = scmp.le.s32.totalorder 1, %s22
      %p272 = scmp.lt.s32.totalorder %s22, 3
      %p273 = pnand %p271, %p272
      %p274 = pneg %p273
      // Predicated region
      $region9: #{tpu_custom_call.1} parent=5 // pred_check
        _
      $region10: #{tpu_custom_call.1} parent=5 // pred_check_branch
        %276 = sbr.rel (%p273) target = $region12
      $region11: #{tpu_custom_call.1} parent=5 // pred_region
        %s277 = ssub.s32 %s22, 1
        // Predicated region
        $region13: #{tpu_custom_call.1} parent=11 // pred_check
          %p278 = pneg %p69
        $region14: #{tpu_custom_call.1} parent=11 // pred_check_branch
          %280 = sbr.rel (%p278) target = $region16
        $region15: #{tpu_custom_call.1} parent=11 // pred_region
          _
        $region16: #{tpu_custom_call.1} parent=11 // pred_fallthru
          _
        // Predicated region
        $region17: #{tpu_custom_call.1} parent=11 // pred_check
          %p281 = pneg %p90
        $region18: #{tpu_custom_call.1} parent=11 // pred_check_branch
          %283 = sbr.rel (%p281) target = $region20
        $region19: #{tpu_custom_call.1} parent=11 // pred_region
          _
        $region20: #{tpu_custom_call.1} parent=11 // pred_fallthru
          _
        // Predicated region
        $region21: #{tpu_custom_call.1} parent=11 // pred_check
          %p284 = pneg %p111
        $region22: #{tpu_custom_call.1} parent=11 // pred_check_branch
          %286 = sbr.rel (%p284) target = $region24
        $region23: #{tpu_custom_call.1} parent=11 // pred_region
          _
        $region24: #{tpu_custom_call.1} parent=11 // pred_fallthru
          _
        // Predicated region
        $region25: #{tpu_custom_call.1} parent=11 // pred_check
          %p287 = pneg %p132
        $region26: #{tpu_custom_call.1} parent=11 // pred_check_branch
          %289 = sbr.rel (%p287) target = $region28
        $region27: #{tpu_custom_call.1} parent=11 // pred_region
          _
        $region28: #{tpu_custom_call.1} parent=11 // pred_fallthru
          _
        // Predicated region
        $region29: #{tpu_custom_call.1} parent=11 // pred_check
          %p290 = pneg %p153
        $region30: #{tpu_custom_call.1} parent=11 // pred_check_branch
          %292 = sbr.rel (%p290) target = $region32
        $region31: #{tpu_custom_call.1} parent=11 // pred_region
          _
        $region32: #{tpu_custom_call.1} parent=11 // pred_fallthru
          _
        // Predicated region
        $region33: #{tpu_custom_call.1} parent=11 // pred_check
          %p293 = pneg %p174
        $region34: #{tpu_custom_call.1} parent=11 // pred_check_branch
          %295 = sbr.rel (%p293) target = $region36
        $region35: #{tpu_custom_call.1} parent=11 // pred_region
          _
        $region36: #{tpu_custom_call.1} parent=11 // pred_fallthru
          _
        // Predicated region
        $region37: #{tpu_custom_call.1} parent=11 // pred_check
          %p296 = pneg %p195
        $region38: #{tpu_custom_call.1} parent=11 // pred_check_branch
          %298 = sbr.rel (%p296) target = $region40
        $region39: #{tpu_custom_call.1} parent=11 // pred_region
          _
        $region40: #{tpu_custom_call.1} parent=11 // pred_fallthru
          _
        // Predicated region
        $region41: #{tpu_custom_call.1} parent=11 // pred_check
          %p299 = pneg %p216
        $region42: #{tpu_custom_call.1} parent=11 // pred_check_branch
          %301 = sbr.rel (%p299) target = $region44
        $region43: #{tpu_custom_call.1} parent=11 // pred_region
          _
        $region44: #{tpu_custom_call.1} parent=11 // pred_fallthru
          _
        // Predicated region
        $region45: #{tpu_custom_call.1} parent=11 // pred_check
          %p302 = pneg %p237
        $region46: #{tpu_custom_call.1} parent=11 // pred_check_branch
          %304 = sbr.rel (%p302) target = $region48
        $region47: #{tpu_custom_call.1} parent=11 // pred_region
          _
        $region48: #{tpu_custom_call.1} parent=11 // pred_fallthru
          _
      $region12: #{tpu_custom_call.1} parent=5 // pred_fallthru
        _
      %p305 = scmp.lt.s32.totalorder %s22, 2
      // Predicated region
      $region49: #{tpu_custom_call.1} parent=5 // pred_check
        %p306 = pneg %p305
      $region50: #{tpu_custom_call.1} parent=5 // pred_check_branch
        %308 = sbr.rel (%p306) target = $region52
      $region51: #{tpu_custom_call.1} parent=5 // pred_region
        // Predicated region
        $region53: #{tpu_custom_call.1} parent=51 // pred_check
          %p309 = pneg %p42
        $region54: #{tpu_custom_call.1} parent=51 // pred_check_branch
          %311 = sbr.rel (%p309) target = $region56
        $region55: #{tpu_custom_call.1} parent=51 // pred_region
          %s312 = sand.u32 %s32, 1
          %s313 = scalar_lea.sflag [#allocation3], %s312
          %s314 = sand.u32 %s32, 1
          %s315 = smul.addr %s314, 128
          %s316 = scalar_lea.vmem [#allocation2], %s315
          %s317 = smul.u32 16, %s22
          %s319 = ssub.s32 2048, 2048
          %320 = vsyncadd %s313, %s319
          %s321 = smul.addr %s317, 128
          %s322 = scalar_lea.hbm %s0, %s321
          %s324 = sshll.u32 %s316, 4
          %s325 = int_to_ptr.vmem [resolvable:$true] %s324
          %327 = dma.hbm_to_vmem [thread:$0]  %s322, 2048, %s325, %s313
        $region56: #{tpu_custom_call.1} parent=51 // pred_fallthru
          _
      $region52: #{tpu_custom_call.1} parent=5 // pred_fallthru
        _
      %p328 = scmp.le.s32.totalorder 1, %s22
      %p329 = scmp.lt.s32.totalorder %s22, 3
      %p330 = pnand %p328, %p329
      %p331 = pneg %p330
      // Predicated region
      $region57: #{tpu_custom_call.1} parent=5 // pred_check
        _
      $region58: #{tpu_custom_call.1} parent=5 // pred_check_branch
        %333 = sbr.rel (%p330) target = $region60
      $region59: #{tpu_custom_call.1} parent=5 // pred_region
        %s334 = ssub.s32 %s22, 1
        %s335 = sand.u32 %s35, 1
        %s336 = scalar_lea.sflag [#allocation3], %s335
        %s337 = sand.u32 %s35, 1
        %s338 = smul.addr %s337, 128
        %s339 = scalar_lea.vmem [#allocation2], %s338
        // Predicated region
        $region61: #{tpu_custom_call.1} parent=59 // pred_check
          %p340 = pneg %p48
        $region62: #{tpu_custom_call.1} parent=59 // pred_check_branch
          %342 = sbr.rel (%p340) target = $region64
        $region63: #{tpu_custom_call.1} parent=59 // pred_region
          %343 = dma.done %s336, 2048
        $region64: #{tpu_custom_call.1} parent=59 // pred_fallthru
          _
        %s344 = sand.u32 %s35, 1
        %s345 = scalar_lea.sflag [#allocation3], %s344
        %s346 = sand.u32 %s35, 1
        %s347 = smul.addr %s346, 128
        %s348 = scalar_lea.vmem [#allocation2], %s347
        %p349 = pneg %p48
        %p350 = pneg %p45
        %p351 = pneg %p69
        %p352 = pneg %p66
        %p353 = pneg %p90
        %p354 = pneg %p87
        %p355 = pneg %p111
        %p356 = pneg %p108
        %p357 = pneg %p132
        %p358 = pneg %p129
        %p359 = pneg %p153
        %p360 = pneg %p150
        %p361 = pneg %p174
        %p362 = pneg %p171
        %p363 = pneg %p195
        %p364 = pneg %p192
        %p365 = pneg %p216
        %p366 = pneg %p213
        %p367 = pneg %p237
        %p368 = pneg %p234
        %p369 = pneg %p263
        %p370 = pneg %p260
        %s371 = sand.u32 %s250, 1
        %s372 = scalar_lea.sflag [#allocation4], %s371
        %s373 = sand.u32 %s250, 1
        %s374 = smul.addr %s373, 16
        %s375 = scalar_lea.vmem [#allocation5], %s374
        %s376 = smul.u32 16, %s27
        %s377 = smul.u32 16, %s27
        %v378 = vld [vmem:[%s339] sm:$0xff]
        %v379 = vld [vmem:[%s339 + $0x8] sm:$0xff]
        %v380 = vld [vmem:[%s339 + $0x10] sm:$0xff]
        %v381 = vld [vmem:[%s339 + $0x18] sm:$0xff]
        %v382 = vld [vmem:[%s339 + $0x20] sm:$0xff]
        %v383 = vld [vmem:[%s339 + $0x28] sm:$0xff]
        %v384 = vld [vmem:[%s339 + $0x30] sm:$0xff]
        %v385 = vld [vmem:[%s339 + $0x38] sm:$0xff]
        %v386 = vld [vmem:[%s339 + $0x40] sm:$0xff]
        %v387 = vld [vmem:[%s339 + $0x48] sm:$0xff]
        %v388 = vld [vmem:[%s339 + $0x50] sm:$0xff]
        %v389 = vld [vmem:[%s339 + $0x58] sm:$0xff]
        %v390 = vld [vmem:[%s339 + $0x60] sm:$0xff]
        %v391 = vld [vmem:[%s339 + $0x68] sm:$0xff]
        %v392 = vld [vmem:[%s339 + $0x70] sm:$0xff]
        %v393 = vld [vmem:[%s339 + $0x78] sm:$0xff]
        %v394 = vld [vmem:[%s1] sm:$0xff]
        %v395 = vld [vmem:[%s1 + $0x8] sm:$0xff]
        %v396 = vld [vmem:[%s1 + $0x10] sm:$0xff]
        %v397 = vld [vmem:[%s1 + $0x18] sm:$0xff]
        %v398 = vld [vmem:[%s2] sm:$0xff]
        %v399 = vld [vmem:[%s2 + $0x8] sm:$0xff]
        %v400 = vld [vmem:[%s2 + $0x10] sm:$0xff]
        %v401 = vld [vmem:[%s2 + $0x18] sm:$0xff]
        %403 = vset.pattern.permute.xlu0 0
        %404 = vperm.xlu0 %403, %v398
        %v405 = vpop.permute.xlu0 %404
        %408 = vset.pattern.permute.xlu0 0
        %409 = vperm.xlu0 %408, %v399
        %v410 = vpop.permute.xlu0 %409
        %413 = vset.pattern.permute.xlu0 0
        %414 = vperm.xlu0 %413, %v400
        %v415 = vpop.permute.xlu0 %414
        %418 = vset.pattern.permute.xlu0 0
        %419 = vperm.xlu0 %418, %v401
        %v420 = vpop.permute.xlu0 %419
        %vm422 = vcmask 64512
        %v424 = vsel %vm422, %v394, 0
        %v427 = vsel %vm422, %v395, 0
        %v430 = vsel %vm422, %v396, 0
        %v433 = vsel %vm422, %v397, 0
        %435 = vmatprep.subr.mxu0 %v379
        %436 = vmatpush1.msra.mxu0 %v378
        %437 = vmatprep.subr.mxu0 0.0
        %438 = vmatpush1.msra.mxu0 0.0
        %439 = vmatprep.subr.mxu0 0.0
        %440 = vmatpush1.msra.mxu0 0.0
        %441 = vmatprep.subr.mxu0 0.0
        %442 = vmatpush1.msra.mxu0 0.0
        %443 = vmatprep.subr.mxu0 0.0
        %444 = vmatpush1.msra.mxu0 0.0
        %445 = vmatprep.subr.mxu0 0.0
        %446 = vmatpush1.msra.mxu0 0.0
        %447 = vmatprep.subr.mxu0 0.0
        %448 = vmatpush1.msra.mxu0 0.0
        %449 = vmatprep.subr.mxu0 0.0
        %450 = vmatpush1.msra.mxu0 0.0
        %451 = vmatprep.subr.mxu0 0.0
        %452 = vmatpush1.msra.mxu0 0.0
        %453 = vmatprep.subr.mxu0 0.0
        %454 = vmatpush1.msra.mxu0 0.0
        %455 = vmatprep.subr.mxu0 0.0
        %456 = vmatpush1.msra.mxu0 0.0
        %457 = vmatprep.subr.mxu0 0.0
        %458 = vmatpush1.msra.mxu0 0.0
        %459 = vmatprep.subr.mxu0 0.0
        %460 = vmatpush1.msra.mxu0 0.0
        %461 = vmatprep.subr.mxu0 0.0
        %462 = vmatpush1.msra.mxu0 0.0
        %463 = vmatprep.subr.mxu0 0.0
        %464 = vmatpush1.msra.mxu0 0.0
        %465 = vmatprep.subr.mxu0 0.0
        %466 = vmatpush1.msra.mxu0 0.0
        %467 = vmatprep.subr.mxu0 0.0
        %468 = vmatpush1.msra.mxu0 0.0
        %469 = vmatprep.subr.mxu0 0.0
        %470 = vmatpush1.msra.mxu0 0.0
        %471 = vmatprep.subr.mxu0 0.0
        %472 = vmatpush1.msra.mxu0 0.0
        %473 = vmatprep.subr.mxu0 0.0
        %474 = vmatpush1.msra.mxu0 0.0
        %475 = vmatprep.subr.mxu0 0.0
        %476 = vmatpush1.msra.mxu0 0.0
        %477 = vmatprep.subr.mxu0 0.0
        %478 = vmatpush1.msra.mxu0 0.0
        %479 = vmatprep.subr.mxu0 0.0
        %480 = vmatpush1.msra.mxu0 0.0
        %481 = vmatprep.subr.mxu0 0.0
        %482 = vmatpush1.msra.mxu0 0.0
        %483 = vmatprep.subr.mxu0 0.0
        %484 = vmatpush1.msra.mxu0 0.0
        %485 = vmatprep.subr.mxu0 0.0
        %486 = vmatpush1.msra.mxu0 0.0
        %487 = vmatprep.subr.mxu0 0.0
        %488 = vmatpush1.msra.mxu0 0.0
        %489 = vmatprep.subr.mxu0 0.0
        %490 = vmatpush1.msra.mxu0 0.0
        %491 = vmatprep.subr.mxu0 0.0
        %492 = vmatpush1.msra.mxu0 0.0
        %493 = vmatprep.subr.mxu0 0.0
        %494 = vmatpush1.msra.mxu0 0.0
        %495 = vmatprep.subr.mxu0 0.0
        %496 = vmatpush1.msra.mxu0 0.0
        %497 = vmatprep.subr.mxu0 0.0
        %498 = vmatpush1.msra.mxu0 0.0
        %499 = vmatprep.mubr.f32.mxu0 0.0
        %500 = vmatmul.mubr.f32.gmra.mrb[0].mxu0 %v424
        %v501 = vpop.f32.mrb[0].mxu0
        %v502 = vadd.f32 %v405, %v501
        %v503 = vpop.f32.mrb[0].mxu0
        %v504 = vadd.f32 %v405, %v503
        %505 = vmatprep.mubr.f32.mxu0 0.0
        %506 = vmatmul.mubr.f32.gmra.mrb[0].mxu0 %v427
        %v507 = vpop.f32.mrb[0].mxu0
        %v508 = vadd.f32 %v410, %v507
        %v509 = vpop.f32.mrb[0].mxu0
        %v510 = vadd.f32 %v410, %v509
        %511 = vmatprep.mubr.f32.mxu0 0.0
        %512 = vmatmul.mubr.f32.gmra.mrb[0].mxu0 %v430
        %v513 = vpop.f32.mrb[0].mxu0
        %v514 = vadd.f32 %v415, %v513
        %v515 = vpop.f32.mrb[0].mxu0
        %v516 = vadd.f32 %v415, %v515
        %517 = vmatprep.mubr.f32.mxu0 0.0
        %518 = vmatmul.mubr.f32.gmra.mrb[0].mxu0 %v433
        %v519 = vpop.f32.mrb[0].mxu0
        %v520 = vadd.f32 %v420, %v519
        %v521 = vpop.f32.mrb[0].mxu0
        %v522 = vadd.f32 %v420, %v521
        %523 = vdwg.mxu0
        %524 = vmatprep.subr.mxu0 %v381
        %525 = vmatpush1.msra.mxu0 %v380
        %526 = vmatprep.subr.mxu0 0.0
        %527 = vmatpush1.msra.mxu0 0.0
        %528 = vmatprep.subr.mxu0 0.0
        %529 = vmatpush1.msra.mxu0 0.0
        %530 = vmatprep.subr.mxu0 0.0
        %531 = vmatpush1.msra.mxu0 0.0
        %532 = vmatprep.subr.mxu0 0.0
        %533 = vmatpush1.msra.mxu0 0.0
        %534 = vmatprep.subr.mxu0 0.0
        %535 = vmatpush1.msra.mxu0 0.0
        %536 = vmatprep.subr.mxu0 0.0
        %537 = vmatpush1.msra.mxu0 0.0
        %538 = vmatprep.subr.mxu0 0.0
        %539 = vmatpush1.msra.mxu0 0.0
        %540 = vmatprep.subr.mxu0 0.0
        %541 = vmatpush1.msra.mxu0 0.0
        %542 = vmatprep.subr.mxu0 0.0
        %543 = vmatpush1.msra.mxu0 0.0
        %544 = vmatprep.subr.mxu0 0.0
        %545 = vmatpush1.msra.mxu0 0.0
        %546 = vmatprep.subr.mxu0 0.0
        %547 = vmatpush1.msra.mxu0 0.0
        %548 = vmatprep.subr.mxu0 0.0
        %549 = vmatpush1.msra.mxu0 0.0
        %550 = vmatprep.subr.mxu0 0.0
        %551 = vmatpush1.msra.mxu0 0.0
        %552 = vmatprep.subr.mxu0 0.0
        %553 = vmatpush1.msra.mxu0 0.0
        %554 = vmatprep.subr.mxu0 0.0
        %555 = vmatpush1.msra.mxu0 0.0
        %556 = vmatprep.subr.mxu0 0.0
        %557 = vmatpush1.msra.mxu0 0.0
        %558 = vmatprep.subr.mxu0 0.0
        %559 = vmatpush1.msra.mxu0 0.0
        %560 = vmatprep.subr.mxu0 0.0
        %561 = vmatpush1.msra.mxu0 0.0
        %562 = vmatprep.subr.mxu0 0.0
        %563 = vmatpush1.msra.mxu0 0.0
        %564 = vmatprep.subr.mxu0 0.0
        %565 = vmatpush1.msra.mxu0 0.0
        %566 = vmatprep.subr.mxu0 0.0
        %567 = vmatpush1.msra.mxu0 0.0
        %568 = vmatprep.subr.mxu0 0.0
        %569 = vmatpush1.msra.mxu0 0.0
        %570 = vmatprep.subr.mxu0 0.0
        %571 = vmatpush1.msra.mxu0 0.0
        %572 = vmatprep.subr.mxu0 0.0
        %573 = vmatpush1.msra.mxu0 0.0
        %574 = vmatprep.subr.mxu0 0.0
        %575 = vmatpush1.msra.mxu0 0.0
        %576 = vmatprep.subr.mxu0 0.0
        %577 = vmatpush1.msra.mxu0 0.0
        %578 = vmatprep.subr.mxu0 0.0
        %579 = vmatpush1.msra.mxu0 0.0
        %580 = vmatprep.subr.mxu0 0.0
        %581 = vmatpush1.msra.mxu0 0.0
        %582 = vmatprep.subr.mxu0 0.0
        %583 = vmatpush1.msra.mxu0 0.0
        %584 = vmatprep.subr.mxu0 0.0
        %585 = vmatpush1.msra.mxu0 0.0
        %586 = vmatprep.subr.mxu0 0.0
        %587 = vmatpush1.msra.mxu0 0.0
        %588 = vmatprep.mubr.f32.mxu0 0.0
        %589 = vmatmul.mubr.f32.gmra.mrb[0].mxu0 %v424
        %v590 = vpop.f32.mrb[0].mxu0
        %v591 = vadd.f32 %v405, %v590
        %v592 = vpop.f32.mrb[0].mxu0
        %v593 = vadd.f32 %v405, %v592
        %594 = vmatprep.mubr.f32.mxu0 0.0
        %595 = vmatmul.mubr.f32.gmra.mrb[0].mxu0 %v427
        %v596 = vpop.f32.mrb[0].mxu0
        %v597 = vadd.f32 %v410, %v596
        %v598 = vpop.f32.mrb[0].mxu0
        %v599 = vadd.f32 %v410, %v598
        %600 = vmatprep.mubr.f32.mxu0 0.0
        %601 = vmatmul.mubr.f32.gmra.mrb[0].mxu0 %v430
        %v602 = vpop.f32.mrb[0].mxu0
        %v603 = vadd.f32 %v415, %v602
        %v604 = vpop.f32.mrb[0].mxu0
        %v605 = vadd.f32 %v415, %v604
        %606 = vmatprep.mubr.f32.mxu0 0.0
        %607 = vmatmul.mubr.f32.gmra.mrb[0].mxu0 %v433
        %v608 = vpop.f32.mrb[0].mxu0
        %v609 = vadd.f32 %v420, %v608
        %v610 = vpop.f32.mrb[0].mxu0
        %v611 = vadd.f32 %v420, %v610
        %612 = vdwg.mxu0
        %613 = vmatprep.subr.mxu0 %v383
        %614 = vmatpush1.msra.mxu0 %v382
        %615 = vmatprep.subr.mxu0 0.0
        %616 = vmatpush1.msra.mxu0 0.0
        %617 = vmatprep.subr.mxu0 0.0
        %618 = vmatpush1.msra.mxu0 0.0
        %619 = vmatprep.subr.mxu0 0.0
        %620 = vmatpush1.msra.mxu0 0.0
        %621 = vmatprep.subr.mxu0 0.0
        %622 = vmatpush1.msra.mxu0 0.0
        %623 = vmatprep.subr.mxu0 0.0
        %624 = vmatpush1.msra.mxu0 0.0
        %625 = vmatprep.subr.mxu0 0.0
        %626 = vmatpush1.msra.mxu0 0.0
        %627 = vmatprep.subr.mxu0 0.0
        %628 = vmatpush1.msra.mxu0 0.0
        %629 = vmatprep.subr.mxu0 0.0
        %630 = vmatpush1.msra.mxu0 0.0
        %631 = vmatprep.subr.mxu0 0.0
        %632 = vmatpush1.msra.mxu0 0.0
        %633 = vmatprep.subr.mxu0 0.0
        %634 = vmatpush1.msra.mxu0 0.0
        %635 = vmatprep.subr.mxu0 0.0
        %636 = vmatpush1.msra.mxu0 0.0
        %637 = vmatprep.subr.mxu0 0.0
        %638 = vmatpush1.msra.mxu0 0.0
        %639 = vmatprep.subr.mxu0 0.0
        %640 = vmatpush1.msra.mxu0 0.0
        %641 = vmatprep.subr.mxu0 0.0
        %642 = vmatpush1.msra.mxu0 0.0
        %643 = vmatprep.subr.mxu0 0.0
        %644 = vmatpush1.msra.mxu0 0.0
        %645 = vmatprep.subr.mxu0 0.0
        %646 = vmatpush1.msra.mxu0 0.0
        %647 = vmatprep.subr.mxu0 0.0
        %648 = vmatpush1.msra.mxu0 0.0
        %649 = vmatprep.subr.mxu0 0.0
        %650 = vmatpush1.msra.mxu0 0.0
        %651 = vmatprep.subr.mxu0 0.0
        %652 = vmatpush1.msra.mxu0 0.0
        %653 = vmatprep.subr.mxu0 0.0
        %654 = vmatpush1.msra.mxu0 0.0
        %655 = vmatprep.subr.mxu0 0.0
        %656 = vmatpush1.msra.mxu0 0.0
        %657 = vmatprep.subr.mxu0 0.0
        %658 = vmatpush1.msra.mxu0 0.0
        %659 = vmatprep.subr.mxu0 0.0
        %660 = vmatpush1.msra.mxu0 0.0
        %661 = vmatprep.subr.mxu0 0.0
        %662 = vmatpush1.msra.mxu0 0.0
        %663 = vmatprep.subr.mxu0 0.0
        %664 = vmatpush1.msra.mxu0 0.0
        %665 = vmatprep.subr.mxu0 0.0
        %666 = vmatpush1.msra.mxu0 0.0
        %667 = vmatprep.subr.mxu0 0.0
        %668 = vmatpush1.msra.mxu0 0.0
        %669 = vmatprep.subr.mxu0 0.0
        %670 = vmatpush1.msra.mxu0 0.0
        %671 = vmatprep.subr.mxu0 0.0
        %672 = vmatpush1.msra.mxu0 0.0
        %673 = vmatprep.subr.mxu0 0.0
        %674 = vmatpush1.msra.mxu0 0.0
        %675 = vmatprep.subr.mxu0 0.0
        %676 = vmatpush1.msra.mxu0 0.0
        %677 = vmatprep.mubr.f32.mxu0 0.0
        %678 = vmatmul.mubr.f32.gmra.mrb[0].mxu0 %v424
        %v679 = vpop.f32.mrb[0].mxu0
        %v680 = vadd.f32 %v405, %v679
        %v681 = vpop.f32.mrb[0].mxu0
        %v682 = vadd.f32 %v405, %v681
        %683 = vmatprep.mubr.f32.mxu0 0.0
        %684 = vmatmul.mubr.f32.gmra.mrb[0].mxu0 %v427
        %v685 = vpop.f32.mrb[0].mxu0
        %v686 = vadd.f32 %v410, %v685
        %v687 = vpop.f32.mrb[0].mxu0
        %v688 = vadd.f32 %v410, %v687
        %689 = vmatprep.mubr.f32.mxu0 0.0
        %690 = vmatmul.mubr.f32.gmra.mrb[0].mxu0 %v430
        %v691 = vpop.f32.mrb[0].mxu0
        %v692 = vadd.f32 %v415, %v691
        %v693 = vpop.f32.mrb[0].mxu0
        %v694 = vadd.f32 %v415, %v693
        %695 = vmatprep.mubr.f32.mxu0 0.0
        %696 = vmatmul.mubr.f32.gmra.mrb[0].mxu0 %v433
        %v697 = vpop.f32.mrb[0].mxu0
        %v698 = vadd.f32 %v420, %v697
        %v699 = vpop.f32.mrb[0].mxu0
        %v700 = vadd.f32 %v420, %v699
        %701 = vdwg.mxu0
        %702 = vmatprep.subr.mxu0 %v385
        %703 = vmatpush1.msra.mxu0 %v384
        %704 = vmatprep.subr.mxu0 0.0
        %705 = vmatpush1.msra.mxu0 0.0
        %706 = vmatprep.subr.mxu0 0.0
        %707 = vmatpush1.msra.mxu0 0.0
        %708 = vmatprep.subr.mxu0 0.0
        %709 = vmatpush1.msra.mxu0 0.0
        %710 = vmatprep.subr.mxu0 0.0
        %711 = vmatpush1.msra.mxu0 0.0
        %712 = vmatprep.subr.mxu0 0.0
        %713 = vmatpush1.msra.mxu0 0.0
        %714 = vmatprep.subr.mxu0 0.0
        %715 = vmatpush1.msra.mxu0 0.0
        %716 = vmatprep.subr.mxu0 0.0
        %717 = vmatpush1.msra.mxu0 0.0
        %718 = vmatprep.subr.mxu0 0.0
        %719 = vmatpush1.msra.mxu0 0.0
        %720 = vmatprep.subr.mxu0 0.0
        %721 = vmatpush1.msra.mxu0 0.0
        %722 = vmatprep.subr.mxu0 0.0
        %723 = vmatpush1.msra.mxu0 0.0
        %724 = vmatprep.subr.mxu0 0.0
        %725 = vmatpush1.msra.mxu0 0.0
        %726 = vmatprep.subr.mxu0 0.0
        %727 = vmatpush1.msra.mxu0 0.0
        %728 = vmatprep.subr.mxu0 0.0
        %729 = vmatpush1.msra.mxu0 0.0
        %730 = vmatprep.subr.mxu0 0.0
        %731 = vmatpush1.msra.mxu0 0.0
        %732 = vmatprep.subr.mxu0 0.0
        %733 = vmatpush1.msra.mxu0 0.0
        %734 = vmatprep.subr.mxu0 0.0
        %735 = vmatpush1.msra.mxu0 0.0
        %736 = vmatprep.subr.mxu0 0.0
        %737 = vmatpush1.msra.mxu0 0.0
        %738 = vmatprep.subr.mxu0 0.0
        %739 = vmatpush1.msra.mxu0 0.0
        %740 = vmatprep.subr.mxu0 0.0
        %741 = vmatpush1.msra.mxu0 0.0
        %742 = vmatprep.subr.mxu0 0.0
        %743 = vmatpush1.msra.mxu0 0.0
        %744 = vmatprep.subr.mxu0 0.0
        %745 = vmatpush1.msra.mxu0 0.0
        %746 = vmatprep.subr.mxu0 0.0
        %747 = vmatpush1.msra.mxu0 0.0
        %748 = vmatprep.subr.mxu0 0.0
        %749 = vmatpush1.msra.mxu0 0.0
        %750 = vmatprep.subr.mxu0 0.0
        %751 = vmatpush1.msra.mxu0 0.0
        %752 = vmatprep.subr.mxu0 0.0
        %753 = vmatpush1.msra.mxu0 0.0
        %754 = vmatprep.subr.mxu0 0.0
        %755 = vmatpush1.msra.mxu0 0.0
        %756 = vmatprep.subr.mxu0 0.0
        %757 = vmatpush1.msra.mxu0 0.0
        %758 = vmatprep.subr.mxu0 0.0
        %759 = vmatpush1.msra.mxu0 0.0
        %760 = vmatprep.subr.mxu0 0.0
        %761 = vmatpush1.msra.mxu0 0.0
        %762 = vmatprep.subr.mxu0 0.0
        %763 = vmatpush1.msra.mxu0 0.0
        %764 = vmatprep.subr.mxu0 0.0
        %765 = vmatpush1.msra.mxu0 0.0
        %766 = vmatprep.mubr.f32.mxu0 0.0
        %767 = vmatmul.mubr.f32.gmra.mrb[0].mxu0 %v424
        %v768 = vpop.f32.mrb[0].mxu0
        %v769 = vadd.f32 %v405, %v768
        %v770 = vpop.f32.mrb[0].mxu0
        %v771 = vadd.f32 %v405, %v770
        %772 = vmatprep.mubr.f32.mxu0 0.0
        %773 = vmatmul.mubr.f32.gmra.mrb[0].mxu0 %v427
        %v774 = vpop.f32.mrb[0].mxu0
        %v775 = vadd.f32 %v410, %v774
        %v776 = vpop.f32.mrb[0].mxu0
        %v777 = vadd.f32 %v410, %v776
        %778 = vmatprep.mubr.f32.mxu0 0.0
        %779 = vmatmul.mubr.f32.gmra.mrb[0].mxu0 %v430
        %v780 = vpop.f32.mrb[0].mxu0
        %v781 = vadd.f32 %v415, %v780
        %v782 = vpop.f32.mrb[0].mxu0
        %v783 = vadd.f32 %v415, %v782
        %784 = vmatprep.mubr.f32.mxu0 0.0
        %785 = vmatmul.mubr.f32.gmra.mrb[0].mxu0 %v433
        %v786 = vpop.f32.mrb[0].mxu0
        %v787 = vadd.f32 %v420, %v786
        %v788 = vpop.f32.mrb[0].mxu0
        %v789 = vadd.f32 %v420, %v788
        %790 = vdwg.mxu0
        %791 = vmatprep.subr.mxu0 %v387
        %792 = vmatpush1.msra.mxu0 %v386
        %793 = vmatprep.subr.mxu0 0.0
        %794 = vmatpush1.msra.mxu0 0.0
        %795 = vmatprep.subr.mxu0 0.0
        %796 = vmatpush1.msra.mxu0 0.0
        %797 = vmatprep.subr.mxu0 0.0
        %798 = vmatpush1.msra.mxu0 0.0
        %799 = vmatprep.subr.mxu0 0.0
        %800 = vmatpush1.msra.mxu0 0.0
        %801 = vmatprep.subr.mxu0 0.0
        %802 = vmatpush1.msra.mxu0 0.0
        %803 = vmatprep.subr.mxu0 0.0
        %804 = vmatpush1.msra.mxu0 0.0
        %805 = vmatprep.subr.mxu0 0.0
        %806 = vmatpush1.msra.mxu0 0.0
        %807 = vmatprep.subr.mxu0 0.0
        %808 = vmatpush1.msra.mxu0 0.0
        %809 = vmatprep.subr.mxu0 0.0
        %810 = vmatpush1.msra.mxu0 0.0
        %811 = vmatprep.subr.mxu0 0.0
        %812 = vmatpush1.msra.mxu0 0.0
        %813 = vmatprep.subr.mxu0 0.0
        %814 = vmatpush1.msra.mxu0 0.0
        %815 = vmatprep.subr.mxu0 0.0
        %816 = vmatpush1.msra.mxu0 0.0
        %817 = vmatprep.subr.mxu0 0.0
        %818 = vmatpush1.msra.mxu0 0.0
        %819 = vmatprep.subr.mxu0 0.0
        %820 = vmatpush1.msra.mxu0 0.0
        %821 = vmatprep.subr.mxu0 0.0
        %822 = vmatpush1.msra.mxu0 0.0
        %823 = vmatprep.subr.mxu0 0.0
        %824 = vmatpush1.msra.mxu0 0.0
        %825 = vmatprep.subr.mxu0 0.0
        %826 = vmatpush1.msra.mxu0 0.0
        %827 = vmatprep.subr.mxu0 0.0
        %828 = vmatpush1.msra.mxu0 0.0
        %829 = vmatprep.subr.mxu0 0.0
        %830 = vmatpush1.msra.mxu0 0.0
        %831 = vmatprep.subr.mxu0 0.0
        %832 = vmatpush1.msra.mxu0 0.0
        %833 = vmatprep.subr.mxu0 0.0
        %834 = vmatpush1.msra.mxu0 0.0
        %835 = vmatprep.subr.mxu0 0.0
        %836 = vmatpush1.msra.mxu0 0.0
        %837 = vmatprep.subr.mxu0 0.0
        %838 = vmatpush1.msra.mxu0 0.0
        %839 = vmatprep.subr.mxu0 0.0
        %840 = vmatpush1.msra.mxu0 0.0
        %841 = vmatprep.subr.mxu0 0.0
        %842 = vmatpush1.msra.mxu0 0.0
        %843 = vmatprep.subr.mxu0 0.0
        %844 = vmatpush1.msra.mxu0 0.0
        %845 = vmatprep.subr.mxu0 0.0
        %846 = vmatpush1.msra.mxu0 0.0
        %847 = vmatprep.subr.mxu0 0.0
        %848 = vmatpush1.msra.mxu0 0.0
        %849 = vmatprep.subr.mxu0 0.0
        %850 = vmatpush1.msra.mxu0 0.0
        %851 = vmatprep.subr.mxu0 0.0
        %852 = vmatpush1.msra.mxu0 0.0
        %853 = vmatprep.subr.mxu0 0.0
        %854 = vmatpush1.msra.mxu0 0.0
        %855 = vmatprep.mubr.f32.mxu0 0.0
        %856 = vmatmul.mubr.f32.gmra.mrb[0].mxu0 %v424
        %v857 = vpop.f32.mrb[0].mxu0
        %v858 = vadd.f32 %v405, %v857
        %v859 = vpop.f32.mrb[0].mxu0
        %v860 = vadd.f32 %v405, %v859
        %861 = vmatprep.mubr.f32.mxu0 0.0
        %862 = vmatmul.mubr.f32.gmra.mrb[0].mxu0 %v427
        %v863 = vpop.f32.mrb[0].mxu0
        %v864 = vadd.f32 %v410, %v863
        %v865 = vpop.f32.mrb[0].mxu0
        %v866 = vadd.f32 %v410, %v865
        %867 = vmatprep.mubr.f32.mxu0 0.0
        %868 = vmatmul.mubr.f32.gmra.mrb[0].mxu0 %v430
        %v869 = vpop.f32.mrb[0].mxu0
        %v870 = vadd.f32 %v415, %v869
        %v871 = vpop.f32.mrb[0].mxu0
        %v872 = vadd.f32 %v415, %v871
        %873 = vmatprep.mubr.f32.mxu0 0.0
        %874 = vmatmul.mubr.f32.gmra.mrb[0].mxu0 %v433
        %v875 = vpop.f32.mrb[0].mxu0
        %v876 = vadd.f32 %v420, %v875
        %v877 = vpop.f32.mrb[0].mxu0
        %v878 = vadd.f32 %v420, %v877
        %879 = vdwg.mxu0
        %880 = vmatprep.subr.mxu0 %v389
        %881 = vmatpush1.msra.mxu0 %v388
        %882 = vmatprep.subr.mxu0 0.0
        %883 = vmatpush1.msra.mxu0 0.0
        %884 = vmatprep.subr.mxu0 0.0
        %885 = vmatpush1.msra.mxu0 0.0
        %886 = vmatprep.subr.mxu0 0.0
        %887 = vmatpush1.msra.mxu0 0.0
        %888 = vmatprep.subr.mxu0 0.0
        %889 = vmatpush1.msra.mxu0 0.0
        %890 = vmatprep.subr.mxu0 0.0
        %891 = vmatpush1.msra.mxu0 0.0
        %892 = vmatprep.subr.mxu0 0.0
        %893 = vmatpush1.msra.mxu0 0.0
        %894 = vmatprep.subr.mxu0 0.0
        %895 = vmatpush1.msra.mxu0 0.0
        %896 = vmatprep.subr.mxu0 0.0
        %897 = vmatpush1.msra.mxu0 0.0
        %898 = vmatprep.subr.mxu0 0.0
        %899 = vmatpush1.msra.mxu0 0.0
        %900 = vmatprep.subr.mxu0 0.0
        %901 = vmatpush1.msra.mxu0 0.0
        %902 = vmatprep.subr.mxu0 0.0
        %903 = vmatpush1.msra.mxu0 0.0
        %904 = vmatprep.subr.mxu0 0.0
        %905 = vmatpush1.msra.mxu0 0.0
        %906 = vmatprep.subr.mxu0 0.0
        %907 = vmatpush1.msra.mxu0 0.0
        %908 = vmatprep.subr.mxu0 0.0
        %909 = vmatpush1.msra.mxu0 0.0
        %910 = vmatprep.subr.mxu0 0.0
        %911 = vmatpush1.msra.mxu0 0.0
        %912 = vmatprep.subr.mxu0 0.0
        %913 = vmatpush1.msra.mxu0 0.0
        %914 = vmatprep.subr.mxu0 0.0
        %915 = vmatpush1.msra.mxu0 0.0
        %916 = vmatprep.subr.mxu0 0.0
        %917 = vmatpush1.msra.mxu0 0.0
        %918 = vmatprep.subr.mxu0 0.0
        %919 = vmatpush1.msra.mxu0 0.0
        %920 = vmatprep.subr.mxu0 0.0
        %921 = vmatpush1.msra.mxu0 0.0
        %922 = vmatprep.subr.mxu0 0.0
        %923 = vmatpush1.msra.mxu0 0.0
        %924 = vmatprep.subr.mxu0 0.0
        %925 = vmatpush1.msra.mxu0 0.0
        %926 = vmatprep.subr.mxu0 0.0
        %927 = vmatpush1.msra.mxu0 0.0
        %928 = vmatprep.subr.mxu0 0.0
        %929 = vmatpush1.msra.mxu0 0.0
        %930 = vmatprep.subr.mxu0 0.0
        %931 = vmatpush1.msra.mxu0 0.0
        %932 = vmatprep.subr.mxu0 0.0
        %933 = vmatpush1.msra.mxu0 0.0
        %934 = vmatprep.subr.mxu0 0.0
        %935 = vmatpush1.msra.mxu0 0.0
        %936 = vmatprep.subr.mxu0 0.0
        %937 = vmatpush1.msra.mxu0 0.0
        %938 = vmatprep.subr.mxu0 0.0
        %939 = vmatpush1.msra.mxu0 0.0
        %940 = vmatprep.subr.mxu0 0.0
        %941 = vmatpush1.msra.mxu0 0.0
        %942 = vmatprep.subr.mxu0 0.0
        %943 = vmatpush1.msra.mxu0 0.0
        %944 = vmatprep.mubr.f32.mxu0 0.0
        %945 = vmatmul.mubr.f32.gmra.mrb[0].mxu0 %v424
        %v946 = vpop.f32.mrb[0].mxu0
        %v947 = vadd.f32 %v405, %v946
        %v948 = vpop.f32.mrb[0].mxu0
        %v949 = vadd.f32 %v405, %v948
        %950 = vmatprep.mubr.f32.mxu0 0.0
        %951 = vmatmul.mubr.f32.gmra.mrb[0].mxu0 %v427
        %v952 = vpop.f32.mrb[0].mxu0
        %v953 = vadd.f32 %v410, %v952
        %v954 = vpop.f32.mrb[0].mxu0
        %v955 = vadd.f32 %v410, %v954
        %956 = vmatprep.mubr.f32.mxu0 0.0
        %957 = vmatmul.mubr.f32.gmra.mrb[0].mxu0 %v430
        %v958 = vpop.f32.mrb[0].mxu0
        %v959 = vadd.f32 %v415, %v958
        %v960 = vpop.f32.mrb[0].mxu0
        %v961 = vadd.f32 %v415, %v960
        %962 = vmatprep.mubr.f32.mxu0 0.0
        %963 = vmatmul.mubr.f32.gmra.mrb[0].mxu0 %v433
        %v964 = vpop.f32.mrb[0].mxu0
        %v965 = vadd.f32 %v420, %v964
        %v966 = vpop.f32.mrb[0].mxu0
        %v967 = vadd.f32 %v420, %v966
        %968 = vdwg.mxu0
        %969 = vmatprep.subr.mxu0 %v391
        %970 = vmatpush1.msra.mxu0 %v390
        %971 = vmatprep.subr.mxu0 0.0
        %972 = vmatpush1.msra.mxu0 0.0
        %973 = vmatprep.subr.mxu0 0.0
        %974 = vmatpush1.msra.mxu0 0.0
        %975 = vmatprep.subr.mxu0 0.0
        %976 = vmatpush1.msra.mxu0 0.0
        %977 = vmatprep.subr.mxu0 0.0
        %978 = vmatpush1.msra.mxu0 0.0
        %979 = vmatprep.subr.mxu0 0.0
        %980 = vmatpush1.msra.mxu0 0.0
        %981 = vmatprep.subr.mxu0 0.0
        %982 = vmatpush1.msra.mxu0 0.0
        %983 = vmatprep.subr.mxu0 0.0
        %984 = vmatpush1.msra.mxu0 0.0
        %985 = vmatprep.subr.mxu0 0.0
        %986 = vmatpush1.msra.mxu0 0.0
        %987 = vmatprep.subr.mxu0 0.0
        %988 = vmatpush1.msra.mxu0 0.0
        %989 = vmatprep.subr.mxu0 0.0
        %990 = vmatpush1.msra.mxu0 0.0
        %991 = vmatprep.subr.mxu0 0.0
        %992 = vmatpush1.msra.mxu0 0.0
        %993 = vmatprep.subr.mxu0 0.0
        %994 = vmatpush1.msra.mxu0 0.0
        %995 = vmatprep.subr.mxu0 0.0
        %996 = vmatpush1.msra.mxu0 0.0
        %997 = vmatprep.subr.mxu0 0.0
        %998 = vmatpush1.msra.mxu0 0.0
        %999 = vmatprep.subr.mxu0 0.0
        %1000 = vmatpush1.msra.mxu0 0.0
        %1001 = vmatprep.subr.mxu0 0.0
        %1002 = vmatpush1.msra.mxu0 0.0
        %1003 = vmatprep.subr.mxu0 0.0
        %1004 = vmatpush1.msra.mxu0 0.0
        %1005 = vmatprep.subr.mxu0 0.0
        %1006 = vmatpush1.msra.mxu0 0.0
        %1007 = vmatprep.subr.mxu0 0.0
        %1008 = vmatpush1.msra.mxu0 0.0
        %1009 = vmatprep.subr.mxu0 0.0
        %1010 = vmatpush1.msra.mxu0 0.0
        %1011 = vmatprep.subr.mxu0 0.0
        %1012 = vmatpush1.msra.mxu0 0.0
        %1013 = vmatprep.subr.mxu0 0.0
        %1014 = vmatpush1.msra.mxu0 0.0
        %1015 = vmatprep.subr.mxu0 0.0
        %1016 = vmatpush1.msra.mxu0 0.0
        %1017 = vmatprep.subr.mxu0 0.0
        %1018 = vmatpush1.msra.mxu0 0.0
        %1019 = vmatprep.subr.mxu0 0.0
        %1020 = vmatpush1.msra.mxu0 0.0
        %1021 = vmatprep.subr.mxu0 0.0
        %1022 = vmatpush1.msra.mxu0 0.0
        %1023 = vmatprep.subr.mxu0 0.0
        %1024 = vmatpush1.msra.mxu0 0.0
        %1025 = vmatprep.subr.mxu0 0.0
        %1026 = vmatpush1.msra.mxu0 0.0
        %1027 = vmatprep.subr.mxu0 0.0
        %1028 = vmatpush1.msra.mxu0 0.0
        %1029 = vmatprep.subr.mxu0 0.0
        %1030 = vmatpush1.msra.mxu0 0.0
        %1031 = vmatprep.subr.mxu0 0.0
        %1032 = vmatpush1.msra.mxu0 0.0
        %1033 = vmatprep.mubr.f32.mxu0 0.0
        %1034 = vmatmul.mubr.f32.gmra.mrb[0].mxu0 %v424
        %v1035 = vpop.f32.mrb[0].mxu0
        %v1036 = vadd.f32 %v405, %v1035
        %v1037 = vpop.f32.mrb[0].mxu0
        %v1038 = vadd.f32 %v405, %v1037
        %1039 = vmatprep.mubr.f32.mxu0 0.0
        %1040 = vmatmul.mubr.f32.gmra.mrb[0].mxu0 %v427
        %v1041 = vpop.f32.mrb[0].mxu0
        %v1042 = vadd.f32 %v410, %v1041
        %v1043 = vpop.f32.mrb[0].mxu0
        %v1044 = vadd.f32 %v410, %v1043
        %1045 = vmatprep.mubr.f32.mxu0 0.0
        %1046 = vmatmul.mubr.f32.gmra.mrb[0].mxu0 %v430
        %v1047 = vpop.f32.mrb[0].mxu0
        %v1048 = vadd.f32 %v415, %v1047
        %v1049 = vpop.f32.mrb[0].mxu0
        %v1050 = vadd.f32 %v415, %v1049
        %1051 = vmatprep.mubr.f32.mxu0 0.0
        %1052 = vmatmul.mubr.f32.gmra.mrb[0].mxu0 %v433
        %v1053 = vpop.f32.mrb[0].mxu0
        %v1054 = vadd.f32 %v420, %v1053
        %v1055 = vpop.f32.mrb[0].mxu0
        %v1056 = vadd.f32 %v420, %v1055
        %1057 = vdwg.mxu0
        %1058 = vmatprep.subr.mxu0 %v393
        %1059 = vmatpush1.msra.mxu0 %v392
        %1060 = vmatprep.subr.mxu0 0.0
        %1061 = vmatpush1.msra.mxu0 0.0
        %1062 = vmatprep.subr.mxu0 0.0
        %1063 = vmatpush1.msra.mxu0 0.0
        %1064 = vmatprep.subr.mxu0 0.0
        %1065 = vmatpush1.msra.mxu0 0.0
        %1066 = vmatprep.subr.mxu0 0.0
        %1067 = vmatpush1.msra.mxu0 0.0
        %1068 = vmatprep.subr.mxu0 0.0
        %1069 = vmatpush1.msra.mxu0 0.0
        %1070 = vmatprep.subr.mxu0 0.0
        %1071 = vmatpush1.msra.mxu0 0.0
        %1072 = vmatprep.subr.mxu0 0.0
        %1073 = vmatpush1.msra.mxu0 0.0
        %1074 = vmatprep.subr.mxu0 0.0
        %1075 = vmatpush1.msra.mxu0 0.0
        %1076 = vmatprep.subr.mxu0 0.0
        %1077 = vmatpush1.msra.mxu0 0.0
        %1078 = vmatprep.subr.mxu0 0.0
        %1079 = vmatpush1.msra.mxu0 0.0
        %1080 = vmatprep.subr.mxu0 0.0
        %1081 = vmatpush1.msra.mxu0 0.0
        %1082 = vmatprep.subr.mxu0 0.0
        %1083 = vmatpush1.msra.mxu0 0.0
        %1084 = vmatprep.subr.mxu0 0.0
        %1085 = vmatpush1.msra.mxu0 0.0
        %1086 = vmatprep.subr.mxu0 0.0
        %1087 = vmatpush1.msra.mxu0 0.0
        %1088 = vmatprep.subr.mxu0 0.0
        %1089 = vmatpush1.msra.mxu0 0.0
        %1090 = vmatprep.subr.mxu0 0.0
        %1091 = vmatpush1.msra.mxu0 0.0
        %1092 = vmatprep.subr.mxu0 0.0
        %1093 = vmatpush1.msra.mxu0 0.0
        %1094 = vmatprep.subr.mxu0 0.0
        %1095 = vmatpush1.msra.mxu0 0.0
        %1096 = vmatprep.subr.mxu0 0.0
        %1097 = vmatpush1.msra.mxu0 0.0
        %1098 = vmatprep.subr.mxu0 0.0
        %1099 = vmatpush1.msra.mxu0 0.0
        %1100 = vmatprep.subr.mxu0 0.0
        %1101 = vmatpush1.msra.mxu0 0.0
        %1102 = vmatprep.subr.mxu0 0.0
        %1103 = vmatpush1.msra.mxu0 0.0
        %1104 = vmatprep.subr.mxu0 0.0
        %1105 = vmatpush1.msra.mxu0 0.0
        %1106 = vmatprep.subr.mxu0 0.0
        %1107 = vmatpush1.msra.mxu0 0.0
        %1108 = vmatprep.subr.mxu0 0.0
        %1109 = vmatpush1.msra.mxu0 0.0
        %1110 = vmatprep.subr.mxu0 0.0
        %1111 = vmatpush1.msra.mxu0 0.0
        %1112 = vmatprep.subr.mxu0 0.0
        %1113 = vmatpush1.msra.mxu0 0.0
        %1114 = vmatprep.subr.mxu0 0.0
        %1115 = vmatpush1.msra.mxu0 0.0
        %1116 = vmatprep.subr.mxu0 0.0
        %1117 = vmatpush1.msra.mxu0 0.0
        %1118 = vmatprep.subr.mxu0 0.0
        %1119 = vmatpush1.msra.mxu0 0.0
        %1120 = vmatprep.subr.mxu0 0.0
        %1121 = vmatpush1.msra.mxu0 0.0
        %1122 = vmatprep.mubr.f32.mxu0 0.0
        %1123 = vmatmul.mubr.f32.gmra.mrb[0].mxu0 %v424
        %v1124 = vpop.f32.mrb[0].mxu0
        %v1125 = vadd.f32 %v405, %v1124
        %v1126 = vpop.f32.mrb[0].mxu0
        %v1127 = vadd.f32 %v405, %v1126
        %1128 = vmatprep.mubr.f32.mxu0 0.0
        %1129 = vmatmul.mubr.f32.gmra.mrb[0].mxu0 %v427
        %v1130 = vpop.f32.mrb[0].mxu0
        %v1131 = vadd.f32 %v410, %v1130
        %v1132 = vpop.f32.mrb[0].mxu0
        %v1133 = vadd.f32 %v410, %v1132
        %1134 = vmatprep.mubr.f32.mxu0 0.0
        %1135 = vmatmul.mubr.f32.gmra.mrb[0].mxu0 %v430
        %v1136 = vpop.f32.mrb[0].mxu0
        %v1137 = vadd.f32 %v415, %v1136
        %v1138 = vpop.f32.mrb[0].mxu0
        %v1139 = vadd.f32 %v415, %v1138
        %1140 = vmatprep.mubr.f32.mxu0 0.0
        %1141 = vmatmul.mubr.f32.gmra.mrb[0].mxu0 %v433
        %v1142 = vpop.f32.mrb[0].mxu0
        %v1143 = vadd.f32 %v420, %v1142
        %v1144 = vpop.f32.mrb[0].mxu0
        %v1145 = vadd.f32 %v420, %v1144
        %1146 = vdwg.mxu0
        %v1147 = vmax.f32 %v502, 0.0
        %v1148 = vmax.f32 %v504, 0.0
        %v1149 = vmax.f32 %v591, 0.0
        %v1150 = vmax.f32 %v593, 0.0
        %v1151 = vmax.f32 %v680, 0.0
        %v1152 = vmax.f32 %v682, 0.0
        %v1153 = vmax.f32 %v769, 0.0
        %v1154 = vmax.f32 %v771, 0.0
        %v1155 = vmax.f32 %v858, 0.0
        %v1156 = vmax.f32 %v860, 0.0
        %v1157 = vmax.f32 %v947, 0.0
        %v1158 = vmax.f32 %v949, 0.0
        %v1159 = vmax.f32 %v1036, 0.0
        %v1160 = vmax.f32 %v1038, 0.0
        %v1161 = vmax.f32 %v1125, 0.0
        %v1162 = vmax.f32 %v1127, 0.0
        %v1163 = vmax.f32 %v508, 0.0
        %v1164 = vmax.f32 %v510, 0.0
        %v1165 = vmax.f32 %v597, 0.0
        %v1166 = vmax.f32 %v599, 0.0
        %v1167 = vmax.f32 %v686, 0.0
        %v1168 = vmax.f32 %v688, 0.0
        %v1169 = vmax.f32 %v775, 0.0
        %v1170 = vmax.f32 %v777, 0.0
        %v1171 = vmax.f32 %v864, 0.0
        %v1172 = vmax.f32 %v866, 0.0
        %v1173 = vmax.f32 %v953, 0.0
        %v1174 = vmax.f32 %v955, 0.0
        %v1175 = vmax.f32 %v1042, 0.0
        %v1176 = vmax.f32 %v1044, 0.0
        %v1177 = vmax.f32 %v1131, 0.0
        %v1178 = vmax.f32 %v1133, 0.0
        %v1179 = vmax.f32 %v514, 0.0
        %v1180 = vmax.f32 %v516, 0.0
        %v1181 = vmax.f32 %v603, 0.0
        %v1182 = vmax.f32 %v605, 0.0
        %v1183 = vmax.f32 %v692, 0.0
        %v1184 = vmax.f32 %v694, 0.0
        %v1185 = vmax.f32 %v781, 0.0
        %v1186 = vmax.f32 %v783, 0.0
        %v1187 = vmax.f32 %v870, 0.0
        %v1188 = vmax.f32 %v872, 0.0
        %v1189 = vmax.f32 %v959, 0.0
        %v1190 = vmax.f32 %v961, 0.0
        %v1191 = vmax.f32 %v1048, 0.0
        %v1192 = vmax.f32 %v1050, 0.0
        %v1193 = vmax.f32 %v1137, 0.0
        %v1194 = vmax.f32 %v1139, 0.0
        %v1195 = vmax.f32 %v520, 0.0
        %v1196 = vmax.f32 %v522, 0.0
        %v1197 = vmax.f32 %v609, 0.0
        %v1198 = vmax.f32 %v611, 0.0
        %v1199 = vmax.f32 %v698, 0.0
        %v1200 = vmax.f32 %v700, 0.0
        %v1201 = vmax.f32 %v787, 0.0
        %v1202 = vmax.f32 %v789, 0.0
        %v1203 = vmax.f32 %v876, 0.0
        %v1204 = vmax.f32 %v878, 0.0
        %v1205 = vmax.f32 %v965, 0.0
        %v1206 = vmax.f32 %v967, 0.0
        %v1207 = vmax.f32 %v1054, 0.0
        %v1208 = vmax.f32 %v1056, 0.0
        %v1209 = vmax.f32 %v1143, 0.0
        %v1210 = vmax.f32 %v1145, 0.0
        %v1211 = vld [vmem:[%s3] sm:$0xff]
        %v1212 = vld [vmem:[%s3 + $0x8] sm:$0xff]
        %v1213 = vld [vmem:[%s3 + $0x10] sm:$0xff]
        %v1214 = vld [vmem:[%s3 + $0x18] sm:$0xff]
        %v1215 = vld [vmem:[%s4] sm:$0xff]
        %v1216 = vld [vmem:[%s4 + $0x8] sm:$0xff]
        %v1217 = vld [vmem:[%s4 + $0x10] sm:$0xff]
        %v1218 = vld [vmem:[%s4 + $0x18] sm:$0xff]
        %1220 = vset.pattern.permute.xlu0 0
        %1221 = vperm.xlu0 %1220, %v1215
        %v1222 = vpop.permute.xlu0 %1221
        %1225 = vset.pattern.permute.xlu0 0
        %1226 = vperm.xlu0 %1225, %v1216
        %v1227 = vpop.permute.xlu0 %1226
        %1230 = vset.pattern.permute.xlu0 0
        %1231 = vperm.xlu0 %1230, %v1217
        %v1232 = vpop.permute.xlu0 %1231
        %1235 = vset.pattern.permute.xlu0 0
        %1236 = vperm.xlu0 %1235, %v1218
        %v1237 = vpop.permute.xlu0 %1236
        %vm1239 = vcmask 261120
        %v1241 = vsel %vm1239, %v1211, 0
        %v1244 = vsel %vm1239, %v1212, 0
        %v1247 = vsel %vm1239, %v1213, 0
        %v1250 = vsel %vm1239, %v1214, 0
        %1252 = vmatprep.subr.mxu0 %v1148
        %1253 = vmatpush1.msra.mxu0 %v1147
        %1254 = vmatprep.subr.mxu0 %v1164
        %1255 = vmatpush1.msra.mxu0 %v1163
        %1256 = vmatprep.subr.mxu0 %v1180
        %1257 = vmatpush1.msra.mxu0 %v1179
        %1258 = vmatprep.subr.mxu0 %v1196
        %1259 = vmatpush1.msra.mxu0 %v1195
        %1260 = vmatprep.subr.mxu0 0.0
        %1261 = vmatpush1.msra.mxu0 0.0
        %1262 = vmatprep.subr.mxu0 0.0
        %1263 = vmatpush1.msra.mxu0 0.0
        %1264 = vmatprep.subr.mxu0 0.0
        %1265 = vmatpush1.msra.mxu0 0.0
        %1266 = vmatprep.subr.mxu0 0.0
        %1267 = vmatpush1.msra.mxu0 0.0
        %1268 = vmatprep.subr.mxu0 0.0
        %1269 = vmatpush1.msra.mxu0 0.0
        %1270 = vmatprep.subr.mxu0 0.0
        %1271 = vmatpush1.msra.mxu0 0.0
        %1272 = vmatprep.subr.mxu0 0.0
        %1273 = vmatpush1.msra.mxu0 0.0
        %1274 = vmatprep.subr.mxu0 0.0
        %1275 = vmatpush1.msra.mxu0 0.0
        %1276 = vmatprep.subr.mxu0 0.0
        %1277 = vmatpush1.msra.mxu0 0.0
        %1278 = vmatprep.subr.mxu0 0.0
        %1279 = vmatpush1.msra.mxu0 0.0
        %1280 = vmatprep.subr.mxu0 0.0
        %1281 = vmatpush1.msra.mxu0 0.0
        %1282 = vmatprep.subr.mxu0 0.0
        %1283 = vmatpush1.msra.mxu0 0.0
        %1284 = vmatprep.subr.mxu0 0.0
        %1285 = vmatpush1.msra.mxu0 0.0
        %1286 = vmatprep.subr.mxu0 0.0
        %1287 = vmatpush1.msra.mxu0 0.0
        %1288 = vmatprep.subr.mxu0 0.0
        %1289 = vmatpush1.msra.mxu0 0.0
        %1290 = vmatprep.subr.mxu0 0.0
        %1291 = vmatpush1.msra.mxu0 0.0
        %1292 = vmatprep.subr.mxu0 0.0
        %1293 = vmatpush1.msra.mxu0 0.0
        %1294 = vmatprep.subr.mxu0 0.0
        %1295 = vmatpush1.msra.mxu0 0.0
        %1296 = vmatprep.subr.mxu0 0.0
        %1297 = vmatpush1.msra.mxu0 0.0
        %1298 = vmatprep.subr.mxu0 0.0
        %1299 = vmatpush1.msra.mxu0 0.0
        %1300 = vmatprep.subr.mxu0 0.0
        %1301 = vmatpush1.msra.mxu0 0.0
        %1302 = vmatprep.subr.mxu0 0.0
        %1303 = vmatpush1.msra.mxu0 0.0
        %1304 = vmatprep.subr.mxu0 0.0
        %1305 = vmatpush1.msra.mxu0 0.0
        %1306 = vmatprep.subr.mxu0 0.0
        %1307 = vmatpush1.msra.mxu0 0.0
        %1308 = vmatprep.subr.mxu0 0.0
        %1309 = vmatpush1.msra.mxu0 0.0
        %1310 = vmatprep.subr.mxu0 0.0
        %1311 = vmatpush1.msra.mxu0 0.0
        %1312 = vmatprep.subr.mxu0 0.0
        %1313 = vmatpush1.msra.mxu0 0.0
        %1314 = vmatprep.subr.mxu0 0.0
        %1315 = vmatpush1.msra.mxu0 0.0
        %1316 = vmatprep.mubr.f32.mxu0 0.0
        %1317 = vmatmul.mubr.f32.gmra.mrb[0].mxu0 %v1241
        %v1318 = vpop.f32.mrb[0].mxu0
        %v1319 = vadd.f32 %v1222, %v1318
        %v1320 = vpop.f32.mrb[0].mxu0
        %v1321 = vadd.f32 %v1222, %v1320
        %1322 = vmatprep.mubr.f32.mxu0 0.0
        %1323 = vmatmul.mubr.f32.gmra.mrb[0].mxu0 %v1244
        %v1324 = vpop.f32.mrb[0].mxu0
        %v1325 = vadd.f32 %v1227, %v1324
        %v1326 = vpop.f32.mrb[0].mxu0
        %v1327 = vadd.f32 %v1227, %v1326
        %1328 = vmatprep.mubr.f32.mxu0 0.0
        %1329 = vmatmul.mubr.f32.gmra.mrb[0].mxu0 %v1247
        %v1330 = vpop.f32.mrb[0].mxu0
        %v1331 = vadd.f32 %v1232, %v1330
        %v1332 = vpop.f32.mrb[0].mxu0
        %v1333 = vadd.f32 %v1232, %v1332
        %1334 = vmatprep.mubr.f32.mxu0 0.0
        %1335 = vmatmul.mubr.f32.gmra.mrb[0].mxu0 %v1250
        %v1336 = vpop.f32.mrb[0].mxu0
        %v1337 = vadd.f32 %v1237, %v1336
        %v1338 = vpop.f32.mrb[0].mxu0
        %v1339 = vadd.f32 %v1237, %v1338
        %1340 = vdwg.mxu0
        %1341 = vmatprep.subr.mxu0 %v1150
        %1342 = vmatpush1.msra.mxu0 %v1149
        %1343 = vmatprep.subr.mxu0 %v1166
        %1344 = vmatpush1.msra.mxu0 %v1165
        %1345 = vmatprep.subr.mxu0 %v1182
        %1346 = vmatpush1.msra.mxu0 %v1181
        %1347 = vmatprep.subr.mxu0 %v1198
        %1348 = vmatpush1.msra.mxu0 %v1197
        %1349 = vmatprep.subr.mxu0 0.0
        %1350 = vmatpush1.msra.mxu0 0.0
        %1351 = vmatprep.subr.mxu0 0.0
        %1352 = vmatpush1.msra.mxu0 0.0
        %1353 = vmatprep.subr.mxu0 0.0
        %1354 = vmatpush1.msra.mxu0 0.0
        %1355 = vmatprep.subr.mxu0 0.0
        %1356 = vmatpush1.msra.mxu0 0.0
        %1357 = vmatprep.subr.mxu0 0.0
        %1358 = vmatpush1.msra.mxu0 0.0
        %1359 = vmatprep.subr.mxu0 0.0
        %1360 = vmatpush1.msra.mxu0 0.0
        %1361 = vmatprep.subr.mxu0 0.0
        %1362 = vmatpush1.msra.mxu0 0.0
        %1363 = vmatprep.subr.mxu0 0.0
        %1364 = vmatpush1.msra.mxu0 0.0
        %1365 = vmatprep.subr.mxu0 0.0
        %1366 = vmatpush1.msra.mxu0 0.0
        %1367 = vmatprep.subr.mxu0 0.0
        %1368 = vmatpush1.msra.mxu0 0.0
        %1369 = vmatprep.subr.mxu0 0.0
        %1370 = vmatpush1.msra.mxu0 0.0
        %1371 = vmatprep.subr.mxu0 0.0
        %1372 = vmatpush1.msra.mxu0 0.0
        %1373 = vmatprep.subr.mxu0 0.0
        %1374 = vmatpush1.msra.mxu0 0.0
        %1375 = vmatprep.subr.mxu0 0.0
        %1376 = vmatpush1.msra.mxu0 0.0
        %1377 = vmatprep.subr.mxu0 0.0
        %1378 = vmatpush1.msra.mxu0 0.0
        %1379 = vmatprep.subr.mxu0 0.0
        %1380 = vmatpush1.msra.mxu0 0.0
        %1381 = vmatprep.subr.mxu0 0.0
        %1382 = vmatpush1.msra.mxu0 0.0
        %1383 = vmatprep.subr.mxu0 0.0
        %1384 = vmatpush1.msra.mxu0 0.0
        %1385 = vmatprep.subr.mxu0 0.0
        %1386 = vmatpush1.msra.mxu0 0.0
        %1387 = vmatprep.subr.mxu0 0.0
        %1388 = vmatpush1.msra.mxu0 0.0
        %1389 = vmatprep.subr.mxu0 0.0
        %1390 = vmatpush1.msra.mxu0 0.0
        %1391 = vmatprep.subr.mxu0 0.0
        %1392 = vmatpush1.msra.mxu0 0.0
        %1393 = vmatprep.subr.mxu0 0.0
        %1394 = vmatpush1.msra.mxu0 0.0
        %1395 = vmatprep.subr.mxu0 0.0
        %1396 = vmatpush1.msra.mxu0 0.0
        %1397 = vmatprep.subr.mxu0 0.0
        %1398 = vmatpush1.msra.mxu0 0.0
        %1399 = vmatprep.subr.mxu0 0.0
        %1400 = vmatpush1.msra.mxu0 0.0
        %1401 = vmatprep.subr.mxu0 0.0
        %1402 = vmatpush1.msra.mxu0 0.0
        %1403 = vmatprep.subr.mxu0 0.0
        %1404 = vmatpush1.msra.mxu0 0.0
        %1405 = vmatprep.mubr.f32.mxu0 0.0
        %1406 = vmatmul.mubr.f32.gmra.mrb[0].mxu0 %v1241
        %v1407 = vpop.f32.mrb[0].mxu0
        %v1408 = vadd.f32 %v1222, %v1407
        %v1409 = vpop.f32.mrb[0].mxu0
        %v1410 = vadd.f32 %v1222, %v1409
        %1411 = vmatprep.mubr.f32.mxu0 0.0
        %1412 = vmatmul.mubr.f32.gmra.mrb[0].mxu0 %v1244
        %v1413 = vpop.f32.mrb[0].mxu0
        %v1414 = vadd.f32 %v1227, %v1413
        %v1415 = vpop.f32.mrb[0].mxu0
        %v1416 = vadd.f32 %v1227, %v1415
        %1417 = vmatprep.mubr.f32.mxu0 0.0
        %1418 = vmatmul.mubr.f32.gmra.mrb[0].mxu0 %v1247
        %v1419 = vpop.f32.mrb[0].mxu0
        %v1420 = vadd.f32 %v1232, %v1419
        %v1421 = vpop.f32.mrb[0].mxu0
        %v1422 = vadd.f32 %v1232, %v1421
        %1423 = vmatprep.mubr.f32.mxu0 0.0
        %1424 = vmatmul.mubr.f32.gmra.mrb[0].mxu0 %v1250
        %v1425 = vpop.f32.mrb[0].mxu0
        %v1426 = vadd.f32 %v1237, %v1425
        %v1427 = vpop.f32.mrb[0].mxu0
        %v1428 = vadd.f32 %v1237, %v1427
        %1429 = vdwg.mxu0
        %1430 = vmatprep.subr.mxu0 %v1152
        %1431 = vmatpush1.msra.mxu0 %v1151
        %1432 = vmatprep.subr.mxu0 %v1168
        %1433 = vmatpush1.msra.mxu0 %v1167
        %1434 = vmatprep.subr.mxu0 %v1184
        %1435 = vmatpush1.msra.mxu0 %v1183
        %1436 = vmatprep.subr.mxu0 %v1200
        %1437 = vmatpush1.msra.mxu0 %v1199
        %1438 = vmatprep.subr.mxu0 0.0
        %1439 = vmatpush1.msra.mxu0 0.0
        %1440 = vmatprep.subr.mxu0 0.0
        %1441 = vmatpush1.msra.mxu0 0.0
        %1442 = vmatprep.subr.mxu0 0.0
        %1443 = vmatpush1.msra.mxu0 0.0
        %1444 = vmatprep.subr.mxu0 0.0
        %1445 = vmatpush1.msra.mxu0 0.0
        %1446 = vmatprep.subr.mxu0 0.0
        %1447 = vmatpush1.msra.mxu0 0.0
        %1448 = vmatprep.subr.mxu0 0.0
        %1449 = vmatpush1.msra.mxu0 0.0
        %1450 = vmatprep.subr.mxu0 0.0
        %1451 = vmatpush1.msra.mxu0 0.0
        %1452 = vmatprep.subr.mxu0 0.0
        %1453 = vmatpush1.msra.mxu0 0.0
        %1454 = vmatprep.subr.mxu0 0.0
        %1455 = vmatpush1.msra.mxu0 0.0
        %1456 = vmatprep.subr.mxu0 0.0
        %1457 = vmatpush1.msra.mxu0 0.0
        %1458 = vmatprep.subr.mxu0 0.0
        %1459 = vmatpush1.msra.mxu0 0.0
        %1460 = vmatprep.subr.mxu0 0.0
        %1461 = vmatpush1.msra.mxu0 0.0
        %1462 = vmatprep.subr.mxu0 0.0
        %1463 = vmatpush1.msra.mxu0 0.0
        %1464 = vmatprep.subr.mxu0 0.0
        %1465 = vmatpush1.msra.mxu0 0.0
        %1466 = vmatprep.subr.mxu0 0.0
        %1467 = vmatpush1.msra.mxu0 0.0
        %1468 = vmatprep.subr.mxu0 0.0
        %1469 = vmatpush1.msra.mxu0 0.0
        %1470 = vmatprep.subr.mxu0 0.0
        %1471 = vmatpush1.msra.mxu0 0.0
        %1472 = vmatprep.subr.mxu0 0.0
        %1473 = vmatpush1.msra.mxu0 0.0
        %1474 = vmatprep.subr.mxu0 0.0
        %1475 = vmatpush1.msra.mxu0 0.0
        %1476 = vmatprep.subr.mxu0 0.0
        %1477 = vmatpush1.msra.mxu0 0.0
        %1478 = vmatprep.subr.mxu0 0.0
        %1479 = vmatpush1.msra.mxu0 0.0
        %1480 = vmatprep.subr.mxu0 0.0
        %1481 = vmatpush1.msra.mxu0 0.0
        %1482 = vmatprep.subr.mxu0 0.0
        %1483 = vmatpush1.msra.mxu0 0.0
        %1484 = vmatprep.subr.mxu0 0.0
        %1485 = vmatpush1.msra.mxu0 0.0
        %1486 = vmatprep.subr.mxu0 0.0
        %1487 = vmatpush1.msra.mxu0 0.0
        %1488 = vmatprep.subr.mxu0 0.0
        %1489 = vmatpush1.msra.mxu0 0.0
        %1490 = vmatprep.subr.mxu0 0.0
        %1491 = vmatpush1.msra.mxu0 0.0
        %1492 = vmatprep.subr.mxu0 0.0
        %1493 = vmatpush1.msra.mxu0 0.0
        %1494 = vmatprep.mubr.f32.mxu0 0.0
        %1495 = vmatmul.mubr.f32.gmra.mrb[0].mxu0 %v1241
        %v1496 = vpop.f32.mrb[0].mxu0
        %v1497 = vadd.f32 %v1222, %v1496
        %v1498 = vpop.f32.mrb[0].mxu0
        %v1499 = vadd.f32 %v1222, %v1498
        %1500 = vmatprep.mubr.f32.mxu0 0.0
        %1501 = vmatmul.mubr.f32.gmra.mrb[0].mxu0 %v1244
        %v1502 = vpop.f32.mrb[0].mxu0
        %v1503 = vadd.f32 %v1227, %v1502
        %v1504 = vpop.f32.mrb[0].mxu0
        %v1505 = vadd.f32 %v1227, %v1504
        %1506 = vmatprep.mubr.f32.mxu0 0.0
        %1507 = vmatmul.mubr.f32.gmra.mrb[0].mxu0 %v1247
        %v1508 = vpop.f32.mrb[0].mxu0
        %v1509 = vadd.f32 %v1232, %v1508
        %v1510 = vpop.f32.mrb[0].mxu0
        %v1511 = vadd.f32 %v1232, %v1510
        %1512 = vmatprep.mubr.f32.mxu0 0.0
        %1513 = vmatmul.mubr.f32.gmra.mrb[0].mxu0 %v1250
        %v1514 = vpop.f32.mrb[0].mxu0
        %v1515 = vadd.f32 %v1237, %v1514
        %v1516 = vpop.f32.mrb[0].mxu0
        %v1517 = vadd.f32 %v1237, %v1516
        %1518 = vdwg.mxu0
        %1519 = vmatprep.subr.mxu0 %v1154
        %1520 = vmatpush1.msra.mxu0 %v1153
        %1521 = vmatprep.subr.mxu0 %v1170
        %1522 = vmatpush1.msra.mxu0 %v1169
        %1523 = vmatprep.subr.mxu0 %v1186
        %1524 = vmatpush1.msra.mxu0 %v1185
        %1525 = vmatprep.subr.mxu0 %v1202
        %1526 = vmatpush1.msra.mxu0 %v1201
        %1527 = vmatprep.subr.mxu0 0.0
        %1528 = vmatpush1.msra.mxu0 0.0
        %1529 = vmatprep.subr.mxu0 0.0
        %1530 = vmatpush1.msra.mxu0 0.0
        %1531 = vmatprep.subr.mxu0 0.0
        %1532 = vmatpush1.msra.mxu0 0.0
        %1533 = vmatprep.subr.mxu0 0.0
        %1534 = vmatpush1.msra.mxu0 0.0
        %1535 = vmatprep.subr.mxu0 0.0
        %1536 = vmatpush1.msra.mxu0 0.0
        %1537 = vmatprep.subr.mxu0 0.0
        %1538 = vmatpush1.msra.mxu0 0.0
        %1539 = vmatprep.subr.mxu0 0.0
        %1540 = vmatpush1.msra.mxu0 0.0
        %1541 = vmatprep.subr.mxu0 0.0
        %1542 = vmatpush1.msra.mxu0 0.0
        %1543 = vmatprep.subr.mxu0 0.0
        %1544 = vmatpush1.msra.mxu0 0.0
        %1545 = vmatprep.subr.mxu0 0.0
        %1546 = vmatpush1.msra.mxu0 0.0
        %1547 = vmatprep.subr.mxu0 0.0
        %1548 = vmatpush1.msra.mxu0 0.0
        %1549 = vmatprep.subr.mxu0 0.0
        %1550 = vmatpush1.msra.mxu0 0.0
        %1551 = vmatprep.subr.mxu0 0.0
        %1552 = vmatpush1.msra.mxu0 0.0
        %1553 = vmatprep.subr.mxu0 0.0
        %1554 = vmatpush1.msra.mxu0 0.0
        %1555 = vmatprep.subr.mxu0 0.0
        %1556 = vmatpush1.msra.mxu0 0.0
        %1557 = vmatprep.subr.mxu0 0.0
        %1558 = vmatpush1.msra.mxu0 0.0
        %1559 = vmatprep.subr.mxu0 0.0
        %1560 = vmatpush1.msra.mxu0 0.0
        %1561 = vmatprep.subr.mxu0 0.0
        %1562 = vmatpush1.msra.mxu0 0.0
        %1563 = vmatprep.subr.mxu0 0.0
        %1564 = vmatpush1.msra.mxu0 0.0
        %1565 = vmatprep.subr.mxu0 0.0
        %1566 = vmatpush1.msra.mxu0 0.0
        %1567 = vmatprep.subr.mxu0 0.0
        %1568 = vmatpush1.msra.mxu0 0.0
        %1569 = vmatprep.subr.mxu0 0.0
        %1570 = vmatpush1.msra.mxu0 0.0
        %1571 = vmatprep.subr.mxu0 0.0
        %1572 = vmatpush1.msra.mxu0 0.0
        %1573 = vmatprep.subr.mxu0 0.0
        %1574 = vmatpush1.msra.mxu0 0.0
        %1575 = vmatprep.subr.mxu0 0.0
        %1576 = vmatpush1.msra.mxu0 0.0
        %1577 = vmatprep.subr.mxu0 0.0
        %1578 = vmatpush1.msra.mxu0 0.0
        %1579 = vmatprep.subr.mxu0 0.0
        %1580 = vmatpush1.msra.mxu0 0.0
        %1581 = vmatprep.subr.mxu0 0.0
        %1582 = vmatpush1.msra.mxu0 0.0
        %1583 = vmatprep.mubr.f32.mxu0 0.0
        %1584 = vmatmul.mubr.f32.gmra.mrb[0].mxu0 %v1241
        %v1585 = vpop.f32.mrb[0].mxu0
        %v1586 = vadd.f32 %v1222, %v1585
        %v1587 = vpop.f32.mrb[0].mxu0
        %v1588 = vadd.f32 %v1222, %v1587
        %1589 = vmatprep.mubr.f32.mxu0 0.0
        %1590 = vmatmul.mubr.f32.gmra.mrb[0].mxu0 %v1244
        %v1591 = vpop.f32.mrb[0].mxu0
        %v1592 = vadd.f32 %v1227, %v1591
        %v1593 = vpop.f32.mrb[0].mxu0
        %v1594 = vadd.f32 %v1227, %v1593
        %1595 = vmatprep.mubr.f32.mxu0 0.0
        %1596 = vmatmul.mubr.f32.gmra.mrb[0].mxu0 %v1247
        %v1597 = vpop.f32.mrb[0].mxu0
        %v1598 = vadd.f32 %v1232, %v1597
        %v1599 = vpop.f32.mrb[0].mxu0
        %v1600 = vadd.f32 %v1232, %v1599
        %1601 = vmatprep.mubr.f32.mxu0 0.0
        %1602 = vmatmul.mubr.f32.gmra.mrb[0].mxu0 %v1250
        %v1603 = vpop.f32.mrb[0].mxu0
        %v1604 = vadd.f32 %v1237, %v1603
        %v1605 = vpop.f32.mrb[0].mxu0
        %v1606 = vadd.f32 %v1237, %v1605
        %1607 = vdwg.mxu0
        %1608 = vmatprep.subr.mxu0 %v1156
        %1609 = vmatpush1.msra.mxu0 %v1155
        %1610 = vmatprep.subr.mxu0 %v1172
        %1611 = vmatpush1.msra.mxu0 %v1171
        %1612 = vmatprep.subr.mxu0 %v1188
        %1613 = vmatpush1.msra.mxu0 %v1187
        %1614 = vmatprep.subr.mxu0 %v1204
        %1615 = vmatpush1.msra.mxu0 %v1203
        %1616 = vmatprep.subr.mxu0 0.0
        %1617 = vmatpush1.msra.mxu0 0.0
        %1618 = vmatprep.subr.mxu0 0.0
        %1619 = vmatpush1.msra.mxu0 0.0
        %1620 = vmatprep.subr.mxu0 0.0
        %1621 = vmatpush1.msra.mxu0 0.0
        %1622 = vmatprep.subr.mxu0 0.0
        %1623 = vmatpush1.msra.mxu0 0.0
        %1624 = vmatprep.subr.mxu0 0.0
        %1625 = vmatpush1.msra.mxu0 0.0
        %1626 = vmatprep.subr.mxu0 0.0
        %1627 = vmatpush1.msra.mxu0 0.0
        %1628 = vmatprep.subr.mxu0 0.0
        %1629 = vmatpush1.msra.mxu0 0.0
        %1630 = vmatprep.subr.mxu0 0.0
        %1631 = vmatpush1.msra.mxu0 0.0
        %1632 = vmatprep.subr.mxu0 0.0
        %1633 = vmatpush1.msra.mxu0 0.0
        %1634 = vmatprep.subr.mxu0 0.0
        %1635 = vmatpush1.msra.mxu0 0.0
        %1636 = vmatprep.subr.mxu0 0.0
        %1637 = vmatpush1.msra.mxu0 0.0
        %1638 = vmatprep.subr.mxu0 0.0
        %1639 = vmatpush1.msra.mxu0 0.0
        %1640 = vmatprep.subr.mxu0 0.0
        %1641 = vmatpush1.msra.mxu0 0.0
        %1642 = vmatprep.subr.mxu0 0.0
        %1643 = vmatpush1.msra.mxu0 0.0
        %1644 = vmatprep.subr.mxu0 0.0
        %1645 = vmatpush1.msra.mxu0 0.0
        %1646 = vmatprep.subr.mxu0 0.0
        %1647 = vmatpush1.msra.mxu0 0.0
        %1648 = vmatprep.subr.mxu0 0.0
        %1649 = vmatpush1.msra.mxu0 0.0
        %1650 = vmatprep.subr.mxu0 0.0
        %1651 = vmatpush1.msra.mxu0 0.0
        %1652 = vmatprep.subr.mxu0 0.0
        %1653 = vmatpush1.msra.mxu0 0.0
        %1654 = vmatprep.subr.mxu0 0.0
        %1655 = vmatpush1.msra.mxu0 0.0
        %1656 = vmatprep.subr.mxu0 0.0
        %1657 = vmatpush1.msra.mxu0 0.0
        %1658 = vmatprep.subr.mxu0 0.0
        %1659 = vmatpush1.msra.mxu0 0.0
        %1660 = vmatprep.subr.mxu0 0.0
        %1661 = vmatpush1.msra.mxu0 0.0
        %1662 = vmatprep.subr.mxu0 0.0
        %1663 = vmatpush1.msra.mxu0 0.0
        %1664 = vmatprep.subr.mxu0 0.0
        %1665 = vmatpush1.msra.mxu0 0.0
        %1666 = vmatprep.subr.mxu0 0.0
        %1667 = vmatpush1.msra.mxu0 0.0
        %1668 = vmatprep.subr.mxu0 0.0
        %1669 = vmatpush1.msra.mxu0 0.0
        %1670 = vmatprep.subr.mxu0 0.0
        %1671 = vmatpush1.msra.mxu0 0.0
        %1672 = vmatprep.mubr.f32.mxu0 0.0
        %1673 = vmatmul.mubr.f32.gmra.mrb[0].mxu0 %v1241
        %v1674 = vpop.f32.mrb[0].mxu0
        %v1675 = vadd.f32 %v1222, %v1674
        %v1676 = vpop.f32.mrb[0].mxu0
        %v1677 = vadd.f32 %v1222, %v1676
        %1678 = vmatprep.mubr.f32.mxu0 0.0
        %1679 = vmatmul.mubr.f32.gmra.mrb[0].mxu0 %v1244
        %v1680 = vpop.f32.mrb[0].mxu0
        %v1681 = vadd.f32 %v1227, %v1680
        %v1682 = vpop.f32.mrb[0].mxu0
        %v1683 = vadd.f32 %v1227, %v1682
        %1684 = vmatprep.mubr.f32.mxu0 0.0
        %1685 = vmatmul.mubr.f32.gmra.mrb[0].mxu0 %v1247
        %v1686 = vpop.f32.mrb[0].mxu0
        %v1687 = vadd.f32 %v1232, %v1686
        %v1688 = vpop.f32.mrb[0].mxu0
        %v1689 = vadd.f32 %v1232, %v1688
        %1690 = vmatprep.mubr.f32.mxu0 0.0
        %1691 = vmatmul.mubr.f32.gmra.mrb[0].mxu0 %v1250
        %v1692 = vpop.f32.mrb[0].mxu0
        %v1693 = vadd.f32 %v1237, %v1692
        %v1694 = vpop.f32.mrb[0].mxu0
        %v1695 = vadd.f32 %v1237, %v1694
        %1696 = vdwg.mxu0
        %1697 = vmatprep.subr.mxu0 %v1158
        %1698 = vmatpush1.msra.mxu0 %v1157
        %1699 = vmatprep.subr.mxu0 %v1174
        %1700 = vmatpush1.msra.mxu0 %v1173
        %1701 = vmatprep.subr.mxu0 %v1190
        %1702 = vmatpush1.msra.mxu0 %v1189
        %1703 = vmatprep.subr.mxu0 %v1206
        %1704 = vmatpush1.msra.mxu0 %v1205
        %1705 = vmatprep.subr.mxu0 0.0
        %1706 = vmatpush1.msra.mxu0 0.0
        %1707 = vmatprep.subr.mxu0 0.0
        %1708 = vmatpush1.msra.mxu0 0.0
        %1709 = vmatprep.subr.mxu0 0.0
        %1710 = vmatpush1.msra.mxu0 0.0
        %1711 = vmatprep.subr.mxu0 0.0
        %1712 = vmatpush1.msra.mxu0 0.0
        %1713 = vmatprep.subr.mxu0 0.0
        %1714 = vmatpush1.msra.mxu0 0.0
        %1715 = vmatprep.subr.mxu0 0.0
        %1716 = vmatpush1.msra.mxu0 0.0
        %1717 = vmatprep.subr.mxu0 0.0
        %1718 = vmatpush1.msra.mxu0 0.0
        %1719 = vmatprep.subr.mxu0 0.0
        %1720 = vmatpush1.msra.mxu0 0.0
        %1721 = vmatprep.subr.mxu0 0.0
        %1722 = vmatpush1.msra.mxu0 0.0
        %1723 = vmatprep.subr.mxu0 0.0
        %1724 = vmatpush1.msra.mxu0 0.0
        %1725 = vmatprep.subr.mxu0 0.0
        %1726 = vmatpush1.msra.mxu0 0.0
        %1727 = vmatprep.subr.mxu0 0.0
        %1728 = vmatpush1.msra.mxu0 0.0
        %1729 = vmatprep.subr.mxu0 0.0
        %1730 = vmatpush1.msra.mxu0 0.0
        %1731 = vmatprep.subr.mxu0 0.0
        %1732 = vmatpush1.msra.mxu0 0.0
        %1733 = vmatprep.subr.mxu0 0.0
        %1734 = vmatpush1.msra.mxu0 0.0
        %1735 = vmatprep.subr.mxu0 0.0
        %1736 = vmatpush1.msra.mxu0 0.0
        %1737 = vmatprep.subr.mxu0 0.0
        %1738 = vmatpush1.msra.mxu0 0.0
        %1739 = vmatprep.subr.mxu0 0.0
        %1740 = vmatpush1.msra.mxu0 0.0
        %1741 = vmatprep.subr.mxu0 0.0
        %1742 = vmatpush1.msra.mxu0 0.0
        %1743 = vmatprep.subr.mxu0 0.0
        %1744 = vmatpush1.msra.mxu0 0.0
        %1745 = vmatprep.subr.mxu0 0.0
        %1746 = vmatpush1.msra.mxu0 0.0
        %1747 = vmatprep.subr.mxu0 0.0
        %1748 = vmatpush1.msra.mxu0 0.0
        %1749 = vmatprep.subr.mxu0 0.0
        %1750 = vmatpush1.msra.mxu0 0.0
        %1751 = vmatprep.subr.mxu0 0.0
        %1752 = vmatpush1.msra.mxu0 0.0
        %1753 = vmatprep.subr.mxu0 0.0
        %1754 = vmatpush1.msra.mxu0 0.0
        %1755 = vmatprep.subr.mxu0 0.0
        %1756 = vmatpush1.msra.mxu0 0.0
        %1757 = vmatprep.subr.mxu0 0.0
        %1758 = vmatpush1.msra.mxu0 0.0
        %1759 = vmatprep.subr.mxu0 0.0
        %1760 = vmatpush1.msra.mxu0 0.0
        %1761 = vmatprep.mubr.f32.mxu0 0.0
        %1762 = vmatmul.mubr.f32.gmra.mrb[0].mxu0 %v1241
        %v1763 = vpop.f32.mrb[0].mxu0
        %v1764 = vadd.f32 %v1222, %v1763
        %v1765 = vpop.f32.mrb[0].mxu0
        %v1766 = vadd.f32 %v1222, %v1765
        %1767 = vmatprep.mubr.f32.mxu0 0.0
        %1768 = vmatmul.mubr.f32.gmra.mrb[0].mxu0 %v1244
        %v1769 = vpop.f32.mrb[0].mxu0
        %v1770 = vadd.f32 %v1227, %v1769
        %v1771 = vpop.f32.mrb[0].mxu0
        %v1772 = vadd.f32 %v1227, %v1771
        %1773 = vmatprep.mubr.f32.mxu0 0.0
        %1774 = vmatmul.mubr.f32.gmra.mrb[0].mxu0 %v1247
        %v1775 = vpop.f32.mrb[0].mxu0
        %v1776 = vadd.f32 %v1232, %v1775
        %v1777 = vpop.f32.mrb[0].mxu0
        %v1778 = vadd.f32 %v1232, %v1777
        %1779 = vmatprep.mubr.f32.mxu0 0.0
        %1780 = vmatmul.mubr.f32.gmra.mrb[0].mxu0 %v1250
        %v1781 = vpop.f32.mrb[0].mxu0
        %v1782 = vadd.f32 %v1237, %v1781
        %v1783 = vpop.f32.mrb[0].mxu0
        %v1784 = vadd.f32 %v1237, %v1783
        %1785 = vdwg.mxu0
        %1786 = vmatprep.subr.mxu0 %v1160
        %1787 = vmatpush1.msra.mxu0 %v1159
        %1788 = vmatprep.subr.mxu0 %v1176
        %1789 = vmatpush1.msra.mxu0 %v1175
        %1790 = vmatprep.subr.mxu0 %v1192
        %1791 = vmatpush1.msra.mxu0 %v1191
        %1792 = vmatprep.subr.mxu0 %v1208
        %1793 = vmatpush1.msra.mxu0 %v1207
        %1794 = vmatprep.subr.mxu0 0.0
        %1795 = vmatpush1.msra.mxu0 0.0
        %1796 = vmatprep.subr.mxu0 0.0
        %1797 = vmatpush1.msra.mxu0 0.0
        %1798 = vmatprep.subr.mxu0 0.0
        %1799 = vmatpush1.msra.mxu0 0.0
        %1800 = vmatprep.subr.mxu0 0.0
        %1801 = vmatpush1.msra.mxu0 0.0
        %1802 = vmatprep.subr.mxu0 0.0
        %1803 = vmatpush1.msra.mxu0 0.0
        %1804 = vmatprep.subr.mxu0 0.0
        %1805 = vmatpush1.msra.mxu0 0.0
        %1806 = vmatprep.subr.mxu0 0.0
        %1807 = vmatpush1.msra.mxu0 0.0
        %1808 = vmatprep.subr.mxu0 0.0
        %1809 = vmatpush1.msra.mxu0 0.0
        %1810 = vmatprep.subr.mxu0 0.0
        %1811 = vmatpush1.msra.mxu0 0.0
        %1812 = vmatprep.subr.mxu0 0.0
        %1813 = vmatpush1.msra.mxu0 0.0
        %1814 = vmatprep.subr.mxu0 0.0
        %1815 = vmatpush1.msra.mxu0 0.0
        %1816 = vmatprep.subr.mxu0 0.0
        %1817 = vmatpush1.msra.mxu0 0.0
        %1818 = vmatprep.subr.mxu0 0.0
        %1819 = vmatpush1.msra.mxu0 0.0
        %1820 = vmatprep.subr.mxu0 0.0
        %1821 = vmatpush1.msra.mxu0 0.0
        %1822 = vmatprep.subr.mxu0 0.0
        %1823 = vmatpush1.msra.mxu0 0.0
        %1824 = vmatprep.subr.mxu0 0.0
        %1825 = vmatpush1.msra.mxu0 0.0
        %1826 = vmatprep.subr.mxu0 0.0
        %1827 = vmatpush1.msra.mxu0 0.0
        %1828 = vmatprep.subr.mxu0 0.0
        %1829 = vmatpush1.msra.mxu0 0.0
        %1830 = vmatprep.subr.mxu0 0.0
        %1831 = vmatpush1.msra.mxu0 0.0
        %1832 = vmatprep.subr.mxu0 0.0
        %1833 = vmatpush1.msra.mxu0 0.0
        %1834 = vmatprep.subr.mxu0 0.0
        %1835 = vmatpush1.msra.mxu0 0.0
        %1836 = vmatprep.subr.mxu0 0.0
        %1837 = vmatpush1.msra.mxu0 0.0
        %1838 = vmatprep.subr.mxu0 0.0
        %1839 = vmatpush1.msra.mxu0 0.0
        %1840 = vmatprep.subr.mxu0 0.0
        %1841 = vmatpush1.msra.mxu0 0.0
        %1842 = vmatprep.subr.mxu0 0.0
        %1843 = vmatpush1.msra.mxu0 0.0
        %1844 = vmatprep.subr.mxu0 0.0
        %1845 = vmatpush1.msra.mxu0 0.0
        %1846 = vmatprep.subr.mxu0 0.0
        %1847 = vmatpush1.msra.mxu0 0.0
        %1848 = vmatprep.subr.mxu0 0.0
        %1849 = vmatpush1.msra.mxu0 0.0
        %1850 = vmatprep.mubr.f32.mxu0 0.0
        %1851 = vmatmul.mubr.f32.gmra.mrb[0].mxu0 %v1241
        %v1852 = vpop.f32.mrb[0].mxu0
        %v1853 = vadd.f32 %v1222, %v1852
        %v1854 = vpop.f32.mrb[0].mxu0
        %v1855 = vadd.f32 %v1222, %v1854
        %1856 = vmatprep.mubr.f32.mxu0 0.0
        %1857 = vmatmul.mubr.f32.gmra.mrb[0].mxu0 %v1244
        %v1858 = vpop.f32.mrb[0].mxu0
        %v1859 = vadd.f32 %v1227, %v1858
        %v1860 = vpop.f32.mrb[0].mxu0
        %v1861 = vadd.f32 %v1227, %v1860
        %1862 = vmatprep.mubr.f32.mxu0 0.0
        %1863 = vmatmul.mubr.f32.gmra.mrb[0].mxu0 %v1247
        %v1864 = vpop.f32.mrb[0].mxu0
        %v1865 = vadd.f32 %v1232, %v1864
        %v1866 = vpop.f32.mrb[0].mxu0
        %v1867 = vadd.f32 %v1232, %v1866
        %1868 = vmatprep.mubr.f32.mxu0 0.0
        %1869 = vmatmul.mubr.f32.gmra.mrb[0].mxu0 %v1250
        %v1870 = vpop.f32.mrb[0].mxu0
        %v1871 = vadd.f32 %v1237, %v1870
        %v1872 = vpop.f32.mrb[0].mxu0
        %v1873 = vadd.f32 %v1237, %v1872
        %1874 = vdwg.mxu0
        %1875 = vmatprep.subr.mxu0 %v1162
        %1876 = vmatpush1.msra.mxu0 %v1161
        %1877 = vmatprep.subr.mxu0 %v1178
        %1878 = vmatpush1.msra.mxu0 %v1177
        %1879 = vmatprep.subr.mxu0 %v1194
        %1880 = vmatpush1.msra.mxu0 %v1193
        %1881 = vmatprep.subr.mxu0 %v1210
        %1882 = vmatpush1.msra.mxu0 %v1209
        %1883 = vmatprep.subr.mxu0 0.0
        %1884 = vmatpush1.msra.mxu0 0.0
        %1885 = vmatprep.subr.mxu0 0.0
        %1886 = vmatpush1.msra.mxu0 0.0
        %1887 = vmatprep.subr.mxu0 0.0
        %1888 = vmatpush1.msra.mxu0 0.0
        %1889 = vmatprep.subr.mxu0 0.0
        %1890 = vmatpush1.msra.mxu0 0.0
        %1891 = vmatprep.subr.mxu0 0.0
        %1892 = vmatpush1.msra.mxu0 0.0
        %1893 = vmatprep.subr.mxu0 0.0
        %1894 = vmatpush1.msra.mxu0 0.0
        %1895 = vmatprep.subr.mxu0 0.0
        %1896 = vmatpush1.msra.mxu0 0.0
        %1897 = vmatprep.subr.mxu0 0.0
        %1898 = vmatpush1.msra.mxu0 0.0
        %1899 = vmatprep.subr.mxu0 0.0
        %1900 = vmatpush1.msra.mxu0 0.0
        %1901 = vmatprep.subr.mxu0 0.0
        %1902 = vmatpush1.msra.mxu0 0.0
        %1903 = vmatprep.subr.mxu0 0.0
        %1904 = vmatpush1.msra.mxu0 0.0
        %1905 = vmatprep.subr.mxu0 0.0
        %1906 = vmatpush1.msra.mxu0 0.0
        %1907 = vmatprep.subr.mxu0 0.0
        %1908 = vmatpush1.msra.mxu0 0.0
        %1909 = vmatprep.subr.mxu0 0.0
        %1910 = vmatpush1.msra.mxu0 0.0
        %1911 = vmatprep.subr.mxu0 0.0
        %1912 = vmatpush1.msra.mxu0 0.0
        %1913 = vmatprep.subr.mxu0 0.0
        %1914 = vmatpush1.msra.mxu0 0.0
        %1915 = vmatprep.subr.mxu0 0.0
        %1916 = vmatpush1.msra.mxu0 0.0
        %1917 = vmatprep.subr.mxu0 0.0
        %1918 = vmatpush1.msra.mxu0 0.0
        %1919 = vmatprep.subr.mxu0 0.0
        %1920 = vmatpush1.msra.mxu0 0.0
        %1921 = vmatprep.subr.mxu0 0.0
        %1922 = vmatpush1.msra.mxu0 0.0
        %1923 = vmatprep.subr.mxu0 0.0
        %1924 = vmatpush1.msra.mxu0 0.0
        %1925 = vmatprep.subr.mxu0 0.0
        %1926 = vmatpush1.msra.mxu0 0.0
        %1927 = vmatprep.subr.mxu0 0.0
        %1928 = vmatpush1.msra.mxu0 0.0
        %1929 = vmatprep.subr.mxu0 0.0
        %1930 = vmatpush1.msra.mxu0 0.0
        %1931 = vmatprep.subr.mxu0 0.0
        %1932 = vmatpush1.msra.mxu0 0.0
        %1933 = vmatprep.subr.mxu0 0.0
        %1934 = vmatpush1.msra.mxu0 0.0
        %1935 = vmatprep.subr.mxu0 0.0
        %1936 = vmatpush1.msra.mxu0 0.0
        %1937 = vmatprep.subr.mxu0 0.0
        %1938 = vmatpush1.msra.mxu0 0.0
        %1939 = vmatprep.mubr.f32.mxu0 0.0
        %1940 = vmatmul.mubr.f32.gmra.mrb[0].mxu0 %v1241
        %v1941 = vpop.f32.mrb[0].mxu0
        %v1942 = vadd.f32 %v1222, %v1941
        %v1943 = vpop.f32.mrb[0].mxu0
        %v1944 = vadd.f32 %v1222, %v1943
        %1945 = vmatprep.mubr.f32.mxu0 0.0
        %1946 = vmatmul.mubr.f32.gmra.mrb[0].mxu0 %v1244
        %v1947 = vpop.f32.mrb[0].mxu0
        %v1948 = vadd.f32 %v1227, %v1947
        %v1949 = vpop.f32.mrb[0].mxu0
        %v1950 = vadd.f32 %v1227, %v1949
        %1951 = vmatprep.mubr.f32.mxu0 0.0
        %1952 = vmatmul.mubr.f32.gmra.mrb[0].mxu0 %v1247
        %v1953 = vpop.f32.mrb[0].mxu0
        %v1954 = vadd.f32 %v1232, %v1953
        %v1955 = vpop.f32.mrb[0].mxu0
        %v1956 = vadd.f32 %v1232, %v1955
        %1957 = vmatprep.mubr.f32.mxu0 0.0
        %1958 = vmatmul.mubr.f32.gmra.mrb[0].mxu0 %v1250
        %v1959 = vpop.f32.mrb[0].mxu0
        %v1960 = vadd.f32 %v1237, %v1959
        %v1961 = vpop.f32.mrb[0].mxu0
        %v1962 = vadd.f32 %v1237, %v1961
        %1963 = vdwg.mxu0
        %v1964 = vmax.f32 %v1319, 0.0
        %v1965 = vmax.f32 %v1321, 0.0
        %v1966 = vmax.f32 %v1408, 0.0
        %v1967 = vmax.f32 %v1410, 0.0
        %v1968 = vmax.f32 %v1497, 0.0
        %v1969 = vmax.f32 %v1499, 0.0
        %v1970 = vmax.f32 %v1586, 0.0
        %v1971 = vmax.f32 %v1588, 0.0
        %v1972 = vmax.f32 %v1675, 0.0
        %v1973 = vmax.f32 %v1677, 0.0
        %v1974 = vmax.f32 %v1764, 0.0
        %v1975 = vmax.f32 %v1766, 0.0
        %v1976 = vmax.f32 %v1853, 0.0
        %v1977 = vmax.f32 %v1855, 0.0
        %v1978 = vmax.f32 %v1942, 0.0
        %v1979 = vmax.f32 %v1944, 0.0
        %v1980 = vmax.f32 %v1325, 0.0
        %v1981 = vmax.f32 %v1327, 0.0
        %v1982 = vmax.f32 %v1414, 0.0
        %v1983 = vmax.f32 %v1416, 0.0
        %v1984 = vmax.f32 %v1503, 0.0
        %v1985 = vmax.f32 %v1505, 0.0
        %v1986 = vmax.f32 %v1592, 0.0
        %v1987 = vmax.f32 %v1594, 0.0
        %v1988 = vmax.f32 %v1681, 0.0
        %v1989 = vmax.f32 %v1683, 0.0
        %v1990 = vmax.f32 %v1770, 0.0
        %v1991 = vmax.f32 %v1772, 0.0
        %v1992 = vmax.f32 %v1859, 0.0
        %v1993 = vmax.f32 %v1861, 0.0
        %v1994 = vmax.f32 %v1948, 0.0
        %v1995 = vmax.f32 %v1950, 0.0
        %v1996 = vmax.f32 %v1331, 0.0
        %v1997 = vmax.f32 %v1333, 0.0
        %v1998 = vmax.f32 %v1420, 0.0
        %v1999 = vmax.f32 %v1422, 0.0
        %v2000 = vmax.f32 %v1509, 0.0
        %v2001 = vmax.f32 %v1511, 0.0
        %v2002 = vmax.f32 %v1598, 0.0
        %v2003 = vmax.f32 %v1600, 0.0
        %v2004 = vmax.f32 %v1687, 0.0
        %v2005 = vmax.f32 %v1689, 0.0
        %v2006 = vmax.f32 %v1776, 0.0
        %v2007 = vmax.f32 %v1778, 0.0
        %v2008 = vmax.f32 %v1865, 0.0
        %v2009 = vmax.f32 %v1867, 0.0
        %v2010 = vmax.f32 %v1954, 0.0
        %v2011 = vmax.f32 %v1956, 0.0
        %v2012 = vmax.f32 %v1337, 0.0
        %v2013 = vmax.f32 %v1339, 0.0
        %v2014 = vmax.f32 %v1426, 0.0
        %v2015 = vmax.f32 %v1428, 0.0
        %v2016 = vmax.f32 %v1515, 0.0
        %v2017 = vmax.f32 %v1517, 0.0
        %v2018 = vmax.f32 %v1604, 0.0
        %v2019 = vmax.f32 %v1606, 0.0
        %v2020 = vmax.f32 %v1693, 0.0
        %v2021 = vmax.f32 %v1695, 0.0
        %v2022 = vmax.f32 %v1782, 0.0
        %v2023 = vmax.f32 %v1784, 0.0
        %v2024 = vmax.f32 %v1871, 0.0
        %v2025 = vmax.f32 %v1873, 0.0
        %v2026 = vmax.f32 %v1960, 0.0
        %v2027 = vmax.f32 %v1962, 0.0
        %v2028 = vadd.f32 %v1964, %v378
        %v2029 = vadd.f32 %v1965, %v379
        %v2030 = vadd.f32 %v1966, %v380
        %v2031 = vadd.f32 %v1967, %v381
        %v2032 = vadd.f32 %v1968, %v382
        %v2033 = vadd.f32 %v1969, %v383
        %v2034 = vadd.f32 %v1970, %v384
        %v2035 = vadd.f32 %v1971, %v385
        %v2036 = vadd.f32 %v1972, %v386
        %v2037 = vadd.f32 %v1973, %v387
        %v2038 = vadd.f32 %v1974, %v388
        %v2039 = vadd.f32 %v1975, %v389
        %v2040 = vadd.f32 %v1976, %v390
        %v2041 = vadd.f32 %v1977, %v391
        %v2042 = vadd.f32 %v1978, %v392
        %v2043 = vadd.f32 %v1979, %v393
        %v2044 = vadd.f32 %v1980, 0.0
        %v2045 = vadd.f32 %v1981, 0.0
        %v2046 = vadd.f32 %v1982, 0.0
        %v2047 = vadd.f32 %v1983, 0.0
        %v2048 = vadd.f32 %v1984, 0.0
        %v2049 = vadd.f32 %v1985, 0.0
        %v2050 = vadd.f32 %v1986, 0.0
        %v2051 = vadd.f32 %v1987, 0.0
        %v2052 = vadd.f32 %v1988, 0.0
        %v2053 = vadd.f32 %v1989, 0.0
        %v2054 = vadd.f32 %v1990, 0.0
        %v2055 = vadd.f32 %v1991, 0.0
        %v2056 = vadd.f32 %v1992, 0.0
        %v2057 = vadd.f32 %v1993, 0.0
        %v2058 = vadd.f32 %v1994, 0.0
        %v2059 = vadd.f32 %v1995, 0.0
        %v2060 = vadd.f32 %v1996, 0.0
        %v2061 = vadd.f32 %v1997, 0.0
        %v2062 = vadd.f32 %v1998, 0.0
        %v2063 = vadd.f32 %v1999, 0.0
        %v2064 = vadd.f32 %v2000, 0.0
        %v2065 = vadd.f32 %v2001, 0.0
        %v2066 = vadd.f32 %v2002, 0.0
        %v2067 = vadd.f32 %v2003, 0.0
        %v2068 = vadd.f32 %v2004, 0.0
        %v2069 = vadd.f32 %v2005, 0.0
        %v2070 = vadd.f32 %v2006, 0.0
        %v2071 = vadd.f32 %v2007, 0.0
        %v2072 = vadd.f32 %v2008, 0.0
        %v2073 = vadd.f32 %v2009, 0.0
        %v2074 = vadd.f32 %v2010, 0.0
        %v2075 = vadd.f32 %v2011, 0.0
        %v2076 = vadd.f32 %v2012, 0.0
        %v2077 = vadd.f32 %v2013, 0.0
        %v2078 = vadd.f32 %v2014, 0.0
        %v2079 = vadd.f32 %v2015, 0.0
        %v2080 = vadd.f32 %v2016, 0.0
        %v2081 = vadd.f32 %v2017, 0.0
        %v2082 = vadd.f32 %v2018, 0.0
        %v2083 = vadd.f32 %v2019, 0.0
        %v2084 = vadd.f32 %v2020, 0.0
        %v2085 = vadd.f32 %v2021, 0.0
        %v2086 = vadd.f32 %v2022, 0.0
        %v2087 = vadd.f32 %v2023, 0.0
        %v2088 = vadd.f32 %v2024, 0.0
        %v2089 = vadd.f32 %v2025, 0.0
        %v2090 = vadd.f32 %v2026, 0.0
        %v2091 = vadd.f32 %v2027, 0.0
        %v2092 = vld [vmem:[%s5] sm:$0xff]
        %v2093 = vld [vmem:[%s5 + $0x8] sm:$0xff]
        %v2094 = vld [vmem:[%s5 + $0x10] sm:$0xff]
        %v2095 = vld [vmem:[%s5 + $0x18] sm:$0xff]
        %v2096 = vld [vmem:[%s6] sm:$0xff]
        %v2097 = vld [vmem:[%s6 + $0x8] sm:$0xff]
        %v2098 = vld [vmem:[%s6 + $0x10] sm:$0xff]
        %v2099 = vld [vmem:[%s6 + $0x18] sm:$0xff]
        %2101 = vset.pattern.permute.xlu0 0
        %2102 = vperm.xlu0 %2101, %v2096
        %v2103 = vpop.permute.xlu0 %2102
        %2106 = vset.pattern.permute.xlu0 0
        %2107 = vperm.xlu0 %2106, %v2097
        %v2108 = vpop.permute.xlu0 %2107
        %2111 = vset.pattern.permute.xlu0 0
        %2112 = vperm.xlu0 %2111, %v2098
        %v2113 = vpop.permute.xlu0 %2112
        %2116 = vset.pattern.permute.xlu0 0
        %2117 = vperm.xlu0 %2116, %v2099
        %v2118 = vpop.permute.xlu0 %2117
        %v2121 = vsel %vm1239, %v2092, 0
        %v2124 = vsel %vm1239, %v2093, 0
        %v2127 = vsel %vm1239, %v2094, 0
        %v2130 = vsel %vm1239, %v2095, 0
        %2132 = vmatprep.subr.mxu0 %v2029
        %2133 = vmatpush1.msra.mxu0 %v2028
        %2134 = vmatprep.subr.mxu0 %v2045
        %2135 = vmatpush1.msra.mxu0 %v2044
        %2136 = vmatprep.subr.mxu0 %v2061
        %2137 = vmatpush1.msra.mxu0 %v2060
        %2138 = vmatprep.subr.mxu0 %v2077
        %2139 = vmatpush1.msra.mxu0 %v2076
        %2140 = vmatprep.subr.mxu0 0.0
        %2141 = vmatpush1.msra.mxu0 0.0
        %2142 = vmatprep.subr.mxu0 0.0
        %2143 = vmatpush1.msra.mxu0 0.0
        %2144 = vmatprep.subr.mxu0 0.0
        %2145 = vmatpush1.msra.mxu0 0.0
        %2146 = vmatprep.subr.mxu0 0.0
        %2147 = vmatpush1.msra.mxu0 0.0
        %2148 = vmatprep.subr.mxu0 0.0
        %2149 = vmatpush1.msra.mxu0 0.0
        %2150 = vmatprep.subr.mxu0 0.0
        %2151 = vmatpush1.msra.mxu0 0.0
        %2152 = vmatprep.subr.mxu0 0.0
        %2153 = vmatpush1.msra.mxu0 0.0
        %2154 = vmatprep.subr.mxu0 0.0
        %2155 = vmatpush1.msra.mxu0 0.0
        %2156 = vmatprep.subr.mxu0 0.0
        %2157 = vmatpush1.msra.mxu0 0.0
        %2158 = vmatprep.subr.mxu0 0.0
        %2159 = vmatpush1.msra.mxu0 0.0
        %2160 = vmatprep.subr.mxu0 0.0
        %2161 = vmatpush1.msra.mxu0 0.0
        %2162 = vmatprep.subr.mxu0 0.0
        %2163 = vmatpush1.msra.mxu0 0.0
        %2164 = vmatprep.subr.mxu0 0.0
        %2165 = vmatpush1.msra.mxu0 0.0
        %2166 = vmatprep.subr.mxu0 0.0
        %2167 = vmatpush1.msra.mxu0 0.0
        %2168 = vmatprep.subr.mxu0 0.0
        %2169 = vmatpush1.msra.mxu0 0.0
        %2170 = vmatprep.subr.mxu0 0.0
        %2171 = vmatpush1.msra.mxu0 0.0
        %2172 = vmatprep.subr.mxu0 0.0
        %2173 = vmatpush1.msra.mxu0 0.0
        %2174 = vmatprep.subr.mxu0 0.0
        %2175 = vmatpush1.msra.mxu0 0.0
        %2176 = vmatprep.subr.mxu0 0.0
        %2177 = vmatpush1.msra.mxu0 0.0
        %2178 = vmatprep.subr.mxu0 0.0
        %2179 = vmatpush1.msra.mxu0 0.0
        %2180 = vmatprep.subr.mxu0 0.0
        %2181 = vmatpush1.msra.mxu0 0.0
        %2182 = vmatprep.subr.mxu0 0.0
        %2183 = vmatpush1.msra.mxu0 0.0
        %2184 = vmatprep.subr.mxu0 0.0
        %2185 = vmatpush1.msra.mxu0 0.0
        %2186 = vmatprep.subr.mxu0 0.0
        %2187 = vmatpush1.msra.mxu0 0.0
        %2188 = vmatprep.subr.mxu0 0.0
        %2189 = vmatpush1.msra.mxu0 0.0
        %2190 = vmatprep.subr.mxu0 0.0
        %2191 = vmatpush1.msra.mxu0 0.0
        %2192 = vmatprep.subr.mxu0 0.0
        %2193 = vmatpush1.msra.mxu0 0.0
        %2194 = vmatprep.subr.mxu0 0.0
        %2195 = vmatpush1.msra.mxu0 0.0
        %2196 = vmatprep.mubr.f32.mxu0 0.0
        %2197 = vmatmul.mubr.f32.gmra.mrb[0].mxu0 %v2121
        %v2198 = vpop.f32.mrb[0].mxu0
        %v2199 = vadd.f32 %v2103, %v2198
        %v2200 = vpop.f32.mrb[0].mxu0
        %v2201 = vadd.f32 %v2103, %v2200
        %2202 = vmatprep.mubr.f32.mxu0 0.0
        %2203 = vmatmul.mubr.f32.gmra.mrb[0].mxu0 %v2124
        %v2204 = vpop.f32.mrb[0].mxu0
        %v2205 = vadd.f32 %v2108, %v2204
        %v2206 = vpop.f32.mrb[0].mxu0
        %v2207 = vadd.f32 %v2108, %v2206
        %2208 = vmatprep.mubr.f32.mxu0 0.0
        %2209 = vmatmul.mubr.f32.gmra.mrb[0].mxu0 %v2127
        %v2210 = vpop.f32.mrb[0].mxu0
        %v2211 = vadd.f32 %v2113, %v2210
        %v2212 = vpop.f32.mrb[0].mxu0
        %v2213 = vadd.f32 %v2113, %v2212
        %2214 = vmatprep.mubr.f32.mxu0 0.0
        %2215 = vmatmul.mubr.f32.gmra.mrb[0].mxu0 %v2130
        %v2216 = vpop.f32.mrb[0].mxu0
        %v2217 = vadd.f32 %v2118, %v2216
        %v2218 = vpop.f32.mrb[0].mxu0
        %v2219 = vadd.f32 %v2118, %v2218
        %2220 = vdwg.mxu0
        %2221 = vmatprep.subr.mxu0 %v2031
        %2222 = vmatpush1.msra.mxu0 %v2030
        %2223 = vmatprep.subr.mxu0 %v2047
        %2224 = vmatpush1.msra.mxu0 %v2046
        %2225 = vmatprep.subr.mxu0 %v2063
        %2226 = vmatpush1.msra.mxu0 %v2062
        %2227 = vmatprep.subr.mxu0 %v2079
        %2228 = vmatpush1.msra.mxu0 %v2078
        %2229 = vmatprep.subr.mxu0 0.0
        %2230 = vmatpush1.msra.mxu0 0.0
        %2231 = vmatprep.subr.mxu0 0.0
        %2232 = vmatpush1.msra.mxu0 0.0
        %2233 = vmatprep.subr.mxu0 0.0
        %2234 = vmatpush1.msra.mxu0 0.0
        %2235 = vmatprep.subr.mxu0 0.0
        %2236 = vmatpush1.msra.mxu0 0.0
        %2237 = vmatprep.subr.mxu0 0.0
        %2238 = vmatpush1.msra.mxu0 0.0
        %2239 = vmatprep.subr.mxu0 0.0
        %2240 = vmatpush1.msra.mxu0 0.0
        %2241 = vmatprep.subr.mxu0 0.0
        %2242 = vmatpush1.msra.mxu0 0.0
        %2243 = vmatprep.subr.mxu0 0.0
        %2244 = vmatpush1.msra.mxu0 0.0
        %2245 = vmatprep.subr.mxu0 0.0
        %2246 = vmatpush1.msra.mxu0 0.0
        %2247 = vmatprep.subr.mxu0 0.0
        %2248 = vmatpush1.msra.mxu0 0.0
        %2249 = vmatprep.subr.mxu0 0.0
        %2250 = vmatpush1.msra.mxu0 0.0
        %2251 = vmatprep.subr.mxu0 0.0
        %2252 = vmatpush1.msra.mxu0 0.0
        %2253 = vmatprep.subr.mxu0 0.0
        %2254 = vmatpush1.msra.mxu0 0.0
        %2255 = vmatprep.subr.mxu0 0.0
        %2256 = vmatpush1.msra.mxu0 0.0
        %2257 = vmatprep.subr.mxu0 0.0
        %2258 = vmatpush1.msra.mxu0 0.0
        %2259 = vmatprep.subr.mxu0 0.0
        %2260 = vmatpush1.msra.mxu0 0.0
        %2261 = vmatprep.subr.mxu0 0.0
        %2262 = vmatpush1.msra.mxu0 0.0
        %2263 = vmatprep.subr.mxu0 0.0
        %2264 = vmatpush1.msra.mxu0 0.0
        %2265 = vmatprep.subr.mxu0 0.0
        %2266 = vmatpush1.msra.mxu0 0.0
        %2267 = vmatprep.subr.mxu0 0.0
        %2268 = vmatpush1.msra.mxu0 0.0
        %2269 = vmatprep.subr.mxu0 0.0
        %2270 = vmatpush1.msra.mxu0 0.0
        %2271 = vmatprep.subr.mxu0 0.0
        %2272 = vmatpush1.msra.mxu0 0.0
        %2273 = vmatprep.subr.mxu0 0.0
        %2274 = vmatpush1.msra.mxu0 0.0
        %2275 = vmatprep.subr.mxu0 0.0
        %2276 = vmatpush1.msra.mxu0 0.0
        %2277 = vmatprep.subr.mxu0 0.0
        %2278 = vmatpush1.msra.mxu0 0.0
        %2279 = vmatprep.subr.mxu0 0.0
        %2280 = vmatpush1.msra.mxu0 0.0
        %2281 = vmatprep.subr.mxu0 0.0
        %2282 = vmatpush1.msra.mxu0 0.0
        %2283 = vmatprep.subr.mxu0 0.0
        %2284 = vmatpush1.msra.mxu0 0.0
        %2285 = vmatprep.mubr.f32.mxu0 0.0
        %2286 = vmatmul.mubr.f32.gmra.mrb[0].mxu0 %v2121
        %v2287 = vpop.f32.mrb[0].mxu0
        %v2288 = vadd.f32 %v2103, %v2287
        %v2289 = vpop.f32.mrb[0].mxu0
        %v2290 = vadd.f32 %v2103, %v2289
        %2291 = vmatprep.mubr.f32.mxu0 0.0
        %2292 = vmatmul.mubr.f32.gmra.mrb[0].mxu0 %v2124
        %v2293 = vpop.f32.mrb[0].mxu0
        %v2294 = vadd.f32 %v2108, %v2293
        %v2295 = vpop.f32.mrb[0].mxu0
        %v2296 = vadd.f32 %v2108, %v2295
        %2297 = vmatprep.mubr.f32.mxu0 0.0
        %2298 = vmatmul.mubr.f32.gmra.mrb[0].mxu0 %v2127
        %v2299 = vpop.f32.mrb[0].mxu0
        %v2300 = vadd.f32 %v2113, %v2299
        %v2301 = vpop.f32.mrb[0].mxu0
        %v2302 = vadd.f32 %v2113, %v2301
        %2303 = vmatprep.mubr.f32.mxu0 0.0
        %2304 = vmatmul.mubr.f32.gmra.mrb[0].mxu0 %v2130
        %v2305 = vpop.f32.mrb[0].mxu0
        %v2306 = vadd.f32 %v2118, %v2305
        %v2307 = vpop.f32.mrb[0].mxu0
        %v2308 = vadd.f32 %v2118, %v2307
        %2309 = vdwg.mxu0
        %2310 = vmatprep.subr.mxu0 %v2033
        %2311 = vmatpush1.msra.mxu0 %v2032
        %2312 = vmatprep.subr.mxu0 %v2049
        %2313 = vmatpush1.msra.mxu0 %v2048
        %2314 = vmatprep.subr.mxu0 %v2065
        %2315 = vmatpush1.msra.mxu0 %v2064
        %2316 = vmatprep.subr.mxu0 %v2081
        %2317 = vmatpush1.msra.mxu0 %v2080
        %2318 = vmatprep.subr.mxu0 0.0
        %2319 = vmatpush1.msra.mxu0 0.0
        %2320 = vmatprep.subr.mxu0 0.0
        %2321 = vmatpush1.msra.mxu0 0.0
        %2322 = vmatprep.subr.mxu0 0.0
        %2323 = vmatpush1.msra.mxu0 0.0
        %2324 = vmatprep.subr.mxu0 0.0
        %2325 = vmatpush1.msra.mxu0 0.0
        %2326 = vmatprep.subr.mxu0 0.0
        %2327 = vmatpush1.msra.mxu0 0.0
        %2328 = vmatprep.subr.mxu0 0.0
        %2329 = vmatpush1.msra.mxu0 0.0
        %2330 = vmatprep.subr.mxu0 0.0
        %2331 = vmatpush1.msra.mxu0 0.0
        %2332 = vmatprep.subr.mxu0 0.0
        %2333 = vmatpush1.msra.mxu0 0.0
        %2334 = vmatprep.subr.mxu0 0.0
        %2335 = vmatpush1.msra.mxu0 0.0
        %2336 = vmatprep.subr.mxu0 0.0
        %2337 = vmatpush1.msra.mxu0 0.0
        %2338 = vmatprep.subr.mxu0 0.0
        %2339 = vmatpush1.msra.mxu0 0.0
        %2340 = vmatprep.subr.mxu0 0.0
        %2341 = vmatpush1.msra.mxu0 0.0
        %2342 = vmatprep.subr.mxu0 0.0
        %2343 = vmatpush1.msra.mxu0 0.0
        %2344 = vmatprep.subr.mxu0 0.0
        %2345 = vmatpush1.msra.mxu0 0.0
        %2346 = vmatprep.subr.mxu0 0.0
        %2347 = vmatpush1.msra.mxu0 0.0
        %2348 = vmatprep.subr.mxu0 0.0
        %2349 = vmatpush1.msra.mxu0 0.0
        %2350 = vmatprep.subr.mxu0 0.0
        %2351 = vmatpush1.msra.mxu0 0.0
        %2352 = vmatprep.subr.mxu0 0.0
        %2353 = vmatpush1.msra.mxu0 0.0
        %2354 = vmatprep.subr.mxu0 0.0
        %2355 = vmatpush1.msra.mxu0 0.0
        %2356 = vmatprep.subr.mxu0 0.0
        %2357 = vmatpush1.msra.mxu0 0.0
        %2358 = vmatprep.subr.mxu0 0.0
        %2359 = vmatpush1.msra.mxu0 0.0
        %2360 = vmatprep.subr.mxu0 0.0
        %2361 = vmatpush1.msra.mxu0 0.0
        %2362 = vmatprep.subr.mxu0 0.0
        %2363 = vmatpush1.msra.mxu0 0.0
        %2364 = vmatprep.subr.mxu0 0.0
        %2365 = vmatpush1.msra.mxu0 0.0
        %2366 = vmatprep.subr.mxu0 0.0
        %2367 = vmatpush1.msra.mxu0 0.0
        %2368 = vmatprep.subr.mxu0 0.0
        %2369 = vmatpush1.msra.mxu0 0.0
        %2370 = vmatprep.subr.mxu0 0.0
        %2371 = vmatpush1.msra.mxu0 0.0
        %2372 = vmatprep.subr.mxu0 0.0
        %2373 = vmatpush1.msra.mxu0 0.0
        %2374 = vmatprep.mubr.f32.mxu0 0.0
        %2375 = vmatmul.mubr.f32.gmra.mrb[0].mxu0 %v2121
        %v2376 = vpop.f32.mrb[0].mxu0
        %v2377 = vadd.f32 %v2103, %v2376
        %v2378 = vpop.f32.mrb[0].mxu0
        %v2379 = vadd.f32 %v2103, %v2378
        %2380 = vmatprep.mubr.f32.mxu0 0.0
        %2381 = vmatmul.mubr.f32.gmra.mrb[0].mxu0 %v2124
        %v2382 = vpop.f32.mrb[0].mxu0
        %v2383 = vadd.f32 %v2108, %v2382
        %v2384 = vpop.f32.mrb[0].mxu0
        %v2385 = vadd.f32 %v2108, %v2384
        %2386 = vmatprep.mubr.f32.mxu0 0.0
        %2387 = vmatmul.mubr.f32.gmra.mrb[0].mxu0 %v2127
        %v2388 = vpop.f32.mrb[0].mxu0
        %v2389 = vadd.f32 %v2113, %v2388
        %v2390 = vpop.f32.mrb[0].mxu0
        %v2391 = vadd.f32 %v2113, %v2390
        %2392 = vmatprep.mubr.f32.mxu0 0.0
        %2393 = vmatmul.mubr.f32.gmra.mrb[0].mxu0 %v2130
        %v2394 = vpop.f32.mrb[0].mxu0
        %v2395 = vadd.f32 %v2118, %v2394
        %v2396 = vpop.f32.mrb[0].mxu0
        %v2397 = vadd.f32 %v2118, %v2396
        %2398 = vdwg.mxu0
        %2399 = vmatprep.subr.mxu0 %v2035
        %2400 = vmatpush1.msra.mxu0 %v2034
        %2401 = vmatprep.subr.mxu0 %v2051
        %2402 = vmatpush1.msra.mxu0 %v2050
        %2403 = vmatprep.subr.mxu0 %v2067
        %2404 = vmatpush1.msra.mxu0 %v2066
        %2405 = vmatprep.subr.mxu0 %v2083
        %2406 = vmatpush1.msra.mxu0 %v2082
        %2407 = vmatprep.subr.mxu0 0.0
        %2408 = vmatpush1.msra.mxu0 0.0
        %2409 = vmatprep.subr.mxu0 0.0
        %2410 = vmatpush1.msra.mxu0 0.0
        %2411 = vmatprep.subr.mxu0 0.0
        %2412 = vmatpush1.msra.mxu0 0.0
        %2413 = vmatprep.subr.mxu0 0.0
        %2414 = vmatpush1.msra.mxu0 0.0
        %2415 = vmatprep.subr.mxu0 0.0
        %2416 = vmatpush1.msra.mxu0 0.0
        %2417 = vmatprep.subr.mxu0 0.0
        %2418 = vmatpush1.msra.mxu0 0.0
        %2419 = vmatprep.subr.mxu0 0.0
        %2420 = vmatpush1.msra.mxu0 0.0
        %2421 = vmatprep.subr.mxu0 0.0
        %2422 = vmatpush1.msra.mxu0 0.0
        %2423 = vmatprep.subr.mxu0 0.0
        %2424 = vmatpush1.msra.mxu0 0.0
        %2425 = vmatprep.subr.mxu0 0.0
        %2426 = vmatpush1.msra.mxu0 0.0
        %2427 = vmatprep.subr.mxu0 0.0
        %2428 = vmatpush1.msra.mxu0 0.0
        %2429 = vmatprep.subr.mxu0 0.0
        %2430 = vmatpush1.msra.mxu0 0.0
        %2431 = vmatprep.subr.mxu0 0.0
        %2432 = vmatpush1.msra.mxu0 0.0
        %2433 = vmatprep.subr.mxu0 0.0
        %2434 = vmatpush1.msra.mxu0 0.0
        %2435 = vmatprep.subr.mxu0 0.0
        %2436 = vmatpush1.msra.mxu0 0.0
        %2437 = vmatprep.subr.mxu0 0.0
        %2438 = vmatpush1.msra.mxu0 0.0
        %2439 = vmatprep.subr.mxu0 0.0
        %2440 = vmatpush1.msra.mxu0 0.0
        %2441 = vmatprep.subr.mxu0 0.0
        %2442 = vmatpush1.msra.mxu0 0.0
        %2443 = vmatprep.subr.mxu0 0.0
        %2444 = vmatpush1.msra.mxu0 0.0
        %2445 = vmatprep.subr.mxu0 0.0
        %2446 = vmatpush1.msra.mxu0 0.0
        %2447 = vmatprep.subr.mxu0 0.0
        %2448 = vmatpush1.msra.mxu0 0.0
        %2449 = vmatprep.subr.mxu0 0.0
        %2450 = vmatpush1.msra.mxu0 0.0
        %2451 = vmatprep.subr.mxu0 0.0
        %2452 = vmatpush1.msra.mxu0 0.0
        %2453 = vmatprep.subr.mxu0 0.0
        %2454 = vmatpush1.msra.mxu0 0.0
        %2455 = vmatprep.subr.mxu0 0.0
        %2456 = vmatpush1.msra.mxu0 0.0
        %2457 = vmatprep.subr.mxu0 0.0
        %2458 = vmatpush1.msra.mxu0 0.0
        %2459 = vmatprep.subr.mxu0 0.0
        %2460 = vmatpush1.msra.mxu0 0.0
        %2461 = vmatprep.subr.mxu0 0.0
        %2462 = vmatpush1.msra.mxu0 0.0
        %2463 = vmatprep.mubr.f32.mxu0 0.0
        %2464 = vmatmul.mubr.f32.gmra.mrb[0].mxu0 %v2121
        %v2465 = vpop.f32.mrb[0].mxu0
        %v2466 = vadd.f32 %v2103, %v2465
        %v2467 = vpop.f32.mrb[0].mxu0
        %v2468 = vadd.f32 %v2103, %v2467
        %2469 = vmatprep.mubr.f32.mxu0 0.0
        %2470 = vmatmul.mubr.f32.gmra.mrb[0].mxu0 %v2124
        %v2471 = vpop.f32.mrb[0].mxu0
        %v2472 = vadd.f32 %v2108, %v2471
        %v2473 = vpop.f32.mrb[0].mxu0
        %v2474 = vadd.f32 %v2108, %v2473
        %2475 = vmatprep.mubr.f32.mxu0 0.0
        %2476 = vmatmul.mubr.f32.gmra.mrb[0].mxu0 %v2127
        %v2477 = vpop.f32.mrb[0].mxu0
        %v2478 = vadd.f32 %v2113, %v2477
        %v2479 = vpop.f32.mrb[0].mxu0
        %v2480 = vadd.f32 %v2113, %v2479
        %2481 = vmatprep.mubr.f32.mxu0 0.0
        %2482 = vmatmul.mubr.f32.gmra.mrb[0].mxu0 %v2130
        %v2483 = vpop.f32.mrb[0].mxu0
        %v2484 = vadd.f32 %v2118, %v2483
        %v2485 = vpop.f32.mrb[0].mxu0
        %v2486 = vadd.f32 %v2118, %v2485
        %2487 = vdwg.mxu0
        %2488 = vmatprep.subr.mxu0 %v2037
        %2489 = vmatpush1.msra.mxu0 %v2036
        %2490 = vmatprep.subr.mxu0 %v2053
        %2491 = vmatpush1.msra.mxu0 %v2052
        %2492 = vmatprep.subr.mxu0 %v2069
        %2493 = vmatpush1.msra.mxu0 %v2068
        %2494 = vmatprep.subr.mxu0 %v2085
        %2495 = vmatpush1.msra.mxu0 %v2084
        %2496 = vmatprep.subr.mxu0 0.0
        %2497 = vmatpush1.msra.mxu0 0.0
        %2498 = vmatprep.subr.mxu0 0.0
        %2499 = vmatpush1.msra.mxu0 0.0
        %2500 = vmatprep.subr.mxu0 0.0
        %2501 = vmatpush1.msra.mxu0 0.0
        %2502 = vmatprep.subr.mxu0 0.0
        %2503 = vmatpush1.msra.mxu0 0.0
        %2504 = vmatprep.subr.mxu0 0.0
        %2505 = vmatpush1.msra.mxu0 0.0
        %2506 = vmatprep.subr.mxu0 0.0
        %2507 = vmatpush1.msra.mxu0 0.0
        %2508 = vmatprep.subr.mxu0 0.0
        %2509 = vmatpush1.msra.mxu0 0.0
        %2510 = vmatprep.subr.mxu0 0.0
        %2511 = vmatpush1.msra.mxu0 0.0
        %2512 = vmatprep.subr.mxu0 0.0
        %2513 = vmatpush1.msra.mxu0 0.0
        %2514 = vmatprep.subr.mxu0 0.0
        %2515 = vmatpush1.msra.mxu0 0.0
        %2516 = vmatprep.subr.mxu0 0.0
        %2517 = vmatpush1.msra.mxu0 0.0
        %2518 = vmatprep.subr.mxu0 0.0
        %2519 = vmatpush1.msra.mxu0 0.0
        %2520 = vmatprep.subr.mxu0 0.0
        %2521 = vmatpush1.msra.mxu0 0.0
        %2522 = vmatprep.subr.mxu0 0.0
        %2523 = vmatpush1.msra.mxu0 0.0
        %2524 = vmatprep.subr.mxu0 0.0
        %2525 = vmatpush1.msra.mxu0 0.0
        %2526 = vmatprep.subr.mxu0 0.0
        %2527 = vmatpush1.msra.mxu0 0.0
        %2528 = vmatprep.subr.mxu0 0.0
        %2529 = vmatpush1.msra.mxu0 0.0
        %2530 = vmatprep.subr.mxu0 0.0
        %2531 = vmatpush1.msra.mxu0 0.0
        %2532 = vmatprep.subr.mxu0 0.0
        %2533 = vmatpush1.msra.mxu0 0.0
        %2534 = vmatprep.subr.mxu0 0.0
        %2535 = vmatpush1.msra.mxu0 0.0
        %2536 = vmatprep.subr.mxu0 0.0
        %2537 = vmatpush1.msra.mxu0 0.0
        %2538 = vmatprep.subr.mxu0 0.0
        %2539 = vmatpush1.msra.mxu0 0.0
        %2540 = vmatprep.subr.mxu0 0.0
        %2541 = vmatpush1.msra.mxu0 0.0
        %2542 = vmatprep.subr.mxu0 0.0
        %2543 = vmatpush1.msra.mxu0 0.0
        %2544 = vmatprep.subr.mxu0 0.0
        %2545 = vmatpush1.msra.mxu0 0.0
        %2546 = vmatprep.subr.mxu0 0.0
        %2547 = vmatpush1.msra.mxu0 0.0
        %2548 = vmatprep.subr.mxu0 0.0
        %2549 = vmatpush1.msra.mxu0 0.0
        %2550 = vmatprep.subr.mxu0 0.0
        %2551 = vmatpush1.msra.mxu0 0.0
        %2552 = vmatprep.mubr.f32.mxu0 0.0
        %2553 = vmatmul.mubr.f32.gmra.mrb[0].mxu0 %v2121
        %v2554 = vpop.f32.mrb[0].mxu0
        %v2555 = vadd.f32 %v2103, %v2554
        %v2556 = vpop.f32.mrb[0].mxu0
        %v2557 = vadd.f32 %v2103, %v2556
        %2558 = vmatprep.mubr.f32.mxu0 0.0
        %2559 = vmatmul.mubr.f32.gmra.mrb[0].mxu0 %v2124
        %v2560 = vpop.f32.mrb[0].mxu0
        %v2561 = vadd.f32 %v2108, %v2560
        %v2562 = vpop.f32.mrb[0].mxu0
        %v2563 = vadd.f32 %v2108, %v2562
        %2564 = vmatprep.mubr.f32.mxu0 0.0
        %2565 = vmatmul.mubr.f32.gmra.mrb[0].mxu0 %v2127
        %v2566 = vpop.f32.mrb[0].mxu0
        %v2567 = vadd.f32 %v2113, %v2566
        %v2568 = vpop.f32.mrb[0].mxu0
        %v2569 = vadd.f32 %v2113, %v2568
        %2570 = vmatprep.mubr.f32.mxu0 0.0
        %2571 = vmatmul.mubr.f32.gmra.mrb[0].mxu0 %v2130
        %v2572 = vpop.f32.mrb[0].mxu0
        %v2573 = vadd.f32 %v2118, %v2572
        %v2574 = vpop.f32.mrb[0].mxu0
        %v2575 = vadd.f32 %v2118, %v2574
        %2576 = vdwg.mxu0
        %2577 = vmatprep.subr.mxu0 %v2039
        %2578 = vmatpush1.msra.mxu0 %v2038
        %2579 = vmatprep.subr.mxu0 %v2055
        %2580 = vmatpush1.msra.mxu0 %v2054
        %2581 = vmatprep.subr.mxu0 %v2071
        %2582 = vmatpush1.msra.mxu0 %v2070
        %2583 = vmatprep.subr.mxu0 %v2087
        %2584 = vmatpush1.msra.mxu0 %v2086
        %2585 = vmatprep.subr.mxu0 0.0
        %2586 = vmatpush1.msra.mxu0 0.0
        %2587 = vmatprep.subr.mxu0 0.0
        %2588 = vmatpush1.msra.mxu0 0.0
        %2589 = vmatprep.subr.mxu0 0.0
        %2590 = vmatpush1.msra.mxu0 0.0
        %2591 = vmatprep.subr.mxu0 0.0
        %2592 = vmatpush1.msra.mxu0 0.0
        %2593 = vmatprep.subr.mxu0 0.0
        %2594 = vmatpush1.msra.mxu0 0.0
        %2595 = vmatprep.subr.mxu0 0.0
        %2596 = vmatpush1.msra.mxu0 0.0
        %2597 = vmatprep.subr.mxu0 0.0
        %2598 = vmatpush1.msra.mxu0 0.0
        %2599 = vmatprep.subr.mxu0 0.0
        %2600 = vmatpush1.msra.mxu0 0.0
        %2601 = vmatprep.subr.mxu0 0.0
        %2602 = vmatpush1.msra.mxu0 0.0
        %2603 = vmatprep.subr.mxu0 0.0
        %2604 = vmatpush1.msra.mxu0 0.0
        %2605 = vmatprep.subr.mxu0 0.0
        %2606 = vmatpush1.msra.mxu0 0.0
        %2607 = vmatprep.subr.mxu0 0.0
        %2608 = vmatpush1.msra.mxu0 0.0
        %2609 = vmatprep.subr.mxu0 0.0
        %2610 = vmatpush1.msra.mxu0 0.0
        %2611 = vmatprep.subr.mxu0 0.0
        %2612 = vmatpush1.msra.mxu0 0.0
        %2613 = vmatprep.subr.mxu0 0.0
        %2614 = vmatpush1.msra.mxu0 0.0
        %2615 = vmatprep.subr.mxu0 0.0
        %2616 = vmatpush1.msra.mxu0 0.0
        %2617 = vmatprep.subr.mxu0 0.0
        %2618 = vmatpush1.msra.mxu0 0.0
        %2619 = vmatprep.subr.mxu0 0.0
        %2620 = vmatpush1.msra.mxu0 0.0
        %2621 = vmatprep.subr.mxu0 0.0
        %2622 = vmatpush1.msra.mxu0 0.0
        %2623 = vmatprep.subr.mxu0 0.0
        %2624 = vmatpush1.msra.mxu0 0.0
        %2625 = vmatprep.subr.mxu0 0.0
        %2626 = vmatpush1.msra.mxu0 0.0
        %2627 = vmatprep.subr.mxu0 0.0
        %2628 = vmatpush1.msra.mxu0 0.0
        %2629 = vmatprep.subr.mxu0 0.0
        %2630 = vmatpush1.msra.mxu0 0.0
        %2631 = vmatprep.subr.mxu0 0.0
        %2632 = vmatpush1.msra.mxu0 0.0
        %2633 = vmatprep.subr.mxu0 0.0
        %2634 = vmatpush1.msra.mxu0 0.0
        %2635 = vmatprep.subr.mxu0 0.0
        %2636 = vmatpush1.msra.mxu0 0.0
        %2637 = vmatprep.subr.mxu0 0.0
        %2638 = vmatpush1.msra.mxu0 0.0
        %2639 = vmatprep.subr.mxu0 0.0
        %2640 = vmatpush1.msra.mxu0 0.0
        %2641 = vmatprep.mubr.f32.mxu0 0.0
        %2642 = vmatmul.mubr.f32.gmra.mrb[0].mxu0 %v2121
        %v2643 = vpop.f32.mrb[0].mxu0
        %v2644 = vadd.f32 %v2103, %v2643
        %v2645 = vpop.f32.mrb[0].mxu0
        %v2646 = vadd.f32 %v2103, %v2645
        %2647 = vmatprep.mubr.f32.mxu0 0.0
        %2648 = vmatmul.mubr.f32.gmra.mrb[0].mxu0 %v2124
        %v2649 = vpop.f32.mrb[0].mxu0
        %v2650 = vadd.f32 %v2108, %v2649
        %v2651 = vpop.f32.mrb[0].mxu0
        %v2652 = vadd.f32 %v2108, %v2651
        %2653 = vmatprep.mubr.f32.mxu0 0.0
        %2654 = vmatmul.mubr.f32.gmra.mrb[0].mxu0 %v2127
        %v2655 = vpop.f32.mrb[0].mxu0
        %v2656 = vadd.f32 %v2113, %v2655
        %v2657 = vpop.f32.mrb[0].mxu0
        %v2658 = vadd.f32 %v2113, %v2657
        %2659 = vmatprep.mubr.f32.mxu0 0.0
        %2660 = vmatmul.mubr.f32.gmra.mrb[0].mxu0 %v2130
        %v2661 = vpop.f32.mrb[0].mxu0
        %v2662 = vadd.f32 %v2118, %v2661
        %v2663 = vpop.f32.mrb[0].mxu0
        %v2664 = vadd.f32 %v2118, %v2663
        %2665 = vdwg.mxu0
        %2666 = vmatprep.subr.mxu0 %v2041
        %2667 = vmatpush1.msra.mxu0 %v2040
        %2668 = vmatprep.subr.mxu0 %v2057
        %2669 = vmatpush1.msra.mxu0 %v2056
        %2670 = vmatprep.subr.mxu0 %v2073
        %2671 = vmatpush1.msra.mxu0 %v2072
        %2672 = vmatprep.subr.mxu0 %v2089
        %2673 = vmatpush1.msra.mxu0 %v2088
        %2674 = vmatprep.subr.mxu0 0.0
        %2675 = vmatpush1.msra.mxu0 0.0
        %2676 = vmatprep.subr.mxu0 0.0
        %2677 = vmatpush1.msra.mxu0 0.0
        %2678 = vmatprep.subr.mxu0 0.0
        %2679 = vmatpush1.msra.mxu0 0.0
        %2680 = vmatprep.subr.mxu0 0.0
        %2681 = vmatpush1.msra.mxu0 0.0
        %2682 = vmatprep.subr.mxu0 0.0
        %2683 = vmatpush1.msra.mxu0 0.0
        %2684 = vmatprep.subr.mxu0 0.0
        %2685 = vmatpush1.msra.mxu0 0.0
        %2686 = vmatprep.subr.mxu0 0.0
        %2687 = vmatpush1.msra.mxu0 0.0
        %2688 = vmatprep.subr.mxu0 0.0
        %2689 = vmatpush1.msra.mxu0 0.0
        %2690 = vmatprep.subr.mxu0 0.0
        %2691 = vmatpush1.msra.mxu0 0.0
        %2692 = vmatprep.subr.mxu0 0.0
        %2693 = vmatpush1.msra.mxu0 0.0
        %2694 = vmatprep.subr.mxu0 0.0
        %2695 = vmatpush1.msra.mxu0 0.0
        %2696 = vmatprep.subr.mxu0 0.0
        %2697 = vmatpush1.msra.mxu0 0.0
        %2698 = vmatprep.subr.mxu0 0.0
        %2699 = vmatpush1.msra.mxu0 0.0
        %2700 = vmatprep.subr.mxu0 0.0
        %2701 = vmatpush1.msra.mxu0 0.0
        %2702 = vmatprep.subr.mxu0 0.0
        %2703 = vmatpush1.msra.mxu0 0.0
        %2704 = vmatprep.subr.mxu0 0.0
        %2705 = vmatpush1.msra.mxu0 0.0
        %2706 = vmatprep.subr.mxu0 0.0
        %2707 = vmatpush1.msra.mxu0 0.0
        %2708 = vmatprep.subr.mxu0 0.0
        %2709 = vmatpush1.msra.mxu0 0.0
        %2710 = vmatprep.subr.mxu0 0.0
        %2711 = vmatpush1.msra.mxu0 0.0
        %2712 = vmatprep.subr.mxu0 0.0
        %2713 = vmatpush1.msra.mxu0 0.0
        %2714 = vmatprep.subr.mxu0 0.0
        %2715 = vmatpush1.msra.mxu0 0.0
        %2716 = vmatprep.subr.mxu0 0.0
        %2717 = vmatpush1.msra.mxu0 0.0
        %2718 = vmatprep.subr.mxu0 0.0
        %2719 = vmatpush1.msra.mxu0 0.0
        %2720 = vmatprep.subr.mxu0 0.0
        %2721 = vmatpush1.msra.mxu0 0.0
        %2722 = vmatprep.subr.mxu0 0.0
        %2723 = vmatpush1.msra.mxu0 0.0
        %2724 = vmatprep.subr.mxu0 0.0
        %2725 = vmatpush1.msra.mxu0 0.0
        %2726 = vmatprep.subr.mxu0 0.0
        %2727 = vmatpush1.msra.mxu0 0.0
        %2728 = vmatprep.subr.mxu0 0.0
        %2729 = vmatpush1.msra.mxu0 0.0
        %2730 = vmatprep.mubr.f32.mxu0 0.0
        %2731 = vmatmul.mubr.f32.gmra.mrb[0].mxu0 %v2121
        %v2732 = vpop.f32.mrb[0].mxu0
        %v2733 = vadd.f32 %v2103, %v2732
        %v2734 = vpop.f32.mrb[0].mxu0
        %v2735 = vadd.f32 %v2103, %v2734
        %2736 = vmatprep.mubr.f32.mxu0 0.0
        %2737 = vmatmul.mubr.f32.gmra.mrb[0].mxu0 %v2124
        %v2738 = vpop.f32.mrb[0].mxu0
        %v2739 = vadd.f32 %v2108, %v2738
        %v2740 = vpop.f32.mrb[0].mxu0
        %v2741 = vadd.f32 %v2108, %v2740
        %2742 = vmatprep.mubr.f32.mxu0 0.0
        %2743 = vmatmul.mubr.f32.gmra.mrb[0].mxu0 %v2127
        %v2744 = vpop.f32.mrb[0].mxu0
        %v2745 = vadd.f32 %v2113, %v2744
        %v2746 = vpop.f32.mrb[0].mxu0
        %v2747 = vadd.f32 %v2113, %v2746
        %2748 = vmatprep.mubr.f32.mxu0 0.0
        %2749 = vmatmul.mubr.f32.gmra.mrb[0].mxu0 %v2130
        %v2750 = vpop.f32.mrb[0].mxu0
        %v2751 = vadd.f32 %v2118, %v2750
        %v2752 = vpop.f32.mrb[0].mxu0
        %v2753 = vadd.f32 %v2118, %v2752
        %2754 = vdwg.mxu0
        %2755 = vmatprep.subr.mxu0 %v2043
        %2756 = vmatpush1.msra.mxu0 %v2042
        %2757 = vmatprep.subr.mxu0 %v2059
        %2758 = vmatpush1.msra.mxu0 %v2058
        %2759 = vmatprep.subr.mxu0 %v2075
        %2760 = vmatpush1.msra.mxu0 %v2074
        %2761 = vmatprep.subr.mxu0 %v2091
        %2762 = vmatpush1.msra.mxu0 %v2090
        %2763 = vmatprep.subr.mxu0 0.0
        %2764 = vmatpush1.msra.mxu0 0.0
        %2765 = vmatprep.subr.mxu0 0.0
        %2766 = vmatpush1.msra.mxu0 0.0
        %2767 = vmatprep.subr.mxu0 0.0
        %2768 = vmatpush1.msra.mxu0 0.0
        %2769 = vmatprep.subr.mxu0 0.0
        %2770 = vmatpush1.msra.mxu0 0.0
        %2771 = vmatprep.subr.mxu0 0.0
        %2772 = vmatpush1.msra.mxu0 0.0
        %2773 = vmatprep.subr.mxu0 0.0
        %2774 = vmatpush1.msra.mxu0 0.0
        %2775 = vmatprep.subr.mxu0 0.0
        %2776 = vmatpush1.msra.mxu0 0.0
        %2777 = vmatprep.subr.mxu0 0.0
        %2778 = vmatpush1.msra.mxu0 0.0
        %2779 = vmatprep.subr.mxu0 0.0
        %2780 = vmatpush1.msra.mxu0 0.0
        %2781 = vmatprep.subr.mxu0 0.0
        %2782 = vmatpush1.msra.mxu0 0.0
        %2783 = vmatprep.subr.mxu0 0.0
        %2784 = vmatpush1.msra.mxu0 0.0
        %2785 = vmatprep.subr.mxu0 0.0
        %2786 = vmatpush1.msra.mxu0 0.0
        %2787 = vmatprep.subr.mxu0 0.0
        %2788 = vmatpush1.msra.mxu0 0.0
        %2789 = vmatprep.subr.mxu0 0.0
        %2790 = vmatpush1.msra.mxu0 0.0
        %2791 = vmatprep.subr.mxu0 0.0
        %2792 = vmatpush1.msra.mxu0 0.0
        %2793 = vmatprep.subr.mxu0 0.0
        %2794 = vmatpush1.msra.mxu0 0.0
        %2795 = vmatprep.subr.mxu0 0.0
        %2796 = vmatpush1.msra.mxu0 0.0
        %2797 = vmatprep.subr.mxu0 0.0
        %2798 = vmatpush1.msra.mxu0 0.0
        %2799 = vmatprep.subr.mxu0 0.0
        %2800 = vmatpush1.msra.mxu0 0.0
        %2801 = vmatprep.subr.mxu0 0.0
        %2802 = vmatpush1.msra.mxu0 0.0
        %2803 = vmatprep.subr.mxu0 0.0
        %2804 = vmatpush1.msra.mxu0 0.0
        %2805 = vmatprep.subr.mxu0 0.0
        %2806 = vmatpush1.msra.mxu0 0.0
        %2807 = vmatprep.subr.mxu0 0.0
        %2808 = vmatpush1.msra.mxu0 0.0
        %2809 = vmatprep.subr.mxu0 0.0
        %2810 = vmatpush1.msra.mxu0 0.0
        %2811 = vmatprep.subr.mxu0 0.0
        %2812 = vmatpush1.msra.mxu0 0.0
        %2813 = vmatprep.subr.mxu0 0.0
        %2814 = vmatpush1.msra.mxu0 0.0
        %2815 = vmatprep.subr.mxu0 0.0
        %2816 = vmatpush1.msra.mxu0 0.0
        %2817 = vmatprep.subr.mxu0 0.0
        %2818 = vmatpush1.msra.mxu0 0.0
        %2819 = vmatprep.mubr.f32.mxu0 0.0
        %2820 = vmatmul.mubr.f32.gmra.mrb[0].mxu0 %v2121
        %v2821 = vpop.f32.mrb[0].mxu0
        %v2822 = vadd.f32 %v2103, %v2821
        %v2823 = vpop.f32.mrb[0].mxu0
        %v2824 = vadd.f32 %v2103, %v2823
        %2825 = vmatprep.mubr.f32.mxu0 0.0
        %2826 = vmatmul.mubr.f32.gmra.mrb[0].mxu0 %v2124
        %v2827 = vpop.f32.mrb[0].mxu0
        %v2828 = vadd.f32 %v2108, %v2827
        %v2829 = vpop.f32.mrb[0].mxu0
        %v2830 = vadd.f32 %v2108, %v2829
        %2831 = vmatprep.mubr.f32.mxu0 0.0
        %2832 = vmatmul.mubr.f32.gmra.mrb[0].mxu0 %v2127
        %v2833 = vpop.f32.mrb[0].mxu0
        %v2834 = vadd.f32 %v2113, %v2833
        %v2835 = vpop.f32.mrb[0].mxu0
        %v2836 = vadd.f32 %v2113, %v2835
        %2837 = vmatprep.mubr.f32.mxu0 0.0
        %2838 = vmatmul.mubr.f32.gmra.mrb[0].mxu0 %v2130
        %v2839 = vpop.f32.mrb[0].mxu0
        %v2840 = vadd.f32 %v2118, %v2839
        %v2841 = vpop.f32.mrb[0].mxu0
        %v2842 = vadd.f32 %v2118, %v2841
        %2843 = vdwg.mxu0
        %v2844 = vmax.f32 %v2199, 0.0
        %v2845 = vmax.f32 %v2201, 0.0
        %v2846 = vmax.f32 %v2288, 0.0
        %v2847 = vmax.f32 %v2290, 0.0
        %v2848 = vmax.f32 %v2377, 0.0
        %v2849 = vmax.f32 %v2379, 0.0
        %v2850 = vmax.f32 %v2466, 0.0
        %v2851 = vmax.f32 %v2468, 0.0
        %v2852 = vmax.f32 %v2555, 0.0
        %v2853 = vmax.f32 %v2557, 0.0
        %v2854 = vmax.f32 %v2644, 0.0
        %v2855 = vmax.f32 %v2646, 0.0
        %v2856 = vmax.f32 %v2733, 0.0
        %v2857 = vmax.f32 %v2735, 0.0
        %v2858 = vmax.f32 %v2822, 0.0
        %v2859 = vmax.f32 %v2824, 0.0
        %v2860 = vmax.f32 %v2205, 0.0
        %v2861 = vmax.f32 %v2207, 0.0
        %v2862 = vmax.f32 %v2294, 0.0
        %v2863 = vmax.f32 %v2296, 0.0
        %v2864 = vmax.f32 %v2383, 0.0
        %v2865 = vmax.f32 %v2385, 0.0
        %v2866 = vmax.f32 %v2472, 0.0
        %v2867 = vmax.f32 %v2474, 0.0
        %v2868 = vmax.f32 %v2561, 0.0
        %v2869 = vmax.f32 %v2563, 0.0
        %v2870 = vmax.f32 %v2650, 0.0
        %v2871 = vmax.f32 %v2652, 0.0
        %v2872 = vmax.f32 %v2739, 0.0
        %v2873 = vmax.f32 %v2741, 0.0
        %v2874 = vmax.f32 %v2828, 0.0
        %v2875 = vmax.f32 %v2830, 0.0
        %v2876 = vmax.f32 %v2211, 0.0
        %v2877 = vmax.f32 %v2213, 0.0
        %v2878 = vmax.f32 %v2300, 0.0
        %v2879 = vmax.f32 %v2302, 0.0
        %v2880 = vmax.f32 %v2389, 0.0
        %v2881 = vmax.f32 %v2391, 0.0
        %v2882 = vmax.f32 %v2478, 0.0
        %v2883 = vmax.f32 %v2480, 0.0
        %v2884 = vmax.f32 %v2567, 0.0
        %v2885 = vmax.f32 %v2569, 0.0
        %v2886 = vmax.f32 %v2656, 0.0
        %v2887 = vmax.f32 %v2658, 0.0
        %v2888 = vmax.f32 %v2745, 0.0
        %v2889 = vmax.f32 %v2747, 0.0
        %v2890 = vmax.f32 %v2834, 0.0
        %v2891 = vmax.f32 %v2836, 0.0
        %v2892 = vmax.f32 %v2217, 0.0
        %v2893 = vmax.f32 %v2219, 0.0
        %v2894 = vmax.f32 %v2306, 0.0
        %v2895 = vmax.f32 %v2308, 0.0
        %v2896 = vmax.f32 %v2395, 0.0
        %v2897 = vmax.f32 %v2397, 0.0
        %v2898 = vmax.f32 %v2484, 0.0
        %v2899 = vmax.f32 %v2486, 0.0
        %v2900 = vmax.f32 %v2573, 0.0
        %v2901 = vmax.f32 %v2575, 0.0
        %v2902 = vmax.f32 %v2662, 0.0
        %v2903 = vmax.f32 %v2664, 0.0
        %v2904 = vmax.f32 %v2751, 0.0
        %v2905 = vmax.f32 %v2753, 0.0
        %v2906 = vmax.f32 %v2840, 0.0
        %v2907 = vmax.f32 %v2842, 0.0
        %v2908 = vld [vmem:[%s7] sm:$0xff]
        %v2909 = vld [vmem:[%s7 + $0x8] sm:$0xff]
        %v2910 = vld [vmem:[%s7 + $0x10] sm:$0xff]
        %v2911 = vld [vmem:[%s7 + $0x18] sm:$0xff]
        %v2912 = vld [vmem:[%s8] sm:$0xff]
        %v2913 = vld [vmem:[%s8 + $0x8] sm:$0xff]
        %v2914 = vld [vmem:[%s8 + $0x10] sm:$0xff]
        %v2915 = vld [vmem:[%s8 + $0x18] sm:$0xff]
        %2917 = vset.pattern.permute.xlu0 0
        %2918 = vperm.xlu0 %2917, %v2912
        %v2919 = vpop.permute.xlu0 %2918
        %2922 = vset.pattern.permute.xlu0 0
        %2923 = vperm.xlu0 %2922, %v2913
        %v2924 = vpop.permute.xlu0 %2923
        %2927 = vset.pattern.permute.xlu0 0
        %2928 = vperm.xlu0 %2927, %v2914
        %v2929 = vpop.permute.xlu0 %2928
        %2932 = vset.pattern.permute.xlu0 0
        %2933 = vperm.xlu0 %2932, %v2915
        %v2934 = vpop.permute.xlu0 %2933
        %v2937 = vsel %vm1239, %v2908, 0
        %v2940 = vsel %vm1239, %v2909, 0
        %v2943 = vsel %vm1239, %v2910, 0
        %v2946 = vsel %vm1239, %v2911, 0
        %2948 = vmatprep.subr.mxu0 %v2845
        %2949 = vmatpush1.msra.mxu0 %v2844
        %2950 = vmatprep.subr.mxu0 %v2861
        %2951 = vmatpush1.msra.mxu0 %v2860
        %2952 = vmatprep.subr.mxu0 %v2877
        %2953 = vmatpush1.msra.mxu0 %v2876
        %2954 = vmatprep.subr.mxu0 %v2893
        %2955 = vmatpush1.msra.mxu0 %v2892
        %2956 = vmatprep.subr.mxu0 0.0
        %2957 = vmatpush1.msra.mxu0 0.0
        %2958 = vmatprep.subr.mxu0 0.0
        %2959 = vmatpush1.msra.mxu0 0.0
        %2960 = vmatprep.subr.mxu0 0.0
        %2961 = vmatpush1.msra.mxu0 0.0
        %2962 = vmatprep.subr.mxu0 0.0
        %2963 = vmatpush1.msra.mxu0 0.0
        %2964 = vmatprep.subr.mxu0 0.0
        %2965 = vmatpush1.msra.mxu0 0.0
        %2966 = vmatprep.subr.mxu0 0.0
        %2967 = vmatpush1.msra.mxu0 0.0
        %2968 = vmatprep.subr.mxu0 0.0
        %2969 = vmatpush1.msra.mxu0 0.0
        %2970 = vmatprep.subr.mxu0 0.0
        %2971 = vmatpush1.msra.mxu0 0.0
        %2972 = vmatprep.subr.mxu0 0.0
        %2973 = vmatpush1.msra.mxu0 0.0
        %2974 = vmatprep.subr.mxu0 0.0
        %2975 = vmatpush1.msra.mxu0 0.0
        %2976 = vmatprep.subr.mxu0 0.0
        %2977 = vmatpush1.msra.mxu0 0.0
        %2978 = vmatprep.subr.mxu0 0.0
        %2979 = vmatpush1.msra.mxu0 0.0
        %2980 = vmatprep.subr.mxu0 0.0
        %2981 = vmatpush1.msra.mxu0 0.0
        %2982 = vmatprep.subr.mxu0 0.0
        %2983 = vmatpush1.msra.mxu0 0.0
        %2984 = vmatprep.subr.mxu0 0.0
        %2985 = vmatpush1.msra.mxu0 0.0
        %2986 = vmatprep.subr.mxu0 0.0
        %2987 = vmatpush1.msra.mxu0 0.0
        %2988 = vmatprep.subr.mxu0 0.0
        %2989 = vmatpush1.msra.mxu0 0.0
        %2990 = vmatprep.subr.mxu0 0.0
        %2991 = vmatpush1.msra.mxu0 0.0
        %2992 = vmatprep.subr.mxu0 0.0
        %2993 = vmatpush1.msra.mxu0 0.0
        %2994 = vmatprep.subr.mxu0 0.0
        %2995 = vmatpush1.msra.mxu0 0.0
        %2996 = vmatprep.subr.mxu0 0.0
        %2997 = vmatpush1.msra.mxu0 0.0
        %2998 = vmatprep.subr.mxu0 0.0
        %2999 = vmatpush1.msra.mxu0 0.0
        %3000 = vmatprep.subr.mxu0 0.0
        %3001 = vmatpush1.msra.mxu0 0.0
        %3002 = vmatprep.subr.mxu0 0.0
        %3003 = vmatpush1.msra.mxu0 0.0
        %3004 = vmatprep.subr.mxu0 0.0
        %3005 = vmatpush1.msra.mxu0 0.0
        %3006 = vmatprep.subr.mxu0 0.0
        %3007 = vmatpush1.msra.mxu0 0.0
        %3008 = vmatprep.subr.mxu0 0.0
        %3009 = vmatpush1.msra.mxu0 0.0
        %3010 = vmatprep.subr.mxu0 0.0
        %3011 = vmatpush1.msra.mxu0 0.0
        %3012 = vmatprep.mubr.f32.mxu0 0.0
        %3013 = vmatmul.mubr.f32.gmra.mrb[0].mxu0 %v2937
        %v3014 = vpop.f32.mrb[0].mxu0
        %v3015 = vadd.f32 %v2919, %v3014
        %v3016 = vpop.f32.mrb[0].mxu0
        %v3017 = vadd.f32 %v2919, %v3016
        %3018 = vmatprep.mubr.f32.mxu0 0.0
        %3019 = vmatmul.mubr.f32.gmra.mrb[0].mxu0 %v2940
        %v3020 = vpop.f32.mrb[0].mxu0
        %v3021 = vadd.f32 %v2924, %v3020
        %v3022 = vpop.f32.mrb[0].mxu0
        %v3023 = vadd.f32 %v2924, %v3022
        %3024 = vmatprep.mubr.f32.mxu0 0.0
        %3025 = vmatmul.mubr.f32.gmra.mrb[0].mxu0 %v2943
        %v3026 = vpop.f32.mrb[0].mxu0
        %v3027 = vadd.f32 %v2929, %v3026
        %v3028 = vpop.f32.mrb[0].mxu0
        %v3029 = vadd.f32 %v2929, %v3028
        %3030 = vmatprep.mubr.f32.mxu0 0.0
        %3031 = vmatmul.mubr.f32.gmra.mrb[0].mxu0 %v2946
        %v3032 = vpop.f32.mrb[0].mxu0
        %v3033 = vadd.f32 %v2934, %v3032
        %v3034 = vpop.f32.mrb[0].mxu0
        %v3035 = vadd.f32 %v2934, %v3034
        %3036 = vdwg.mxu0
        %3037 = vmatprep.subr.mxu0 %v2847
        %3038 = vmatpush1.msra.mxu0 %v2846
        %3039 = vmatprep.subr.mxu0 %v2863
        %3040 = vmatpush1.msra.mxu0 %v2862
        %3041 = vmatprep.subr.mxu0 %v2879
        %3042 = vmatpush1.msra.mxu0 %v2878
        %3043 = vmatprep.subr.mxu0 %v2895
        %3044 = vmatpush1.msra.mxu0 %v2894
        %3045 = vmatprep.subr.mxu0 0.0
        %3046 = vmatpush1.msra.mxu0 0.0
        %3047 = vmatprep.subr.mxu0 0.0
        %3048 = vmatpush1.msra.mxu0 0.0
        %3049 = vmatprep.subr.mxu0 0.0
        %3050 = vmatpush1.msra.mxu0 0.0
        %3051 = vmatprep.subr.mxu0 0.0
        %3052 = vmatpush1.msra.mxu0 0.0
        %3053 = vmatprep.subr.mxu0 0.0
        %3054 = vmatpush1.msra.mxu0 0.0
        %3055 = vmatprep.subr.mxu0 0.0
        %3056 = vmatpush1.msra.mxu0 0.0
        %3057 = vmatprep.subr.mxu0 0.0
        %3058 = vmatpush1.msra.mxu0 0.0
        %3059 = vmatprep.subr.mxu0 0.0
        %3060 = vmatpush1.msra.mxu0 0.0
        %3061 = vmatprep.subr.mxu0 0.0
        %3062 = vmatpush1.msra.mxu0 0.0
        %3063 = vmatprep.subr.mxu0 0.0
        %3064 = vmatpush1.msra.mxu0 0.0
        %3065 = vmatprep.subr.mxu0 0.0
        %3066 = vmatpush1.msra.mxu0 0.0
        %3067 = vmatprep.subr.mxu0 0.0
        %3068 = vmatpush1.msra.mxu0 0.0
        %3069 = vmatprep.subr.mxu0 0.0
        %3070 = vmatpush1.msra.mxu0 0.0
        %3071 = vmatprep.subr.mxu0 0.0
        %3072 = vmatpush1.msra.mxu0 0.0
        %3073 = vmatprep.subr.mxu0 0.0
        %3074 = vmatpush1.msra.mxu0 0.0
        %3075 = vmatprep.subr.mxu0 0.0
        %3076 = vmatpush1.msra.mxu0 0.0
        %3077 = vmatprep.subr.mxu0 0.0
        %3078 = vmatpush1.msra.mxu0 0.0
        %3079 = vmatprep.subr.mxu0 0.0
        %3080 = vmatpush1.msra.mxu0 0.0
        %3081 = vmatprep.subr.mxu0 0.0
        %3082 = vmatpush1.msra.mxu0 0.0
        %3083 = vmatprep.subr.mxu0 0.0
        %3084 = vmatpush1.msra.mxu0 0.0
        %3085 = vmatprep.subr.mxu0 0.0
        %3086 = vmatpush1.msra.mxu0 0.0
        %3087 = vmatprep.subr.mxu0 0.0
        %3088 = vmatpush1.msra.mxu0 0.0
        %3089 = vmatprep.subr.mxu0 0.0
        %3090 = vmatpush1.msra.mxu0 0.0
        %3091 = vmatprep.subr.mxu0 0.0
        %3092 = vmatpush1.msra.mxu0 0.0
        %3093 = vmatprep.subr.mxu0 0.0
        %3094 = vmatpush1.msra.mxu0 0.0
        %3095 = vmatprep.subr.mxu0 0.0
        %3096 = vmatpush1.msra.mxu0 0.0
        %3097 = vmatprep.subr.mxu0 0.0
        %3098 = vmatpush1.msra.mxu0 0.0
        %3099 = vmatprep.subr.mxu0 0.0
        %3100 = vmatpush1.msra.mxu0 0.0
        %3101 = vmatprep.mubr.f32.mxu0 0.0
        %3102 = vmatmul.mubr.f32.gmra.mrb[0].mxu0 %v2937
        %v3103 = vpop.f32.mrb[0].mxu0
        %v3104 = vadd.f32 %v2919, %v3103
        %v3105 = vpop.f32.mrb[0].mxu0
        %v3106 = vadd.f32 %v2919, %v3105
        %3107 = vmatprep.mubr.f32.mxu0 0.0
        %3108 = vmatmul.mubr.f32.gmra.mrb[0].mxu0 %v2940
        %v3109 = vpop.f32.mrb[0].mxu0
        %v3110 = vadd.f32 %v2924, %v3109
        %v3111 = vpop.f32.mrb[0].mxu0
        %v3112 = vadd.f32 %v2924, %v3111
        %3113 = vmatprep.mubr.f32.mxu0 0.0
        %3114 = vmatmul.mubr.f32.gmra.mrb[0].mxu0 %v2943
        %v3115 = vpop.f32.mrb[0].mxu0
        %v3116 = vadd.f32 %v2929, %v3115
        %v3117 = vpop.f32.mrb[0].mxu0
        %v3118 = vadd.f32 %v2929, %v3117
        %3119 = vmatprep.mubr.f32.mxu0 0.0
        %3120 = vmatmul.mubr.f32.gmra.mrb[0].mxu0 %v2946
        %v3121 = vpop.f32.mrb[0].mxu0
        %v3122 = vadd.f32 %v2934, %v3121
        %v3123 = vpop.f32.mrb[0].mxu0
        %v3124 = vadd.f32 %v2934, %v3123
        %3125 = vdwg.mxu0
        %3126 = vmatprep.subr.mxu0 %v2849
        %3127 = vmatpush1.msra.mxu0 %v2848
        %3128 = vmatprep.subr.mxu0 %v2865
        %3129 = vmatpush1.msra.mxu0 %v2864
        %3130 = vmatprep.subr.mxu0 %v2881
        %3131 = vmatpush1.msra.mxu0 %v2880
        %3132 = vmatprep.subr.mxu0 %v2897
        %3133 = vmatpush1.msra.mxu0 %v2896
        %3134 = vmatprep.subr.mxu0 0.0
        %3135 = vmatpush1.msra.mxu0 0.0
        %3136 = vmatprep.subr.mxu0 0.0
        %3137 = vmatpush1.msra.mxu0 0.0
        %3138 = vmatprep.subr.mxu0 0.0
        %3139 = vmatpush1.msra.mxu0 0.0
        %3140 = vmatprep.subr.mxu0 0.0
        %3141 = vmatpush1.msra.mxu0 0.0
        %3142 = vmatprep.subr.mxu0 0.0
        %3143 = vmatpush1.msra.mxu0 0.0
        %3144 = vmatprep.subr.mxu0 0.0
        %3145 = vmatpush1.msra.mxu0 0.0
        %3146 = vmatprep.subr.mxu0 0.0
        %3147 = vmatpush1.msra.mxu0 0.0
        %3148 = vmatprep.subr.mxu0 0.0
        %3149 = vmatpush1.msra.mxu0 0.0
        %3150 = vmatprep.subr.mxu0 0.0
        %3151 = vmatpush1.msra.mxu0 0.0
        %3152 = vmatprep.subr.mxu0 0.0
        %3153 = vmatpush1.msra.mxu0 0.0
        %3154 = vmatprep.subr.mxu0 0.0
        %3155 = vmatpush1.msra.mxu0 0.0
        %3156 = vmatprep.subr.mxu0 0.0
        %3157 = vmatpush1.msra.mxu0 0.0
        %3158 = vmatprep.subr.mxu0 0.0
        %3159 = vmatpush1.msra.mxu0 0.0
        %3160 = vmatprep.subr.mxu0 0.0
        %3161 = vmatpush1.msra.mxu0 0.0
        %3162 = vmatprep.subr.mxu0 0.0
        %3163 = vmatpush1.msra.mxu0 0.0
        %3164 = vmatprep.subr.mxu0 0.0
        %3165 = vmatpush1.msra.mxu0 0.0
        %3166 = vmatprep.subr.mxu0 0.0
        %3167 = vmatpush1.msra.mxu0 0.0
        %3168 = vmatprep.subr.mxu0 0.0
        %3169 = vmatpush1.msra.mxu0 0.0
        %3170 = vmatprep.subr.mxu0 0.0
        %3171 = vmatpush1.msra.mxu0 0.0
        %3172 = vmatprep.subr.mxu0 0.0
        %3173 = vmatpush1.msra.mxu0 0.0
        %3174 = vmatprep.subr.mxu0 0.0
        %3175 = vmatpush1.msra.mxu0 0.0
        %3176 = vmatprep.subr.mxu0 0.0
        %3177 = vmatpush1.msra.mxu0 0.0
        %3178 = vmatprep.subr.mxu0 0.0
        %3179 = vmatpush1.msra.mxu0 0.0
        %3180 = vmatprep.subr.mxu0 0.0
        %3181 = vmatpush1.msra.mxu0 0.0
        %3182 = vmatprep.subr.mxu0 0.0
        %3183 = vmatpush1.msra.mxu0 0.0
        %3184 = vmatprep.subr.mxu0 0.0
        %3185 = vmatpush1.msra.mxu0 0.0
        %3186 = vmatprep.subr.mxu0 0.0
        %3187 = vmatpush1.msra.mxu0 0.0
        %3188 = vmatprep.subr.mxu0 0.0
        %3189 = vmatpush1.msra.mxu0 0.0
        %3190 = vmatprep.mubr.f32.mxu0 0.0
        %3191 = vmatmul.mubr.f32.gmra.mrb[0].mxu0 %v2937
        %v3192 = vpop.f32.mrb[0].mxu0
        %v3193 = vadd.f32 %v2919, %v3192
        %v3194 = vpop.f32.mrb[0].mxu0
        %v3195 = vadd.f32 %v2919, %v3194
        %3196 = vmatprep.mubr.f32.mxu0 0.0
        %3197 = vmatmul.mubr.f32.gmra.mrb[0].mxu0 %v2940
        %v3198 = vpop.f32.mrb[0].mxu0
        %v3199 = vadd.f32 %v2924, %v3198
        %v3200 = vpop.f32.mrb[0].mxu0
        %v3201 = vadd.f32 %v2924, %v3200
        %3202 = vmatprep.mubr.f32.mxu0 0.0
        %3203 = vmatmul.mubr.f32.gmra.mrb[0].mxu0 %v2943
        %v3204 = vpop.f32.mrb[0].mxu0
        %v3205 = vadd.f32 %v2929, %v3204
        %v3206 = vpop.f32.mrb[0].mxu0
        %v3207 = vadd.f32 %v2929, %v3206
        %3208 = vmatprep.mubr.f32.mxu0 0.0
        %3209 = vmatmul.mubr.f32.gmra.mrb[0].mxu0 %v2946
        %v3210 = vpop.f32.mrb[0].mxu0
        %v3211 = vadd.f32 %v2934, %v3210
        %v3212 = vpop.f32.mrb[0].mxu0
        %v3213 = vadd.f32 %v2934, %v3212
        %3214 = vdwg.mxu0
        %3215 = vmatprep.subr.mxu0 %v2851
        %3216 = vmatpush1.msra.mxu0 %v2850
        %3217 = vmatprep.subr.mxu0 %v2867
        %3218 = vmatpush1.msra.mxu0 %v2866
        %3219 = vmatprep.subr.mxu0 %v2883
        %3220 = vmatpush1.msra.mxu0 %v2882
        %3221 = vmatprep.subr.mxu0 %v2899
        %3222 = vmatpush1.msra.mxu0 %v2898
        %3223 = vmatprep.subr.mxu0 0.0
        %3224 = vmatpush1.msra.mxu0 0.0
        %3225 = vmatprep.subr.mxu0 0.0
        %3226 = vmatpush1.msra.mxu0 0.0
        %3227 = vmatprep.subr.mxu0 0.0
        %3228 = vmatpush1.msra.mxu0 0.0
        %3229 = vmatprep.subr.mxu0 0.0
        %3230 = vmatpush1.msra.mxu0 0.0
        %3231 = vmatprep.subr.mxu0 0.0
        %3232 = vmatpush1.msra.mxu0 0.0
        %3233 = vmatprep.subr.mxu0 0.0
        %3234 = vmatpush1.msra.mxu0 0.0
        %3235 = vmatprep.subr.mxu0 0.0
        %3236 = vmatpush1.msra.mxu0 0.0
        %3237 = vmatprep.subr.mxu0 0.0
        %3238 = vmatpush1.msra.mxu0 0.0
        %3239 = vmatprep.subr.mxu0 0.0
        %3240 = vmatpush1.msra.mxu0 0.0
        %3241 = vmatprep.subr.mxu0 0.0
        %3242 = vmatpush1.msra.mxu0 0.0
        %3243 = vmatprep.subr.mxu0 0.0
        %3244 = vmatpush1.msra.mxu0 0.0
        %3245 = vmatprep.subr.mxu0 0.0
        %3246 = vmatpush1.msra.mxu0 0.0
        %3247 = vmatprep.subr.mxu0 0.0
        %3248 = vmatpush1.msra.mxu0 0.0
        %3249 = vmatprep.subr.mxu0 0.0
        %3250 = vmatpush1.msra.mxu0 0.0
        %3251 = vmatprep.subr.mxu0 0.0
        %3252 = vmatpush1.msra.mxu0 0.0
        %3253 = vmatprep.subr.mxu0 0.0
        %3254 = vmatpush1.msra.mxu0 0.0
        %3255 = vmatprep.subr.mxu0 0.0
        %3256 = vmatpush1.msra.mxu0 0.0
        %3257 = vmatprep.subr.mxu0 0.0
        %3258 = vmatpush1.msra.mxu0 0.0
        %3259 = vmatprep.subr.mxu0 0.0
        %3260 = vmatpush1.msra.mxu0 0.0
        %3261 = vmatprep.subr.mxu0 0.0
        %3262 = vmatpush1.msra.mxu0 0.0
        %3263 = vmatprep.subr.mxu0 0.0
        %3264 = vmatpush1.msra.mxu0 0.0
        %3265 = vmatprep.subr.mxu0 0.0
        %3266 = vmatpush1.msra.mxu0 0.0
        %3267 = vmatprep.subr.mxu0 0.0
        %3268 = vmatpush1.msra.mxu0 0.0
        %3269 = vmatprep.subr.mxu0 0.0
        %3270 = vmatpush1.msra.mxu0 0.0
        %3271 = vmatprep.subr.mxu0 0.0
        %3272 = vmatpush1.msra.mxu0 0.0
        %3273 = vmatprep.subr.mxu0 0.0
        %3274 = vmatpush1.msra.mxu0 0.0
        %3275 = vmatprep.subr.mxu0 0.0
        %3276 = vmatpush1.msra.mxu0 0.0
        %3277 = vmatprep.subr.mxu0 0.0
        %3278 = vmatpush1.msra.mxu0 0.0
        %3279 = vmatprep.mubr.f32.mxu0 0.0
        %3280 = vmatmul.mubr.f32.gmra.mrb[0].mxu0 %v2937
        %v3281 = vpop.f32.mrb[0].mxu0
        %v3282 = vadd.f32 %v2919, %v3281
        %v3283 = vpop.f32.mrb[0].mxu0
        %v3284 = vadd.f32 %v2919, %v3283
        %3285 = vmatprep.mubr.f32.mxu0 0.0
        %3286 = vmatmul.mubr.f32.gmra.mrb[0].mxu0 %v2940
        %v3287 = vpop.f32.mrb[0].mxu0
        %v3288 = vadd.f32 %v2924, %v3287
        %v3289 = vpop.f32.mrb[0].mxu0
        %v3290 = vadd.f32 %v2924, %v3289
        %3291 = vmatprep.mubr.f32.mxu0 0.0
        %3292 = vmatmul.mubr.f32.gmra.mrb[0].mxu0 %v2943
        %v3293 = vpop.f32.mrb[0].mxu0
        %v3294 = vadd.f32 %v2929, %v3293
        %v3295 = vpop.f32.mrb[0].mxu0
        %v3296 = vadd.f32 %v2929, %v3295
        %3297 = vmatprep.mubr.f32.mxu0 0.0
        %3298 = vmatmul.mubr.f32.gmra.mrb[0].mxu0 %v2946
        %v3299 = vpop.f32.mrb[0].mxu0
        %v3300 = vadd.f32 %v2934, %v3299
        %v3301 = vpop.f32.mrb[0].mxu0
        %v3302 = vadd.f32 %v2934, %v3301
        %3303 = vdwg.mxu0
        %3304 = vmatprep.subr.mxu0 %v2853
        %3305 = vmatpush1.msra.mxu0 %v2852
        %3306 = vmatprep.subr.mxu0 %v2869
        %3307 = vmatpush1.msra.mxu0 %v2868
        %3308 = vmatprep.subr.mxu0 %v2885
        %3309 = vmatpush1.msra.mxu0 %v2884
        %3310 = vmatprep.subr.mxu0 %v2901
        %3311 = vmatpush1.msra.mxu0 %v2900
        %3312 = vmatprep.subr.mxu0 0.0
        %3313 = vmatpush1.msra.mxu0 0.0
        %3314 = vmatprep.subr.mxu0 0.0
        %3315 = vmatpush1.msra.mxu0 0.0
        %3316 = vmatprep.subr.mxu0 0.0
        %3317 = vmatpush1.msra.mxu0 0.0
        %3318 = vmatprep.subr.mxu0 0.0
        %3319 = vmatpush1.msra.mxu0 0.0
        %3320 = vmatprep.subr.mxu0 0.0
        %3321 = vmatpush1.msra.mxu0 0.0
        %3322 = vmatprep.subr.mxu0 0.0
        %3323 = vmatpush1.msra.mxu0 0.0
        %3324 = vmatprep.subr.mxu0 0.0
        %3325 = vmatpush1.msra.mxu0 0.0
        %3326 = vmatprep.subr.mxu0 0.0
        %3327 = vmatpush1.msra.mxu0 0.0
        %3328 = vmatprep.subr.mxu0 0.0
        %3329 = vmatpush1.msra.mxu0 0.0
        %3330 = vmatprep.subr.mxu0 0.0
        %3331 = vmatpush1.msra.mxu0 0.0
        %3332 = vmatprep.subr.mxu0 0.0
        %3333 = vmatpush1.msra.mxu0 0.0
        %3334 = vmatprep.subr.mxu0 0.0
        %3335 = vmatpush1.msra.mxu0 0.0
        %3336 = vmatprep.subr.mxu0 0.0
        %3337 = vmatpush1.msra.mxu0 0.0
        %3338 = vmatprep.subr.mxu0 0.0
        %3339 = vmatpush1.msra.mxu0 0.0
        %3340 = vmatprep.subr.mxu0 0.0
        %3341 = vmatpush1.msra.mxu0 0.0
        %3342 = vmatprep.subr.mxu0 0.0
        %3343 = vmatpush1.msra.mxu0 0.0
        %3344 = vmatprep.subr.mxu0 0.0
        %3345 = vmatpush1.msra.mxu0 0.0
        %3346 = vmatprep.subr.mxu0 0.0
        %3347 = vmatpush1.msra.mxu0 0.0
        %3348 = vmatprep.subr.mxu0 0.0
        %3349 = vmatpush1.msra.mxu0 0.0
        %3350 = vmatprep.subr.mxu0 0.0
        %3351 = vmatpush1.msra.mxu0 0.0
        %3352 = vmatprep.subr.mxu0 0.0
        %3353 = vmatpush1.msra.mxu0 0.0
        %3354 = vmatprep.subr.mxu0 0.0
        %3355 = vmatpush1.msra.mxu0 0.0
        %3356 = vmatprep.subr.mxu0 0.0
        %3357 = vmatpush1.msra.mxu0 0.0
        %3358 = vmatprep.subr.mxu0 0.0
        %3359 = vmatpush1.msra.mxu0 0.0
        %3360 = vmatprep.subr.mxu0 0.0
        %3361 = vmatpush1.msra.mxu0 0.0
        %3362 = vmatprep.subr.mxu0 0.0
        %3363 = vmatpush1.msra.mxu0 0.0
        %3364 = vmatprep.subr.mxu0 0.0
        %3365 = vmatpush1.msra.mxu0 0.0
        %3366 = vmatprep.subr.mxu0 0.0
        %3367 = vmatpush1.msra.mxu0 0.0
        %3368 = vmatprep.mubr.f32.mxu0 0.0
        %3369 = vmatmul.mubr.f32.gmra.mrb[0].mxu0 %v2937
        %v3370 = vpop.f32.mrb[0].mxu0
        %v3371 = vadd.f32 %v2919, %v3370
        %v3372 = vpop.f32.mrb[0].mxu0
        %v3373 = vadd.f32 %v2919, %v3372
        %3374 = vmatprep.mubr.f32.mxu0 0.0
        %3375 = vmatmul.mubr.f32.gmra.mrb[0].mxu0 %v2940
        %v3376 = vpop.f32.mrb[0].mxu0
        %v3377 = vadd.f32 %v2924, %v3376
        %v3378 = vpop.f32.mrb[0].mxu0
        %v3379 = vadd.f32 %v2924, %v3378
        %3380 = vmatprep.mubr.f32.mxu0 0.0
        %3381 = vmatmul.mubr.f32.gmra.mrb[0].mxu0 %v2943
        %v3382 = vpop.f32.mrb[0].mxu0
        %v3383 = vadd.f32 %v2929, %v3382
        %v3384 = vpop.f32.mrb[0].mxu0
        %v3385 = vadd.f32 %v2929, %v3384
        %3386 = vmatprep.mubr.f32.mxu0 0.0
        %3387 = vmatmul.mubr.f32.gmra.mrb[0].mxu0 %v2946
        %v3388 = vpop.f32.mrb[0].mxu0
        %v3389 = vadd.f32 %v2934, %v3388
        %v3390 = vpop.f32.mrb[0].mxu0
        %v3391 = vadd.f32 %v2934, %v3390
        %3392 = vdwg.mxu0
        %3393 = vmatprep.subr.mxu0 %v2855
        %3394 = vmatpush1.msra.mxu0 %v2854
        %3395 = vmatprep.subr.mxu0 %v2871
        %3396 = vmatpush1.msra.mxu0 %v2870
        %3397 = vmatprep.subr.mxu0 %v2887
        %3398 = vmatpush1.msra.mxu0 %v2886
        %3399 = vmatprep.subr.mxu0 %v2903
        %3400 = vmatpush1.msra.mxu0 %v2902
        %3401 = vmatprep.subr.mxu0 0.0
        %3402 = vmatpush1.msra.mxu0 0.0
        %3403 = vmatprep.subr.mxu0 0.0
        %3404 = vmatpush1.msra.mxu0 0.0
        %3405 = vmatprep.subr.mxu0 0.0
        %3406 = vmatpush1.msra.mxu0 0.0
        %3407 = vmatprep.subr.mxu0 0.0
        %3408 = vmatpush1.msra.mxu0 0.0
        %3409 = vmatprep.subr.mxu0 0.0
        %3410 = vmatpush1.msra.mxu0 0.0
        %3411 = vmatprep.subr.mxu0 0.0
        %3412 = vmatpush1.msra.mxu0 0.0
        %3413 = vmatprep.subr.mxu0 0.0
        %3414 = vmatpush1.msra.mxu0 0.0
        %3415 = vmatprep.subr.mxu0 0.0
        %3416 = vmatpush1.msra.mxu0 0.0
        %3417 = vmatprep.subr.mxu0 0.0
        %3418 = vmatpush1.msra.mxu0 0.0
        %3419 = vmatprep.subr.mxu0 0.0
        %3420 = vmatpush1.msra.mxu0 0.0
        %3421 = vmatprep.subr.mxu0 0.0
        %3422 = vmatpush1.msra.mxu0 0.0
        %3423 = vmatprep.subr.mxu0 0.0
        %3424 = vmatpush1.msra.mxu0 0.0
        %3425 = vmatprep.subr.mxu0 0.0
        %3426 = vmatpush1.msra.mxu0 0.0
        %3427 = vmatprep.subr.mxu0 0.0
        %3428 = vmatpush1.msra.mxu0 0.0
        %3429 = vmatprep.subr.mxu0 0.0
        %3430 = vmatpush1.msra.mxu0 0.0
        %3431 = vmatprep.subr.mxu0 0.0
        %3432 = vmatpush1.msra.mxu0 0.0
        %3433 = vmatprep.subr.mxu0 0.0
        %3434 = vmatpush1.msra.mxu0 0.0
        %3435 = vmatprep.subr.mxu0 0.0
        %3436 = vmatpush1.msra.mxu0 0.0
        %3437 = vmatprep.subr.mxu0 0.0
        %3438 = vmatpush1.msra.mxu0 0.0
        %3439 = vmatprep.subr.mxu0 0.0
        %3440 = vmatpush1.msra.mxu0 0.0
        %3441 = vmatprep.subr.mxu0 0.0
        %3442 = vmatpush1.msra.mxu0 0.0
        %3443 = vmatprep.subr.mxu0 0.0
        %3444 = vmatpush1.msra.mxu0 0.0
        %3445 = vmatprep.subr.mxu0 0.0
        %3446 = vmatpush1.msra.mxu0 0.0
        %3447 = vmatprep.subr.mxu0 0.0
        %3448 = vmatpush1.msra.mxu0 0.0
        %3449 = vmatprep.subr.mxu0 0.0
        %3450 = vmatpush1.msra.mxu0 0.0
        %3451 = vmatprep.subr.mxu0 0.0
        %3452 = vmatpush1.msra.mxu0 0.0
        %3453 = vmatprep.subr.mxu0 0.0
        %3454 = vmatpush1.msra.mxu0 0.0
        %3455 = vmatprep.subr.mxu0 0.0
        %3456 = vmatpush1.msra.mxu0 0.0
        %3457 = vmatprep.mubr.f32.mxu0 0.0
        %3458 = vmatmul.mubr.f32.gmra.mrb[0].mxu0 %v2937
        %v3459 = vpop.f32.mrb[0].mxu0
        %v3460 = vadd.f32 %v2919, %v3459
        %v3461 = vpop.f32.mrb[0].mxu0
        %v3462 = vadd.f32 %v2919, %v3461
        %3463 = vmatprep.mubr.f32.mxu0 0.0
        %3464 = vmatmul.mubr.f32.gmra.mrb[0].mxu0 %v2940
        %v3465 = vpop.f32.mrb[0].mxu0
        %v3466 = vadd.f32 %v2924, %v3465
        %v3467 = vpop.f32.mrb[0].mxu0
        %v3468 = vadd.f32 %v2924, %v3467
        %3469 = vmatprep.mubr.f32.mxu0 0.0
        %3470 = vmatmul.mubr.f32.gmra.mrb[0].mxu0 %v2943
        %v3471 = vpop.f32.mrb[0].mxu0
        %v3472 = vadd.f32 %v2929, %v3471
        %v3473 = vpop.f32.mrb[0].mxu0
        %v3474 = vadd.f32 %v2929, %v3473
        %3475 = vmatprep.mubr.f32.mxu0 0.0
        %3476 = vmatmul.mubr.f32.gmra.mrb[0].mxu0 %v2946
        %v3477 = vpop.f32.mrb[0].mxu0
        %v3478 = vadd.f32 %v2934, %v3477
        %v3479 = vpop.f32.mrb[0].mxu0
        %v3480 = vadd.f32 %v2934, %v3479
        %3481 = vdwg.mxu0
        %3482 = vmatprep.subr.mxu0 %v2857
        %3483 = vmatpush1.msra.mxu0 %v2856
        %3484 = vmatprep.subr.mxu0 %v2873
        %3485 = vmatpush1.msra.mxu0 %v2872
        %3486 = vmatprep.subr.mxu0 %v2889
        %3487 = vmatpush1.msra.mxu0 %v2888
        %3488 = vmatprep.subr.mxu0 %v2905
        %3489 = vmatpush1.msra.mxu0 %v2904
        %3490 = vmatprep.subr.mxu0 0.0
        %3491 = vmatpush1.msra.mxu0 0.0
        %3492 = vmatprep.subr.mxu0 0.0
        %3493 = vmatpush1.msra.mxu0 0.0
        %3494 = vmatprep.subr.mxu0 0.0
        %3495 = vmatpush1.msra.mxu0 0.0
        %3496 = vmatprep.subr.mxu0 0.0
        %3497 = vmatpush1.msra.mxu0 0.0
        %3498 = vmatprep.subr.mxu0 0.0
        %3499 = vmatpush1.msra.mxu0 0.0
        %3500 = vmatprep.subr.mxu0 0.0
        %3501 = vmatpush1.msra.mxu0 0.0
        %3502 = vmatprep.subr.mxu0 0.0
        %3503 = vmatpush1.msra.mxu0 0.0
        %3504 = vmatprep.subr.mxu0 0.0
        %3505 = vmatpush1.msra.mxu0 0.0
        %3506 = vmatprep.subr.mxu0 0.0
        %3507 = vmatpush1.msra.mxu0 0.0
        %3508 = vmatprep.subr.mxu0 0.0
        %3509 = vmatpush1.msra.mxu0 0.0
        %3510 = vmatprep.subr.mxu0 0.0
        %3511 = vmatpush1.msra.mxu0 0.0
        %3512 = vmatprep.subr.mxu0 0.0
        %3513 = vmatpush1.msra.mxu0 0.0
        %3514 = vmatprep.subr.mxu0 0.0
        %3515 = vmatpush1.msra.mxu0 0.0
        %3516 = vmatprep.subr.mxu0 0.0
        %3517 = vmatpush1.msra.mxu0 0.0
        %3518 = vmatprep.subr.mxu0 0.0
        %3519 = vmatpush1.msra.mxu0 0.0
        %3520 = vmatprep.subr.mxu0 0.0
        %3521 = vmatpush1.msra.mxu0 0.0
        %3522 = vmatprep.subr.mxu0 0.0
        %3523 = vmatpush1.msra.mxu0 0.0
        %3524 = vmatprep.subr.mxu0 0.0
        %3525 = vmatpush1.msra.mxu0 0.0
        %3526 = vmatprep.subr.mxu0 0.0
        %3527 = vmatpush1.msra.mxu0 0.0
        %3528 = vmatprep.subr.mxu0 0.0
        %3529 = vmatpush1.msra.mxu0 0.0
        %3530 = vmatprep.subr.mxu0 0.0
        %3531 = vmatpush1.msra.mxu0 0.0
        %3532 = vmatprep.subr.mxu0 0.0
        %3533 = vmatpush1.msra.mxu0 0.0
        %3534 = vmatprep.subr.mxu0 0.0
        %3535 = vmatpush1.msra.mxu0 0.0
        %3536 = vmatprep.subr.mxu0 0.0
        %3537 = vmatpush1.msra.mxu0 0.0
        %3538 = vmatprep.subr.mxu0 0.0
        %3539 = vmatpush1.msra.mxu0 0.0
        %3540 = vmatprep.subr.mxu0 0.0
        %3541 = vmatpush1.msra.mxu0 0.0
        %3542 = vmatprep.subr.mxu0 0.0
        %3543 = vmatpush1.msra.mxu0 0.0
        %3544 = vmatprep.subr.mxu0 0.0
        %3545 = vmatpush1.msra.mxu0 0.0
        %3546 = vmatprep.mubr.f32.mxu0 0.0
        %3547 = vmatmul.mubr.f32.gmra.mrb[0].mxu0 %v2937
        %v3548 = vpop.f32.mrb[0].mxu0
        %v3549 = vadd.f32 %v2919, %v3548
        %v3550 = vpop.f32.mrb[0].mxu0
        %v3551 = vadd.f32 %v2919, %v3550
        %3552 = vmatprep.mubr.f32.mxu0 0.0
        %3553 = vmatmul.mubr.f32.gmra.mrb[0].mxu0 %v2940
        %v3554 = vpop.f32.mrb[0].mxu0
        %v3555 = vadd.f32 %v2924, %v3554
        %v3556 = vpop.f32.mrb[0].mxu0
        %v3557 = vadd.f32 %v2924, %v3556
        %3558 = vmatprep.mubr.f32.mxu0 0.0
        %3559 = vmatmul.mubr.f32.gmra.mrb[0].mxu0 %v2943
        %v3560 = vpop.f32.mrb[0].mxu0
        %v3561 = vadd.f32 %v2929, %v3560
        %v3562 = vpop.f32.mrb[0].mxu0
        %v3563 = vadd.f32 %v2929, %v3562
        %3564 = vmatprep.mubr.f32.mxu0 0.0
        %3565 = vmatmul.mubr.f32.gmra.mrb[0].mxu0 %v2946
        %v3566 = vpop.f32.mrb[0].mxu0
        %v3567 = vadd.f32 %v2934, %v3566
        %v3568 = vpop.f32.mrb[0].mxu0
        %v3569 = vadd.f32 %v2934, %v3568
        %3570 = vdwg.mxu0
        %3571 = vmatprep.subr.mxu0 %v2859
        %3572 = vmatpush1.msra.mxu0 %v2858
        %3573 = vmatprep.subr.mxu0 %v2875
        %3574 = vmatpush1.msra.mxu0 %v2874
        %3575 = vmatprep.subr.mxu0 %v2891
        %3576 = vmatpush1.msra.mxu0 %v2890
        %3577 = vmatprep.subr.mxu0 %v2907
        %3578 = vmatpush1.msra.mxu0 %v2906
        %3579 = vmatprep.subr.mxu0 0.0
        %3580 = vmatpush1.msra.mxu0 0.0
        %3581 = vmatprep.subr.mxu0 0.0
        %3582 = vmatpush1.msra.mxu0 0.0
        %3583 = vmatprep.subr.mxu0 0.0
        %3584 = vmatpush1.msra.mxu0 0.0
        %3585 = vmatprep.subr.mxu0 0.0
        %3586 = vmatpush1.msra.mxu0 0.0
        %3587 = vmatprep.subr.mxu0 0.0
        %3588 = vmatpush1.msra.mxu0 0.0
        %3589 = vmatprep.subr.mxu0 0.0
        %3590 = vmatpush1.msra.mxu0 0.0
        %3591 = vmatprep.subr.mxu0 0.0
        %3592 = vmatpush1.msra.mxu0 0.0
        %3593 = vmatprep.subr.mxu0 0.0
        %3594 = vmatpush1.msra.mxu0 0.0
        %3595 = vmatprep.subr.mxu0 0.0
        %3596 = vmatpush1.msra.mxu0 0.0
        %3597 = vmatprep.subr.mxu0 0.0
        %3598 = vmatpush1.msra.mxu0 0.0
        %3599 = vmatprep.subr.mxu0 0.0
        %3600 = vmatpush1.msra.mxu0 0.0
        %3601 = vmatprep.subr.mxu0 0.0
        %3602 = vmatpush1.msra.mxu0 0.0
        %3603 = vmatprep.subr.mxu0 0.0
        %3604 = vmatpush1.msra.mxu0 0.0
        %3605 = vmatprep.subr.mxu0 0.0
        %3606 = vmatpush1.msra.mxu0 0.0
        %3607 = vmatprep.subr.mxu0 0.0
        %3608 = vmatpush1.msra.mxu0 0.0
        %3609 = vmatprep.subr.mxu0 0.0
        %3610 = vmatpush1.msra.mxu0 0.0
        %3611 = vmatprep.subr.mxu0 0.0
        %3612 = vmatpush1.msra.mxu0 0.0
        %3613 = vmatprep.subr.mxu0 0.0
        %3614 = vmatpush1.msra.mxu0 0.0
        %3615 = vmatprep.subr.mxu0 0.0
        %3616 = vmatpush1.msra.mxu0 0.0
        %3617 = vmatprep.subr.mxu0 0.0
        %3618 = vmatpush1.msra.mxu0 0.0
        %3619 = vmatprep.subr.mxu0 0.0
        %3620 = vmatpush1.msra.mxu0 0.0
        %3621 = vmatprep.subr.mxu0 0.0
        %3622 = vmatpush1.msra.mxu0 0.0
        %3623 = vmatprep.subr.mxu0 0.0
        %3624 = vmatpush1.msra.mxu0 0.0
        %3625 = vmatprep.subr.mxu0 0.0
        %3626 = vmatpush1.msra.mxu0 0.0
        %3627 = vmatprep.subr.mxu0 0.0
        %3628 = vmatpush1.msra.mxu0 0.0
        %3629 = vmatprep.subr.mxu0 0.0
        %3630 = vmatpush1.msra.mxu0 0.0
        %3631 = vmatprep.subr.mxu0 0.0
        %3632 = vmatpush1.msra.mxu0 0.0
        %3633 = vmatprep.subr.mxu0 0.0
        %3634 = vmatpush1.msra.mxu0 0.0
        %3635 = vmatprep.mubr.f32.mxu0 0.0
        %3636 = vmatmul.mubr.f32.gmra.mrb[0].mxu0 %v2937
        %v3637 = vpop.f32.mrb[0].mxu0
        %v3638 = vadd.f32 %v2919, %v3637
        %v3639 = vpop.f32.mrb[0].mxu0
        %v3640 = vadd.f32 %v2919, %v3639
        %3641 = vmatprep.mubr.f32.mxu0 0.0
        %3642 = vmatmul.mubr.f32.gmra.mrb[0].mxu0 %v2940
        %v3643 = vpop.f32.mrb[0].mxu0
        %v3644 = vadd.f32 %v2924, %v3643
        %v3645 = vpop.f32.mrb[0].mxu0
        %v3646 = vadd.f32 %v2924, %v3645
        %3647 = vmatprep.mubr.f32.mxu0 0.0
        %3648 = vmatmul.mubr.f32.gmra.mrb[0].mxu0 %v2943
        %v3649 = vpop.f32.mrb[0].mxu0
        %v3650 = vadd.f32 %v2929, %v3649
        %v3651 = vpop.f32.mrb[0].mxu0
        %v3652 = vadd.f32 %v2929, %v3651
        %3653 = vmatprep.mubr.f32.mxu0 0.0
        %3654 = vmatmul.mubr.f32.gmra.mrb[0].mxu0 %v2946
        %v3655 = vpop.f32.mrb[0].mxu0
        %v3656 = vadd.f32 %v2934, %v3655
        %v3657 = vpop.f32.mrb[0].mxu0
        %v3658 = vadd.f32 %v2934, %v3657
        %3659 = vdwg.mxu0
        %v3660 = vmax.f32 %v3015, 0.0
        %v3661 = vmax.f32 %v3017, 0.0
        %v3662 = vmax.f32 %v3104, 0.0
        %v3663 = vmax.f32 %v3106, 0.0
        %v3664 = vmax.f32 %v3193, 0.0
        %v3665 = vmax.f32 %v3195, 0.0
        %v3666 = vmax.f32 %v3282, 0.0
        %v3667 = vmax.f32 %v3284, 0.0
        %v3668 = vmax.f32 %v3371, 0.0
        %v3669 = vmax.f32 %v3373, 0.0
        %v3670 = vmax.f32 %v3460, 0.0
        %v3671 = vmax.f32 %v3462, 0.0
        %v3672 = vmax.f32 %v3549, 0.0
        %v3673 = vmax.f32 %v3551, 0.0
        %v3674 = vmax.f32 %v3638, 0.0
        %v3675 = vmax.f32 %v3640, 0.0
        %v3676 = vmax.f32 %v3021, 0.0
        %v3677 = vmax.f32 %v3023, 0.0
        %v3678 = vmax.f32 %v3110, 0.0
        %v3679 = vmax.f32 %v3112, 0.0
        %v3680 = vmax.f32 %v3199, 0.0
        %v3681 = vmax.f32 %v3201, 0.0
        %v3682 = vmax.f32 %v3288, 0.0
        %v3683 = vmax.f32 %v3290, 0.0
        %v3684 = vmax.f32 %v3377, 0.0
        %v3685 = vmax.f32 %v3379, 0.0
        %v3686 = vmax.f32 %v3466, 0.0
        %v3687 = vmax.f32 %v3468, 0.0
        %v3688 = vmax.f32 %v3555, 0.0
        %v3689 = vmax.f32 %v3557, 0.0
        %v3690 = vmax.f32 %v3644, 0.0
        %v3691 = vmax.f32 %v3646, 0.0
        %v3692 = vmax.f32 %v3027, 0.0
        %v3693 = vmax.f32 %v3029, 0.0
        %v3694 = vmax.f32 %v3116, 0.0
        %v3695 = vmax.f32 %v3118, 0.0
        %v3696 = vmax.f32 %v3205, 0.0
        %v3697 = vmax.f32 %v3207, 0.0
        %v3698 = vmax.f32 %v3294, 0.0
        %v3699 = vmax.f32 %v3296, 0.0
        %v3700 = vmax.f32 %v3383, 0.0
        %v3701 = vmax.f32 %v3385, 0.0
        %v3702 = vmax.f32 %v3472, 0.0
        %v3703 = vmax.f32 %v3474, 0.0
        %v3704 = vmax.f32 %v3561, 0.0
        %v3705 = vmax.f32 %v3563, 0.0
        %v3706 = vmax.f32 %v3650, 0.0
        %v3707 = vmax.f32 %v3652, 0.0
        %v3708 = vmax.f32 %v3033, 0.0
        %v3709 = vmax.f32 %v3035, 0.0
        %v3710 = vmax.f32 %v3122, 0.0
        %v3711 = vmax.f32 %v3124, 0.0
        %v3712 = vmax.f32 %v3211, 0.0
        %v3713 = vmax.f32 %v3213, 0.0
        %v3714 = vmax.f32 %v3300, 0.0
        %v3715 = vmax.f32 %v3302, 0.0
        %v3716 = vmax.f32 %v3389, 0.0
        %v3717 = vmax.f32 %v3391, 0.0
        %v3718 = vmax.f32 %v3478, 0.0
        %v3719 = vmax.f32 %v3480, 0.0
        %v3720 = vmax.f32 %v3567, 0.0
        %v3721 = vmax.f32 %v3569, 0.0
        %v3722 = vmax.f32 %v3656, 0.0
        %v3723 = vmax.f32 %v3658, 0.0
        %v3724 = vadd.f32 %v3660, %v2028
        %v3725 = vadd.f32 %v3661, %v2029
        %v3726 = vadd.f32 %v3662, %v2030
        %v3727 = vadd.f32 %v3663, %v2031
        %v3728 = vadd.f32 %v3664, %v2032
        %v3729 = vadd.f32 %v3665, %v2033
        %v3730 = vadd.f32 %v3666, %v2034
        %v3731 = vadd.f32 %v3667, %v2035
        %v3732 = vadd.f32 %v3668, %v2036
        %v3733 = vadd.f32 %v3669, %v2037
        %v3734 = vadd.f32 %v3670, %v2038
        %v3735 = vadd.f32 %v3671, %v2039
        %v3736 = vadd.f32 %v3672, %v2040
        %v3737 = vadd.f32 %v3673, %v2041
        %v3738 = vadd.f32 %v3674, %v2042
        %v3739 = vadd.f32 %v3675, %v2043
        %v3740 = vadd.f32 %v3676, %v2044
        %v3741 = vadd.f32 %v3677, %v2045
        %v3742 = vadd.f32 %v3678, %v2046
        %v3743 = vadd.f32 %v3679, %v2047
        %v3744 = vadd.f32 %v3680, %v2048
        %v3745 = vadd.f32 %v3681, %v2049
        %v3746 = vadd.f32 %v3682, %v2050
        %v3747 = vadd.f32 %v3683, %v2051
        %v3748 = vadd.f32 %v3684, %v2052
        %v3749 = vadd.f32 %v3685, %v2053
        %v3750 = vadd.f32 %v3686, %v2054
        %v3751 = vadd.f32 %v3687, %v2055
        %v3752 = vadd.f32 %v3688, %v2056
        %v3753 = vadd.f32 %v3689, %v2057
        %v3754 = vadd.f32 %v3690, %v2058
        %v3755 = vadd.f32 %v3691, %v2059
        %v3756 = vadd.f32 %v3692, %v2060
        %v3757 = vadd.f32 %v3693, %v2061
        %v3758 = vadd.f32 %v3694, %v2062
        %v3759 = vadd.f32 %v3695, %v2063
        %v3760 = vadd.f32 %v3696, %v2064
        %v3761 = vadd.f32 %v3697, %v2065
        %v3762 = vadd.f32 %v3698, %v2066
        %v3763 = vadd.f32 %v3699, %v2067
        %v3764 = vadd.f32 %v3700, %v2068
        %v3765 = vadd.f32 %v3701, %v2069
        %v3766 = vadd.f32 %v3702, %v2070
        %v3767 = vadd.f32 %v3703, %v2071
        %v3768 = vadd.f32 %v3704, %v2072
        %v3769 = vadd.f32 %v3705, %v2073
        %v3770 = vadd.f32 %v3706, %v2074
        %v3771 = vadd.f32 %v3707, %v2075
        %v3772 = vadd.f32 %v3708, %v2076
        %v3773 = vadd.f32 %v3709, %v2077
        %v3774 = vadd.f32 %v3710, %v2078
        %v3775 = vadd.f32 %v3711, %v2079
        %v3776 = vadd.f32 %v3712, %v2080
        %v3777 = vadd.f32 %v3713, %v2081
        %v3778 = vadd.f32 %v3714, %v2082
        %v3779 = vadd.f32 %v3715, %v2083
        %v3780 = vadd.f32 %v3716, %v2084
        %v3781 = vadd.f32 %v3717, %v2085
        %v3782 = vadd.f32 %v3718, %v2086
        %v3783 = vadd.f32 %v3719, %v2087
        %v3784 = vadd.f32 %v3720, %v2088
        %v3785 = vadd.f32 %v3721, %v2089
        %v3786 = vadd.f32 %v3722, %v2090
        %v3787 = vadd.f32 %v3723, %v2091
        %v3788 = vld [vmem:[%s9] sm:$0x1]
        %v3790 = vsel %vm1239, %v3788, 0
        %3792 = vmatprep.subr.mxu0 %v3725
        %3793 = vmatpush1.msra.mxu0 %v3724
        %3794 = vmatprep.subr.mxu0 %v3741
        %3795 = vmatpush1.msra.mxu0 %v3740
        %3796 = vmatprep.subr.mxu0 %v3757
        %3797 = vmatpush1.msra.mxu0 %v3756
        %3798 = vmatprep.subr.mxu0 %v3773
        %3799 = vmatpush1.msra.mxu0 %v3772
        %3800 = vmatprep.subr.mxu0 0.0
        %3801 = vmatpush1.msra.mxu0 0.0
        %3802 = vmatprep.subr.mxu0 0.0
        %3803 = vmatpush1.msra.mxu0 0.0
        %3804 = vmatprep.subr.mxu0 0.0
        %3805 = vmatpush1.msra.mxu0 0.0
        %3806 = vmatprep.subr.mxu0 0.0
        %3807 = vmatpush1.msra.mxu0 0.0
        %3808 = vmatprep.subr.mxu0 0.0
        %3809 = vmatpush1.msra.mxu0 0.0
        %3810 = vmatprep.subr.mxu0 0.0
        %3811 = vmatpush1.msra.mxu0 0.0
        %3812 = vmatprep.subr.mxu0 0.0
        %3813 = vmatpush1.msra.mxu0 0.0
        %3814 = vmatprep.subr.mxu0 0.0
        %3815 = vmatpush1.msra.mxu0 0.0
        %3816 = vmatprep.subr.mxu0 0.0
        %3817 = vmatpush1.msra.mxu0 0.0
        %3818 = vmatprep.subr.mxu0 0.0
        %3819 = vmatpush1.msra.mxu0 0.0
        %3820 = vmatprep.subr.mxu0 0.0
        %3821 = vmatpush1.msra.mxu0 0.0
        %3822 = vmatprep.subr.mxu0 0.0
        %3823 = vmatpush1.msra.mxu0 0.0
        %3824 = vmatprep.subr.mxu0 0.0
        %3825 = vmatpush1.msra.mxu0 0.0
        %3826 = vmatprep.subr.mxu0 0.0
        %3827 = vmatpush1.msra.mxu0 0.0
        %3828 = vmatprep.subr.mxu0 0.0
        %3829 = vmatpush1.msra.mxu0 0.0
        %3830 = vmatprep.subr.mxu0 0.0
        %3831 = vmatpush1.msra.mxu0 0.0
        %3832 = vmatprep.subr.mxu0 0.0
        %3833 = vmatpush1.msra.mxu0 0.0
        %3834 = vmatprep.subr.mxu0 0.0
        %3835 = vmatpush1.msra.mxu0 0.0
        %3836 = vmatprep.subr.mxu0 0.0
        %3837 = vmatpush1.msra.mxu0 0.0
        %3838 = vmatprep.subr.mxu0 0.0
        %3839 = vmatpush1.msra.mxu0 0.0
        %3840 = vmatprep.subr.mxu0 0.0
        %3841 = vmatpush1.msra.mxu0 0.0
        %3842 = vmatprep.subr.mxu0 0.0
        %3843 = vmatpush1.msra.mxu0 0.0
        %3844 = vmatprep.subr.mxu0 0.0
        %3845 = vmatpush1.msra.mxu0 0.0
        %3846 = vmatprep.subr.mxu0 0.0
        %3847 = vmatpush1.msra.mxu0 0.0
        %3848 = vmatprep.subr.mxu0 0.0
        %3849 = vmatpush1.msra.mxu0 0.0
        %3850 = vmatprep.subr.mxu0 0.0
        %3851 = vmatpush1.msra.mxu0 0.0
        %3852 = vmatprep.subr.mxu0 0.0
        %3853 = vmatpush1.msra.mxu0 0.0
        %3854 = vmatprep.subr.mxu0 0.0
        %3855 = vmatpush1.msra.mxu0 0.0
        %3856 = vmatprep.mubr.f32.mxu0 0.0
        %3857 = vmatmul.mubr.f32.gmra.mrb[0].mxu0 %v3790
        %v3858 = vpop.f32.mrb[0].mxu0
        %v3859 = vadd.f32 0.0, %v3858
        %v3860 = vpop.f32.mrb[0].mxu0
        %v3861 = vadd.f32 0.0, %v3860
        %3862 = vdwg.mxu0
        %3863 = vmatprep.subr.mxu0 %v3727
        %3864 = vmatpush1.msra.mxu0 %v3726
        %3865 = vmatprep.subr.mxu0 %v3743
        %3866 = vmatpush1.msra.mxu0 %v3742
        %3867 = vmatprep.subr.mxu0 %v3759
        %3868 = vmatpush1.msra.mxu0 %v3758
        %3869 = vmatprep.subr.mxu0 %v3775
        %3870 = vmatpush1.msra.mxu0 %v3774
        %3871 = vmatprep.subr.mxu0 0.0
        %3872 = vmatpush1.msra.mxu0 0.0
        %3873 = vmatprep.subr.mxu0 0.0
        %3874 = vmatpush1.msra.mxu0 0.0
        %3875 = vmatprep.subr.mxu0 0.0
        %3876 = vmatpush1.msra.mxu0 0.0
        %3877 = vmatprep.subr.mxu0 0.0
        %3878 = vmatpush1.msra.mxu0 0.0
        %3879 = vmatprep.subr.mxu0 0.0
        %3880 = vmatpush1.msra.mxu0 0.0
        %3881 = vmatprep.subr.mxu0 0.0
        %3882 = vmatpush1.msra.mxu0 0.0
        %3883 = vmatprep.subr.mxu0 0.0
        %3884 = vmatpush1.msra.mxu0 0.0
        %3885 = vmatprep.subr.mxu0 0.0
        %3886 = vmatpush1.msra.mxu0 0.0
        %3887 = vmatprep.subr.mxu0 0.0
        %3888 = vmatpush1.msra.mxu0 0.0
        %3889 = vmatprep.subr.mxu0 0.0
        %3890 = vmatpush1.msra.mxu0 0.0
        %3891 = vmatprep.subr.mxu0 0.0
        %3892 = vmatpush1.msra.mxu0 0.0
        %3893 = vmatprep.subr.mxu0 0.0
        %3894 = vmatpush1.msra.mxu0 0.0
        %3895 = vmatprep.subr.mxu0 0.0
        %3896 = vmatpush1.msra.mxu0 0.0
        %3897 = vmatprep.subr.mxu0 0.0
        %3898 = vmatpush1.msra.mxu0 0.0
        %3899 = vmatprep.subr.mxu0 0.0
        %3900 = vmatpush1.msra.mxu0 0.0
        %3901 = vmatprep.subr.mxu0 0.0
        %3902 = vmatpush1.msra.mxu0 0.0
        %3903 = vmatprep.subr.mxu0 0.0
        %3904 = vmatpush1.msra.mxu0 0.0
        %3905 = vmatprep.subr.mxu0 0.0
        %3906 = vmatpush1.msra.mxu0 0.0
        %3907 = vmatprep.subr.mxu0 0.0
        %3908 = vmatpush1.msra.mxu0 0.0
        %3909 = vmatprep.subr.mxu0 0.0
        %3910 = vmatpush1.msra.mxu0 0.0
        %3911 = vmatprep.subr.mxu0 0.0
        %3912 = vmatpush1.msra.mxu0 0.0
        %3913 = vmatprep.subr.mxu0 0.0
        %3914 = vmatpush1.msra.mxu0 0.0
        %3915 = vmatprep.subr.mxu0 0.0
        %3916 = vmatpush1.msra.mxu0 0.0
        %3917 = vmatprep.subr.mxu0 0.0
        %3918 = vmatpush1.msra.mxu0 0.0
        %3919 = vmatprep.subr.mxu0 0.0
        %3920 = vmatpush1.msra.mxu0 0.0
        %3921 = vmatprep.subr.mxu0 0.0
        %3922 = vmatpush1.msra.mxu0 0.0
        %3923 = vmatprep.subr.mxu0 0.0
        %3924 = vmatpush1.msra.mxu0 0.0
        %3925 = vmatprep.subr.mxu0 0.0
        %3926 = vmatpush1.msra.mxu0 0.0
        %3927 = vmatprep.mubr.f32.mxu0 0.0
        %3928 = vmatmul.mubr.f32.gmra.mrb[0].mxu0 %v3790
        %v3929 = vpop.f32.mrb[0].mxu0
        %v3930 = vadd.f32 0.0, %v3929
        %v3931 = vpop.f32.mrb[0].mxu0
        %v3932 = vadd.f32 0.0, %v3931
        %3933 = vdwg.mxu0
        %3934 = vmatprep.subr.mxu0 %v3729
        %3935 = vmatpush1.msra.mxu0 %v3728
        %3936 = vmatprep.subr.mxu0 %v3745
        %3937 = vmatpush1.msra.mxu0 %v3744
        %3938 = vmatprep.subr.mxu0 %v3761
        %3939 = vmatpush1.msra.mxu0 %v3760
        %3940 = vmatprep.subr.mxu0 %v3777
        %3941 = vmatpush1.msra.mxu0 %v3776
        %3942 = vmatprep.subr.mxu0 0.0
        %3943 = vmatpush1.msra.mxu0 0.0
        %3944 = vmatprep.subr.mxu0 0.0
        %3945 = vmatpush1.msra.mxu0 0.0
        %3946 = vmatprep.subr.mxu0 0.0
        %3947 = vmatpush1.msra.mxu0 0.0
        %3948 = vmatprep.subr.mxu0 0.0
        %3949 = vmatpush1.msra.mxu0 0.0
        %3950 = vmatprep.subr.mxu0 0.0
        %3951 = vmatpush1.msra.mxu0 0.0
        %3952 = vmatprep.subr.mxu0 0.0
        %3953 = vmatpush1.msra.mxu0 0.0
        %3954 = vmatprep.subr.mxu0 0.0
        %3955 = vmatpush1.msra.mxu0 0.0
        %3956 = vmatprep.subr.mxu0 0.0
        %3957 = vmatpush1.msra.mxu0 0.0
        %3958 = vmatprep.subr.mxu0 0.0
        %3959 = vmatpush1.msra.mxu0 0.0
        %3960 = vmatprep.subr.mxu0 0.0
        %3961 = vmatpush1.msra.mxu0 0.0
        %3962 = vmatprep.subr.mxu0 0.0
        %3963 = vmatpush1.msra.mxu0 0.0
        %3964 = vmatprep.subr.mxu0 0.0
        %3965 = vmatpush1.msra.mxu0 0.0
        %3966 = vmatprep.subr.mxu0 0.0
        %3967 = vmatpush1.msra.mxu0 0.0
        %3968 = vmatprep.subr.mxu0 0.0
        %3969 = vmatpush1.msra.mxu0 0.0
        %3970 = vmatprep.subr.mxu0 0.0
        %3971 = vmatpush1.msra.mxu0 0.0
        %3972 = vmatprep.subr.mxu0 0.0
        %3973 = vmatpush1.msra.mxu0 0.0
        %3974 = vmatprep.subr.mxu0 0.0
        %3975 = vmatpush1.msra.mxu0 0.0
        %3976 = vmatprep.subr.mxu0 0.0
        %3977 = vmatpush1.msra.mxu0 0.0
        %3978 = vmatprep.subr.mxu0 0.0
        %3979 = vmatpush1.msra.mxu0 0.0
        %3980 = vmatprep.subr.mxu0 0.0
        %3981 = vmatpush1.msra.mxu0 0.0
        %3982 = vmatprep.subr.mxu0 0.0
        %3983 = vmatpush1.msra.mxu0 0.0
        %3984 = vmatprep.subr.mxu0 0.0
        %3985 = vmatpush1.msra.mxu0 0.0
        %3986 = vmatprep.subr.mxu0 0.0
        %3987 = vmatpush1.msra.mxu0 0.0
        %3988 = vmatprep.subr.mxu0 0.0
        %3989 = vmatpush1.msra.mxu0 0.0
        %3990 = vmatprep.subr.mxu0 0.0
        %3991 = vmatpush1.msra.mxu0 0.0
        %3992 = vmatprep.subr.mxu0 0.0
        %3993 = vmatpush1.msra.mxu0 0.0
        %3994 = vmatprep.subr.mxu0 0.0
        %3995 = vmatpush1.msra.mxu0 0.0
        %3996 = vmatprep.subr.mxu0 0.0
        %3997 = vmatpush1.msra.mxu0 0.0
        %3998 = vmatprep.mubr.f32.mxu0 0.0
        %3999 = vmatmul.mubr.f32.gmra.mrb[0].mxu0 %v3790
        %v4000 = vpop.f32.mrb[0].mxu0
        %v4001 = vadd.f32 0.0, %v4000
        %v4002 = vpop.f32.mrb[0].mxu0
        %v4003 = vadd.f32 0.0, %v4002
        %4004 = vdwg.mxu0
        %4005 = vmatprep.subr.mxu0 %v3731
        %4006 = vmatpush1.msra.mxu0 %v3730
        %4007 = vmatprep.subr.mxu0 %v3747
        %4008 = vmatpush1.msra.mxu0 %v3746
        %4009 = vmatprep.subr.mxu0 %v3763
        %4010 = vmatpush1.msra.mxu0 %v3762
        %4011 = vmatprep.subr.mxu0 %v3779
        %4012 = vmatpush1.msra.mxu0 %v3778
        %4013 = vmatprep.subr.mxu0 0.0
        %4014 = vmatpush1.msra.mxu0 0.0
        %4015 = vmatprep.subr.mxu0 0.0
        %4016 = vmatpush1.msra.mxu0 0.0
        %4017 = vmatprep.subr.mxu0 0.0
        %4018 = vmatpush1.msra.mxu0 0.0
        %4019 = vmatprep.subr.mxu0 0.0
        %4020 = vmatpush1.msra.mxu0 0.0
        %4021 = vmatprep.subr.mxu0 0.0
        %4022 = vmatpush1.msra.mxu0 0.0
        %4023 = vmatprep.subr.mxu0 0.0
        %4024 = vmatpush1.msra.mxu0 0.0
        %4025 = vmatprep.subr.mxu0 0.0
        %4026 = vmatpush1.msra.mxu0 0.0
        %4027 = vmatprep.subr.mxu0 0.0
        %4028 = vmatpush1.msra.mxu0 0.0
        %4029 = vmatprep.subr.mxu0 0.0
        %4030 = vmatpush1.msra.mxu0 0.0
        %4031 = vmatprep.subr.mxu0 0.0
        %4032 = vmatpush1.msra.mxu0 0.0
        %4033 = vmatprep.subr.mxu0 0.0
        %4034 = vmatpush1.msra.mxu0 0.0
        %4035 = vmatprep.subr.mxu0 0.0
        %4036 = vmatpush1.msra.mxu0 0.0
        %4037 = vmatprep.subr.mxu0 0.0
        %4038 = vmatpush1.msra.mxu0 0.0
        %4039 = vmatprep.subr.mxu0 0.0
        %4040 = vmatpush1.msra.mxu0 0.0
        %4041 = vmatprep.subr.mxu0 0.0
        %4042 = vmatpush1.msra.mxu0 0.0
        %4043 = vmatprep.subr.mxu0 0.0
        %4044 = vmatpush1.msra.mxu0 0.0
        %4045 = vmatprep.subr.mxu0 0.0
        %4046 = vmatpush1.msra.mxu0 0.0
        %4047 = vmatprep.subr.mxu0 0.0
        %4048 = vmatpush1.msra.mxu0 0.0
        %4049 = vmatprep.subr.mxu0 0.0
        %4050 = vmatpush1.msra.mxu0 0.0
        %4051 = vmatprep.subr.mxu0 0.0
        %4052 = vmatpush1.msra.mxu0 0.0
        %4053 = vmatprep.subr.mxu0 0.0
        %4054 = vmatpush1.msra.mxu0 0.0
        %4055 = vmatprep.subr.mxu0 0.0
        %4056 = vmatpush1.msra.mxu0 0.0
        %4057 = vmatprep.subr.mxu0 0.0
        %4058 = vmatpush1.msra.mxu0 0.0
        %4059 = vmatprep.subr.mxu0 0.0
        %4060 = vmatpush1.msra.mxu0 0.0
        %4061 = vmatprep.subr.mxu0 0.0
        %4062 = vmatpush1.msra.mxu0 0.0
        %4063 = vmatprep.subr.mxu0 0.0
        %4064 = vmatpush1.msra.mxu0 0.0
        %4065 = vmatprep.subr.mxu0 0.0
        %4066 = vmatpush1.msra.mxu0 0.0
        %4067 = vmatprep.subr.mxu0 0.0
        %4068 = vmatpush1.msra.mxu0 0.0
        %4069 = vmatprep.mubr.f32.mxu0 0.0
        %4070 = vmatmul.mubr.f32.gmra.mrb[0].mxu0 %v3790
        %v4071 = vpop.f32.mrb[0].mxu0
        %v4072 = vadd.f32 0.0, %v4071
        %v4073 = vpop.f32.mrb[0].mxu0
        %v4074 = vadd.f32 0.0, %v4073
        %4075 = vdwg.mxu0
        %4076 = vmatprep.subr.mxu0 %v3733
        %4077 = vmatpush1.msra.mxu0 %v3732
        %4078 = vmatprep.subr.mxu0 %v3749
        %4079 = vmatpush1.msra.mxu0 %v3748
        %4080 = vmatprep.subr.mxu0 %v3765
        %4081 = vmatpush1.msra.mxu0 %v3764
        %4082 = vmatprep.subr.mxu0 %v3781
        %4083 = vmatpush1.msra.mxu0 %v3780
        %4084 = vmatprep.subr.mxu0 0.0
        %4085 = vmatpush1.msra.mxu0 0.0
        %4086 = vmatprep.subr.mxu0 0.0
        %4087 = vmatpush1.msra.mxu0 0.0
        %4088 = vmatprep.subr.mxu0 0.0
        %4089 = vmatpush1.msra.mxu0 0.0
        %4090 = vmatprep.subr.mxu0 0.0
        %4091 = vmatpush1.msra.mxu0 0.0
        %4092 = vmatprep.subr.mxu0 0.0
        %4093 = vmatpush1.msra.mxu0 0.0
        %4094 = vmatprep.subr.mxu0 0.0
        %4095 = vmatpush1.msra.mxu0 0.0
        %4096 = vmatprep.subr.mxu0 0.0
        %4097 = vmatpush1.msra.mxu0 0.0
        %4098 = vmatprep.subr.mxu0 0.0
        %4099 = vmatpush1.msra.mxu0 0.0
        %4100 = vmatprep.subr.mxu0 0.0
        %4101 = vmatpush1.msra.mxu0 0.0
        %4102 = vmatprep.subr.mxu0 0.0
        %4103 = vmatpush1.msra.mxu0 0.0
        %4104 = vmatprep.subr.mxu0 0.0
        %4105 = vmatpush1.msra.mxu0 0.0
        %4106 = vmatprep.subr.mxu0 0.0
        %4107 = vmatpush1.msra.mxu0 0.0
        %4108 = vmatprep.subr.mxu0 0.0
        %4109 = vmatpush1.msra.mxu0 0.0
        %4110 = vmatprep.subr.mxu0 0.0
        %4111 = vmatpush1.msra.mxu0 0.0
        %4112 = vmatprep.subr.mxu0 0.0
        %4113 = vmatpush1.msra.mxu0 0.0
        %4114 = vmatprep.subr.mxu0 0.0
        %4115 = vmatpush1.msra.mxu0 0.0
        %4116 = vmatprep.subr.mxu0 0.0
        %4117 = vmatpush1.msra.mxu0 0.0
        %4118 = vmatprep.subr.mxu0 0.0
        %4119 = vmatpush1.msra.mxu0 0.0
        %4120 = vmatprep.subr.mxu0 0.0
        %4121 = vmatpush1.msra.mxu0 0.0
        %4122 = vmatprep.subr.mxu0 0.0
        %4123 = vmatpush1.msra.mxu0 0.0
        %4124 = vmatprep.subr.mxu0 0.0
        %4125 = vmatpush1.msra.mxu0 0.0
        %4126 = vmatprep.subr.mxu0 0.0
        %4127 = vmatpush1.msra.mxu0 0.0
        %4128 = vmatprep.subr.mxu0 0.0
        %4129 = vmatpush1.msra.mxu0 0.0
        %4130 = vmatprep.subr.mxu0 0.0
        %4131 = vmatpush1.msra.mxu0 0.0
        %4132 = vmatprep.subr.mxu0 0.0
        %4133 = vmatpush1.msra.mxu0 0.0
        %4134 = vmatprep.subr.mxu0 0.0
        %4135 = vmatpush1.msra.mxu0 0.0
        %4136 = vmatprep.subr.mxu0 0.0
        %4137 = vmatpush1.msra.mxu0 0.0
        %4138 = vmatprep.subr.mxu0 0.0
        %4139 = vmatpush1.msra.mxu0 0.0
        %4140 = vmatprep.mubr.f32.mxu0 0.0
        %4141 = vmatmul.mubr.f32.gmra.mrb[0].mxu0 %v3790
        %v4142 = vpop.f32.mrb[0].mxu0
        %v4143 = vadd.f32 0.0, %v4142
        %v4144 = vpop.f32.mrb[0].mxu0
        %v4145 = vadd.f32 0.0, %v4144
        %4146 = vdwg.mxu0
        %4147 = vmatprep.subr.mxu0 %v3735
        %4148 = vmatpush1.msra.mxu0 %v3734
        %4149 = vmatprep.subr.mxu0 %v3751
        %4150 = vmatpush1.msra.mxu0 %v3750
        %4151 = vmatprep.subr.mxu0 %v3767
        %4152 = vmatpush1.msra.mxu0 %v3766
        %4153 = vmatprep.subr.mxu0 %v3783
        %4154 = vmatpush1.msra.mxu0 %v3782
        %4155 = vmatprep.subr.mxu0 0.0
        %4156 = vmatpush1.msra.mxu0 0.0
        %4157 = vmatprep.subr.mxu0 0.0
        %4158 = vmatpush1.msra.mxu0 0.0
        %4159 = vmatprep.subr.mxu0 0.0
        %4160 = vmatpush1.msra.mxu0 0.0
        %4161 = vmatprep.subr.mxu0 0.0
        %4162 = vmatpush1.msra.mxu0 0.0
        %4163 = vmatprep.subr.mxu0 0.0
        %4164 = vmatpush1.msra.mxu0 0.0
        %4165 = vmatprep.subr.mxu0 0.0
        %4166 = vmatpush1.msra.mxu0 0.0
        %4167 = vmatprep.subr.mxu0 0.0
        %4168 = vmatpush1.msra.mxu0 0.0
        %4169 = vmatprep.subr.mxu0 0.0
        %4170 = vmatpush1.msra.mxu0 0.0
        %4171 = vmatprep.subr.mxu0 0.0
        %4172 = vmatpush1.msra.mxu0 0.0
        %4173 = vmatprep.subr.mxu0 0.0
        %4174 = vmatpush1.msra.mxu0 0.0
        %4175 = vmatprep.subr.mxu0 0.0
        %4176 = vmatpush1.msra.mxu0 0.0
        %4177 = vmatprep.subr.mxu0 0.0
        %4178 = vmatpush1.msra.mxu0 0.0
        %4179 = vmatprep.subr.mxu0 0.0
        %4180 = vmatpush1.msra.mxu0 0.0
        %4181 = vmatprep.subr.mxu0 0.0
        %4182 = vmatpush1.msra.mxu0 0.0
        %4183 = vmatprep.subr.mxu0 0.0
        %4184 = vmatpush1.msra.mxu0 0.0
        %4185 = vmatprep.subr.mxu0 0.0
        %4186 = vmatpush1.msra.mxu0 0.0
        %4187 = vmatprep.subr.mxu0 0.0
        %4188 = vmatpush1.msra.mxu0 0.0
        %4189 = vmatprep.subr.mxu0 0.0
        %4190 = vmatpush1.msra.mxu0 0.0
        %4191 = vmatprep.subr.mxu0 0.0
        %4192 = vmatpush1.msra.mxu0 0.0
        %4193 = vmatprep.subr.mxu0 0.0
        %4194 = vmatpush1.msra.mxu0 0.0
        %4195 = vmatprep.subr.mxu0 0.0
        %4196 = vmatpush1.msra.mxu0 0.0
        %4197 = vmatprep.subr.mxu0 0.0
        %4198 = vmatpush1.msra.mxu0 0.0
        %4199 = vmatprep.subr.mxu0 0.0
        %4200 = vmatpush1.msra.mxu0 0.0
        %4201 = vmatprep.subr.mxu0 0.0
        %4202 = vmatpush1.msra.mxu0 0.0
        %4203 = vmatprep.subr.mxu0 0.0
        %4204 = vmatpush1.msra.mxu0 0.0
        %4205 = vmatprep.subr.mxu0 0.0
        %4206 = vmatpush1.msra.mxu0 0.0
        %4207 = vmatprep.subr.mxu0 0.0
        %4208 = vmatpush1.msra.mxu0 0.0
        %4209 = vmatprep.subr.mxu0 0.0
        %4210 = vmatpush1.msra.mxu0 0.0
        %4211 = vmatprep.mubr.f32.mxu0 0.0
        %4212 = vmatmul.mubr.f32.gmra.mrb[0].mxu0 %v3790
        %v4213 = vpop.f32.mrb[0].mxu0
        %v4214 = vadd.f32 0.0, %v4213
        %v4215 = vpop.f32.mrb[0].mxu0
        %v4216 = vadd.f32 0.0, %v4215
        %4217 = vdwg.mxu0
        %4218 = vmatprep.subr.mxu0 %v3737
        %4219 = vmatpush1.msra.mxu0 %v3736
        %4220 = vmatprep.subr.mxu0 %v3753
        %4221 = vmatpush1.msra.mxu0 %v3752
        %4222 = vmatprep.subr.mxu0 %v3769
        %4223 = vmatpush1.msra.mxu0 %v3768
        %4224 = vmatprep.subr.mxu0 %v3785
        %4225 = vmatpush1.msra.mxu0 %v3784
        %4226 = vmatprep.subr.mxu0 0.0
        %4227 = vmatpush1.msra.mxu0 0.0
        %4228 = vmatprep.subr.mxu0 0.0
        %4229 = vmatpush1.msra.mxu0 0.0
        %4230 = vmatprep.subr.mxu0 0.0
        %4231 = vmatpush1.msra.mxu0 0.0
        %4232 = vmatprep.subr.mxu0 0.0
        %4233 = vmatpush1.msra.mxu0 0.0
        %4234 = vmatprep.subr.mxu0 0.0
        %4235 = vmatpush1.msra.mxu0 0.0
        %4236 = vmatprep.subr.mxu0 0.0
        %4237 = vmatpush1.msra.mxu0 0.0
        %4238 = vmatprep.subr.mxu0 0.0
        %4239 = vmatpush1.msra.mxu0 0.0
        %4240 = vmatprep.subr.mxu0 0.0
        %4241 = vmatpush1.msra.mxu0 0.0
        %4242 = vmatprep.subr.mxu0 0.0
        %4243 = vmatpush1.msra.mxu0 0.0
        %4244 = vmatprep.subr.mxu0 0.0
        %4245 = vmatpush1.msra.mxu0 0.0
        %4246 = vmatprep.subr.mxu0 0.0
        %4247 = vmatpush1.msra.mxu0 0.0
        %4248 = vmatprep.subr.mxu0 0.0
        %4249 = vmatpush1.msra.mxu0 0.0
        %4250 = vmatprep.subr.mxu0 0.0
        %4251 = vmatpush1.msra.mxu0 0.0
        %4252 = vmatprep.subr.mxu0 0.0
        %4253 = vmatpush1.msra.mxu0 0.0
        %4254 = vmatprep.subr.mxu0 0.0
        %4255 = vmatpush1.msra.mxu0 0.0
        %4256 = vmatprep.subr.mxu0 0.0
        %4257 = vmatpush1.msra.mxu0 0.0
        %4258 = vmatprep.subr.mxu0 0.0
        %4259 = vmatpush1.msra.mxu0 0.0
        %4260 = vmatprep.subr.mxu0 0.0
        %4261 = vmatpush1.msra.mxu0 0.0
        %4262 = vmatprep.subr.mxu0 0.0
        %4263 = vmatpush1.msra.mxu0 0.0
        %4264 = vmatprep.subr.mxu0 0.0
        %4265 = vmatpush1.msra.mxu0 0.0
        %4266 = vmatprep.subr.mxu0 0.0
        %4267 = vmatpush1.msra.mxu0 0.0
        %4268 = vmatprep.subr.mxu0 0.0
        %4269 = vmatpush1.msra.mxu0 0.0
        %4270 = vmatprep.subr.mxu0 0.0
        %4271 = vmatpush1.msra.mxu0 0.0
        %4272 = vmatprep.subr.mxu0 0.0
        %4273 = vmatpush1.msra.mxu0 0.0
        %4274 = vmatprep.subr.mxu0 0.0
        %4275 = vmatpush1.msra.mxu0 0.0
        %4276 = vmatprep.subr.mxu0 0.0
        %4277 = vmatpush1.msra.mxu0 0.0
        %4278 = vmatprep.subr.mxu0 0.0
        %4279 = vmatpush1.msra.mxu0 0.0
        %4280 = vmatprep.subr.mxu0 0.0
        %4281 = vmatpush1.msra.mxu0 0.0
        %4282 = vmatprep.mubr.f32.mxu0 0.0
        %4283 = vmatmul.mubr.f32.gmra.mrb[0].mxu0 %v3790
        %v4284 = vpop.f32.mrb[0].mxu0
        %v4285 = vadd.f32 0.0, %v4284
        %v4286 = vpop.f32.mrb[0].mxu0
        %v4287 = vadd.f32 0.0, %v4286
        %4288 = vdwg.mxu0
        %4289 = vmatprep.subr.mxu0 %v3739
        %4290 = vmatpush1.msra.mxu0 %v3738
        %4291 = vmatprep.subr.mxu0 %v3755
        %4292 = vmatpush1.msra.mxu0 %v3754
        %4293 = vmatprep.subr.mxu0 %v3771
        %4294 = vmatpush1.msra.mxu0 %v3770
        %4295 = vmatprep.subr.mxu0 %v3787
        %4296 = vmatpush1.msra.mxu0 %v3786
        %4297 = vmatprep.subr.mxu0 0.0
        %4298 = vmatpush1.msra.mxu0 0.0
        %4299 = vmatprep.subr.mxu0 0.0
        %4300 = vmatpush1.msra.mxu0 0.0
        %4301 = vmatprep.subr.mxu0 0.0
        %4302 = vmatpush1.msra.mxu0 0.0
        %4303 = vmatprep.subr.mxu0 0.0
        %4304 = vmatpush1.msra.mxu0 0.0
        %4305 = vmatprep.subr.mxu0 0.0
        %4306 = vmatpush1.msra.mxu0 0.0
        %4307 = vmatprep.subr.mxu0 0.0
        %4308 = vmatpush1.msra.mxu0 0.0
        %4309 = vmatprep.subr.mxu0 0.0
        %4310 = vmatpush1.msra.mxu0 0.0
        %4311 = vmatprep.subr.mxu0 0.0
        %4312 = vmatpush1.msra.mxu0 0.0
        %4313 = vmatprep.subr.mxu0 0.0
        %4314 = vmatpush1.msra.mxu0 0.0
        %4315 = vmatprep.subr.mxu0 0.0
        %4316 = vmatpush1.msra.mxu0 0.0
        %4317 = vmatprep.subr.mxu0 0.0
        %4318 = vmatpush1.msra.mxu0 0.0
        %4319 = vmatprep.subr.mxu0 0.0
        %4320 = vmatpush1.msra.mxu0 0.0
        %4321 = vmatprep.subr.mxu0 0.0
        %4322 = vmatpush1.msra.mxu0 0.0
        %4323 = vmatprep.subr.mxu0 0.0
        %4324 = vmatpush1.msra.mxu0 0.0
        %4325 = vmatprep.subr.mxu0 0.0
        %4326 = vmatpush1.msra.mxu0 0.0
        %4327 = vmatprep.subr.mxu0 0.0
        %4328 = vmatpush1.msra.mxu0 0.0
        %4329 = vmatprep.subr.mxu0 0.0
        %4330 = vmatpush1.msra.mxu0 0.0
        %4331 = vmatprep.subr.mxu0 0.0
        %4332 = vmatpush1.msra.mxu0 0.0
        %4333 = vmatprep.subr.mxu0 0.0
        %4334 = vmatpush1.msra.mxu0 0.0
        %4335 = vmatprep.subr.mxu0 0.0
        %4336 = vmatpush1.msra.mxu0 0.0
        %4337 = vmatprep.subr.mxu0 0.0
        %4338 = vmatpush1.msra.mxu0 0.0
        %4339 = vmatprep.subr.mxu0 0.0
        %4340 = vmatpush1.msra.mxu0 0.0
        %4341 = vmatprep.subr.mxu0 0.0
        %4342 = vmatpush1.msra.mxu0 0.0
        %4343 = vmatprep.subr.mxu0 0.0
        %4344 = vmatpush1.msra.mxu0 0.0
        %4345 = vmatprep.subr.mxu0 0.0
        %4346 = vmatpush1.msra.mxu0 0.0
        %4347 = vmatprep.subr.mxu0 0.0
        %4348 = vmatpush1.msra.mxu0 0.0
        %4349 = vmatprep.subr.mxu0 0.0
        %4350 = vmatpush1.msra.mxu0 0.0
        %4351 = vmatprep.subr.mxu0 0.0
        %4352 = vmatpush1.msra.mxu0 0.0
        %4353 = vmatprep.mubr.f32.mxu0 0.0
        %4354 = vmatmul.mubr.f32.gmra.mrb[0].mxu0 %v3790
        %v4355 = vpop.f32.mrb[0].mxu0
        %v4356 = vadd.f32 0.0, %v4355
        %v4357 = vpop.f32.mrb[0].mxu0
        %v4358 = vadd.f32 0.0, %v4357
        %4359 = vdwg.mxu0
        %v4376 = vcombine.low %v3859, %v3861
        %v4377 = vcombine.low %v3930, %v3932
        %v4378 = vcombine.low %v4001, %v4003
        %v4379 = vcombine.low %v4072, %v4074
        %v4381 = vunpack.c.l.s4 1966171168
        %v4382 = vunpack.c.0.s8 %v4381
        %v4383 = vlaneseq
        %v4384 = vshrl.u32 %v4383, 7
        %v4385 = vsub.s32 %v4382, %v4384
        %v4386 = vrot.slane %v4376, %v4385
        %v4388 = vunpack.c.l.s4 1966171168
        %v4389 = vunpack.c.0.s8 %v4388
        %v4390 = vlaneseq
        %v4391 = vshrl.u32 %v4390, 7
        %v4392 = vsub.s32 %v4389, %v4391
        %v4393 = vrot.slane %v4377, %v4392
        %v4395 = vunpack.c.l.s4 1966171168
        %v4396 = vunpack.c.0.s8 %v4395
        %v4397 = vlaneseq
        %v4398 = vshrl.u32 %v4397, 7
        %v4399 = vsub.s32 %v4396, %v4398
        %v4400 = vrot.slane %v4378, %v4399
        %v4402 = vunpack.c.l.s4 1966171168
        %v4403 = vunpack.c.0.s8 %v4402
        %v4404 = vlaneseq
        %v4405 = vshrl.u32 %v4404, 7
        %v4406 = vsub.s32 %v4403, %v4405
        %v4407 = vrot.slane %v4379, %v4406
        %v4408 = vcombine.low %v4386, %v4393
        %v4409 = vcombine.low %v4400, %v4407
        %v4411 = vunpack.c.l.s4 1966171168
        %v4412 = vunpack.c.0.s8 %v4411
        %v4413 = vlaneseq
        %v4414 = vshrl.u32 %v4413, 7
        %v4415 = vsub.s32 %v4412, %v4414
        %v4416 = vrot.slane %v4408, %v4415
        %v4418 = vunpack.c.l.s4 1966171168
        %v4419 = vunpack.c.0.s8 %v4418
        %v4420 = vlaneseq
        %v4421 = vshrl.u32 %v4420, 7
        %v4422 = vsub.s32 %v4419, %v4421
        %v4423 = vrot.slane %v4409, %v4422
        %v4424 = vcombine.low %v4416, %v4423
        %v4425 = vcombine.low %v4143, %v4145
        %v4426 = vcombine.low %v4214, %v4216
        %v4427 = vcombine.low %v4285, %v4287
        %v4428 = vcombine.low %v4356, %v4358
        %v4430 = vunpack.c.l.s4 1966171168
        %v4431 = vunpack.c.0.s8 %v4430
        %v4432 = vlaneseq
        %v4433 = vshrl.u32 %v4432, 7
        %v4434 = vsub.s32 %v4431, %v4433
        %v4435 = vrot.slane %v4425, %v4434
        %v4437 = vunpack.c.l.s4 1966171168
        %v4438 = vunpack.c.0.s8 %v4437
        %v4439 = vlaneseq
        %v4440 = vshrl.u32 %v4439, 7
        %v4441 = vsub.s32 %v4438, %v4440
        %v4442 = vrot.slane %v4426, %v4441
        %v4444 = vunpack.c.l.s4 1966171168
        %v4445 = vunpack.c.0.s8 %v4444
        %v4446 = vlaneseq
        %v4447 = vshrl.u32 %v4446, 7
        %v4448 = vsub.s32 %v4445, %v4447
        %v4449 = vrot.slane %v4427, %v4448
        %v4451 = vunpack.c.l.s4 1966171168
        %v4452 = vunpack.c.0.s8 %v4451
        %v4453 = vlaneseq
        %v4454 = vshrl.u32 %v4453, 7
        %v4455 = vsub.s32 %v4452, %v4454
        %v4456 = vrot.slane %v4428, %v4455
        %v4457 = vcombine.low %v4435, %v4442
        %v4458 = vcombine.low %v4449, %v4456
        %v4460 = vunpack.c.l.s4 1966171168
        %v4461 = vunpack.c.0.s8 %v4460
        %v4462 = vlaneseq
        %v4463 = vshrl.u32 %v4462, 7
        %v4464 = vsub.s32 %v4461, %v4463
        %v4465 = vrot.slane %v4457, %v4464
        %v4467 = vunpack.c.l.s4 1966171168
        %v4468 = vunpack.c.0.s8 %v4467
        %v4469 = vlaneseq
        %v4470 = vshrl.u32 %v4469, 7
        %v4471 = vsub.s32 %v4468, %v4470
        %v4472 = vrot.slane %v4458, %v4471
        %v4473 = vcombine.low %v4465, %v4472
        %4476 = vst [vmem:[%s375] sm:$0xff] %v4424
        %4477 = vst [vmem:[%s375 + $0x8] sm:$0xff] %v4473
        %s4478 = sand.u32 %s250, 1
        %s4479 = scalar_lea.sflag [#allocation4], %s4478
        %s4480 = sand.u32 %s250, 1
        %s4481 = smul.addr %s4480, 16
        %s4482 = scalar_lea.vmem [#allocation5], %s4481
        // Predicated region
        $region65: #{tpu_custom_call.1} parent=59 // pred_check
          %p4483 = pneg %p260
        $region66: #{tpu_custom_call.1} parent=59 // pred_check_branch
          %4485 = sbr.rel (%p4483) target = $region68
        $region67: #{tpu_custom_call.1} parent=59 // pred_region
          %s4486 = smul.u32 16, %s27
          %s4488 = ssub.s32 256, 256
          %4489 = vsyncadd %s4479, %s4488
          %s4490 = smul.addr %s4486, 16
          %s4491 = scalar_lea.hbm %s10, %s4490
          %s4493 = sshll.u32 %s4482, 4
          %s4494 = int_to_ptr.vmem [resolvable:$true] %s4493
          %4496 = dma.vmem_to_hbm [thread:$0]  %s4494, 256, %s4491, %s4479
        $region68: #{tpu_custom_call.1} parent=59 // pred_fallthru
          _
      $region60: #{tpu_custom_call.1} parent=5 // pred_fallthru
        _
      %p4497 = scmp.le.s32.totalorder 2, %s22
      // Predicated region
      $region69: #{tpu_custom_call.1} parent=5 // pred_check
        %p4498 = pneg %p4497
      $region70: #{tpu_custom_call.1} parent=5 // pred_check_branch
        %4500 = sbr.rel (%p4498) target = $region72
      $region71: #{tpu_custom_call.1} parent=5 // pred_region
        %s4501 = ssub.s32 %s22, 2
        // Predicated region
        $region73: #{tpu_custom_call.1} parent=71 // pred_check
          %p4502 = pneg %p266
        $region74: #{tpu_custom_call.1} parent=71 // pred_check_branch
          %4504 = sbr.rel (%p4502) target = $region76
        $region75: #{tpu_custom_call.1} parent=71 // pred_region
          %s4505 = sand.u32 %s251, 1
          %s4506 = scalar_lea.sflag [#allocation4], %s4505
          %s4507 = sand.u32 %s251, 1
          %s4508 = smul.addr %s4507, 16
          %s4509 = scalar_lea.vmem [#allocation5], %s4508
          %4510 = dma.done %s4506, 256
        $region76: #{tpu_custom_call.1} parent=71 // pred_fallthru
          _
      $region72: #{tpu_custom_call.1} parent=5 // pred_fallthru
        _
    $region6: #{tpu_custom_call.1} parent=1 // loop_footer
      %s26 = sadd.s32 1, %s22
    $region7: #{tpu_custom_call.1} parent=1 // loop_footer_branch
      %21 = sbr.rel target = $region3
    $region8: #{tpu_custom_call.1} parent=1 // loop_exit
      _
    %4511 = vsyncpa [#allocation3], 1
    %s4512 = scalar_lea.sflag [#allocation3], 1
    %4513 = vsyncpa %s4512, 1
    %4514 = vsyncpa [#allocation4], 1
    %s4515 = scalar_lea.sflag [#allocation4], 1
    %4516 = vsyncpa %s4515, 1

</llo_original>
